<compile_context>
chip_gen: v7x
topology: tpu7x:2x2x1
jax: 0.10.0
libtpu: 0.0.40
codegen_flags: <defaults>
</compile_context>

<pallas_src>
import functools

import jax
import jax.numpy as jnp
from jax.experimental import pallas as pl
from jax.experimental.pallas import tpu as pltpu

EPS = 1e-5     # torch InstanceNorm2d default
LANE = 128


def _round_up(x, m):
    return (x + m - 1) // m * m


# --------------------------------------------------------------------------- #
# Kernel 1: sub-pixel transposed conv (k=3, s=2, p=1, op=1) + InstanceNorm + PReLU
# --------------------------------------------------------------------------- #
def _upconv_kernel(x_ref, w_ref, mask_ref, alpha_ref, o_ref, *, h, w, wq, apply_adn):
    # x_ref    : (1, Cin, Nin)        bf16  dec, bottom/right zero-padded, row width wq, flattened
    # w_ref    : (9, Cout, Cin)       bf16  tap t = ky*3+kx, W[t,o,c] = up_w[c,o,ky,kx]
    # mask_ref : (1, Ncomp)           f32   1.0 on valid flattened columns
    # alpha_ref: (1,)  SMEM           f32   PReLU slope
    # o_ref    : (1, 4, Cout, Ncomp)  bf16  phase p = r*2 + c  (output parity r, c)
    ncomp = o_ref.shape[-1]
    cout = o_ref.shape[2]

    # taps contributing to each output parity: (kernel index, input shift)
    row_taps = {0: ((1, 0),), 1: ((2, 0), (0, 1))}
    col_taps = {0: ((1, 0),), 1: ((2, 0), (0, 1))}

    ys = []
    for r in (0, 1):
        for c in (0, 1):
            acc = jnp.zeros((cout, ncomp), jnp.float32)
            for ky, di in row_taps[r]:
                for kx, dj in col_taps[c]:
                    t = ky * 3 + kx
                    off = di * wq + dj
                    acc = acc + jnp.dot(
                        w_ref[t], x_ref[0, :, off:off + ncomp],
                        preferred_element_type=jnp.float32)
            ys.append(acc)

    if apply_adn:
        # N: InstanceNorm(affine=False) over all 4 phases' valid columns; D: dropout p=0; A: PReLU
        mask = mask_ref[...]                       # (1, ncomp)
        inv_n = 1.0 / float(4 * h * w)
        s = sum(jnp.sum(y * mask, axis=-1, keepdims=True) for y in ys)
        ss = sum(jnp.sum(jnp.square(y) * mask, axis=-1, keepdims=True) for y in ys)
        mean = s * inv_n
        var = ss * inv_n - jnp.square(mean)
        rstd = jax.lax.rsqrt(var + EPS)
        alpha = alpha_ref[0]
        for p in range(4):
            yn = (ys[p] - mean) * rstd
            yn = jnp.where(yn >= 0.0, yn, yn * alpha)
            o_ref[0, p] = yn.astype(o_ref.dtype)
    else:
        for p in range(4):
            o_ref[0, p] = ys[p].astype(o_ref.dtype)


def conv_transpose_up(dec_nchw, up_w, alpha, *, apply_adn=True):
    """ConvTranspose2d(k=3, s=2, p=1, op=1, no bias*) [+ IN + PReLU], sub-pixel decomposition.
    (*bias is mathematically cancelled by InstanceNorm; conv_only path adds it outside.)"""
    b, cin, h, w = dec_nchw.shape
    cout = up_w.shape[1]
    wq = w + 1
    ncomp = _round_up(h * wq, LANE)
    nin = _round_up(ncomp + wq + 1, LANE)

    # bottom/right zero pad (for the i+1 / j+1 taps), row-flatten, lane pad, bf16
    xp = jnp.pad(dec_nchw, ((0, 0), (0, 0), (0, 1), (0, 1)))
    xf = xp.reshape(b, cin, (h + 1) * wq)
    xf = jnp.pad(xf, ((0, 0), (0, 0), (0, nin - (h + 1) * wq))).astype(jnp.bfloat16)

    # tap weights: W[t, o, c] = up_w[c, o, ky, kx]
    w_taps = jnp.transpose(up_w, (2, 3, 1, 0)).reshape(9, cout, cin).astype(jnp.bfloat16)

    # valid flattened columns: column-within-row < w and within the h rows
    q = jnp.arange(ncomp)
    mask = (((q % wq) < w) & (q < h * wq)).astype(jnp.float32)[None, :]

    alpha_arr = jnp.asarray(alpha, jnp.float32).reshape(1)

    kernel = functools.partial(_upconv_kernel, h=h, w=w, wq=wq, apply_adn=apply_adn)
    flops = 2 * b * 9 * cout * cin * ncomp
    bytes_accessed = (xf.size + w_taps.size) * 2 + mask.size * 4 + b * 4 * cout * ncomp * 2

    phases = pl.pallas_call(
        kernel,
        out_shape=jax.ShapeDtypeStruct((b, 4, cout, ncomp), jnp.bfloat16),
        grid=(b,),
        in_specs=[
            pl.BlockSpec((1, cin, nin), lambda i: (i, 0, 0)),
            pl.BlockSpec((9, cout, cin), lambda i: (0, 0, 0)),
            pl.BlockSpec((1, ncomp), lambda i: (0, 0)),
            pl.BlockSpec(memory_space=pltpu.MemorySpace.SMEM),
        ],
        out_specs=pl.BlockSpec((1, 4, cout, ncomp), lambda i: (i, 0, 0, 0)),
        compiler_params=pltpu.CompilerParams(
            dimension_semantics=("parallel",),
            vmem_limit_bytes=64 * 1024 * 1024),
        cost_estimate=pl.CostEstimate(flops=flops, transcendentals=0,
                                      bytes_accessed=bytes_accessed),
    )(xf, w_taps, mask, alpha_arr)

    # drop garbage columns and interleave the 4 phases -> (b, cout, 2h, 2w)
    ph = phases[:, :, :, :h * wq].reshape(b, 2, 2, cout, h, wq)[..., :w]
    up = jnp.transpose(ph, (0, 3, 4, 1, 5, 2)).reshape(b, cout, 2 * h, 2 * w)
    return up


# --------------------------------------------------------------------------- #
# Kernel 2: 3x3 conv over cat(up, enc) (concat fused) + InstanceNorm + PReLU
# --------------------------------------------------------------------------- #
def _skipconv_kernel(up_ref, enc_ref, wu_ref, we_ref, mask_ref, alpha_ref, o_ref, *,
                     wp, n_valid, apply_adn):
    # up_ref  : (1, Cu, Nin) bf16   zero-padded (1px) up plane, row width wp, flattened
    # enc_ref : (1, Ce, Nin) bf16   same layout
    # wu_ref  : (9, Cout, Cu) bf16  we_ref: (9, Cout, Ce) bf16
    # mask_ref: (1, Ncomp) f32      alpha_ref: (1,) SMEM f32
    # o_ref   : (1, Cout, Ncomp) f32
    ncomp = o_ref.shape[-1]
    cout = o_ref.shape[1]
    acc = jnp.zeros((cout, ncomp), jnp.float32)
    for ky in range(3):
        for kx in range(3):
            t = ky * 3 + kx
            off = ky * wp + kx
            acc = acc + jnp.dot(wu_ref[t], up_ref[0, :, off:off + ncomp],
                                preferred_element_type=jnp.float32)
            acc = acc + jnp.dot(we_ref[t], enc_ref[0, :, off:off + ncomp],
                                preferred_element_type=jnp.float32)
    if apply_adn:
        mask = mask_ref[...]
        inv_n = 1.0 / float(n_valid)
        s = jnp.sum(acc * mask, axis=-1, keepdims=True)
        ss = jnp.sum(jnp.square(acc) * mask, axis=-1, keepdims=True)
        mean = s * inv_n
        var = ss * inv_n - jnp.square(mean)
        rstd = jax.lax.rsqrt(var + EPS)
        y = (acc - mean) * rstd
        y = jnp.where(y >= 0.0, y, y * alpha_ref[0])
        o_ref[0] = y.astype(o_ref.dtype)
    else:
        o_ref[0] = acc.astype(o_ref.dtype)


def skip_conv(up_nchw, enc_nchw, conv_w, alpha, *, apply_adn=True):
    """Conv2d(k=3, s=1, p=1, no bias*) over cat(up, enc, dim=1) [+ IN + PReLU]."""
    b, cu, ho, wo = up_nchw.shape
    ce = enc_nchw.shape[1]
    cout = conv_w.shape[0]
    hp, wp = ho + 2, wo + 2
    ncomp = _round_up(ho * wp, LANE)
    nin = _round_up(ncomp + 2 * wp + 2, LANE)

    def prep(x):
        xpad = jnp.pad(x, ((0, 0), (0, 0), (1, 1), (1, 1)))
        xf = xpad.reshape(x.shape[0], x.shape[1], hp * wp)
        xf = jnp.pad(xf, ((0, 0), (0, 0), (0, nin - hp * wp)))
        return xf.astype(jnp.bfloat16)

    upf, encf = prep(up_nchw), prep(enc_nchw)

    w_taps = jnp.transpose(conv_w, (2, 3, 0, 1)).reshape(9, cout, cu + ce)
    wu = w_taps[:, :, :cu].astype(jnp.bfloat16)
    we = w_taps[:, :, cu:].astype(jnp.bfloat16)

    q = jnp.arange(ncomp)
    mask = (((q % wp) < wo) & (q < ho * wp)).astype(jnp.float32)[None, :]
    alpha_arr = jnp.asarray(alpha, jnp.float32).reshape(1)

    kernel = functools.partial(_skipconv_kernel, wp=wp, n_valid=ho * wo,
                               apply_adn=apply_adn)
    flops = 2 * b * 9 * cout * (cu + ce) * ncomp
    bytes_accessed = ((upf.size + encf.size + wu.size + we.size) * 2
                      + mask.size * 4 + b * cout * ncomp * 4)

    y = pl.pallas_call(
        kernel,
        out_shape=jax.ShapeDtypeStruct((b, cout, ncomp), jnp.float32),
        grid=(b,),
        in_specs=[
            pl.BlockSpec((1, cu, nin), lambda i: (i, 0, 0)),
            pl.BlockSpec((1, ce, nin), lambda i: (i, 0, 0)),
            pl.BlockSpec((9, cout, cu), lambda i: (0, 0, 0)),
            pl.BlockSpec((9, cout, ce), lambda i: (0, 0, 0)),
            pl.BlockSpec((1, ncomp), lambda i: (0, 0)),
            pl.BlockSpec(memory_space=pltpu.MemorySpace.SMEM),
        ],
        out_specs=pl.BlockSpec((1, cout, ncomp), lambda i: (i, 0, 0)),
        compiler_params=pltpu.CompilerParams(
            dimension_semantics=("parallel",),
            vmem_limit_bytes=64 * 1024 * 1024),
        cost_estimate=pl.CostEstimate(flops=flops, transcendentals=0,
                                      bytes_accessed=bytes_accessed),
    )(upf, encf, wu, we, mask, alpha_arr)

    return y[:, :, :ho * wp].reshape(b, cout, ho, wp)[:, :, :, :wo]


# ------------------------------ Unet_de ------------------------------------ #
def init_unet_de_params(key, in_ch, out_ch, k=3, up_k=3):
    k0, k1, k2, k3 = jax.random.split(key, 4)
    s_up = 1.0 / (in_ch * up_k * up_k) ** 0.5
    s_c = 1.0 / (in_ch * k * k) ** 0.5
    return {
        # torch ConvTranspose2d weight: (in, out, kH, kW)
        "up_w": jax.random.normal(k0, (in_ch, out_ch, up_k, up_k), jnp.float32) * s_up,
        "up_b": jax.random.normal(k1, (out_ch,), jnp.float32) * s_up,
        "up_alpha": jnp.float32(0.25),          # nn.PReLU() init
        # torch Conv2d weight: (out, in, kH, kW)
        "conv_w": jax.random.normal(k2, (out_ch, in_ch, k, k), jnp.float32) * s_c,
        "conv_b": jax.random.normal(k3, (out_ch,), jnp.float32) * s_c,
        "conv_alpha": jnp.float32(0.25),
    }


def unet_de_forward(params, dec_nchw, enc_nchw, *, strides=2,
                    num_res_units=0, is_top=False):
    assert strides == 2, "sub-pixel up-conv implemented for stride 2, kernel 3"
    conv_up_conv_only = is_top and num_res_units == 0
    up = conv_transpose_up(dec_nchw, params["up_w"], params["up_alpha"],
                           apply_adn=not conv_up_conv_only)
    if conv_up_conv_only:
        # conv_only path keeps the bias (no InstanceNorm to cancel it)
        up = up.astype(jnp.float32) + params["up_b"][None, :, None, None]
    # num_res_units == 0 -> self.conv(cat(up, enc)); concat is fused into the kernel.
    out = skip_conv(up, enc_nchw, params["conv_w"], params["conv_alpha"],
                    apply_adn=True)
    return out


# ------------------------- pure-JAX reference check ------------------------ #
def _reference_forward(params, dec, enc, strides=2):
    def instnorm_prelu(y, alpha):
        mean = jnp.mean(y, axis=(1, 2), keepdims=True)
        var = jnp.mean(jnp.square(y - mean), axis=(1, 2), keepdims=True)
        y = (y - mean) * jax.lax.rsqrt(var + EPS)
        return jnp.where(y >= 0, y, y * alpha)

    dec_h = jnp.transpose(dec, (0, 2, 3, 1))
    enc_h = jnp.transpose(enc, (0, 2, 3, 1))
    w_up = jnp.transpose(jnp.flip(params["up_w"], axis=(2, 3)), (2, 3, 0, 1))
    up = jax.lax.conv_general_dilated(
        dec_h, w_up, window_strides=(1, 1),
        padding=[(1, strides), (1, strides)], lhs_dilation=(strides, strides),
        dimension_numbers=("NHWC", "HWIO", "NHWC")) + params["up_b"]
    up = instnorm_prelu(up, params["up_alpha"])
    skip = jnp.concatenate([up, enc_h], axis=-1)
    w_c = jnp.transpose(params["conv_w"], (2, 3, 1, 0))
    y = jax.lax.conv_general_dilated(
        skip, w_c, window_strides=(1, 1), padding=[(1, 1), (1, 1)],
        dimension_numbers=("NHWC", "HWIO", "NHWC")) + params["conv_b"]
    y = instnorm_prelu(y, params["conv_alpha"])
    return jnp.transpose(y, (0, 3, 1, 2))


if __name__ == "__main__":
    key = jax.random.PRNGKey(0)
    kp, kd, ke = jax.random.split(key, 3)

    B, IN_CH, OUT_CH, H, W, S = 2, 8, 4, 8, 8, 2
    params = init_unet_de_params(kp, IN_CH, OUT_CH)

    # dec: (B, in_channels_layer, H, W); enc: (B, in_ch - out_ch, H*S, W*S) so that
    # cat(up, enc) has in_channels_layer channels, as required by self.conv.
    dec = jax.random.normal(kd, (B, IN_CH, H, W), jnp.float32)
    enc = jax.random.normal(ke, (B, IN_CH - OUT_CH, H * S, W * S), jnp.float32)

    fwd = jax.jit(functools.partial(unet_de_forward, strides=S))
    out = jax.block_until_ready(fwd(params, dec, enc))
    assert out.shape == (B, OUT_CH, H * S, W * S), out.shape

    ref = _reference_forward(params, dec, enc, strides=S)
    max_err = float(jnp.max(jnp.abs(out - ref)))
    # bf16 MXU inputs vs f32 reference -> slightly looser tolerance than pure f32
    assert max_err < 5e-2, f"max_err={max_err}"

    print("KERNEL_OK")
</pallas_src>

<mosaic_0001>
module attributes {stable_mosaic.version = 11 : i64} {
  func.func @_upconv_kernel(%arg0: i32, %arg1: memref<1x8x256xbf16, #tpu.memory_space<vmem>>, %arg2: memref<9x4x8xbf16, #tpu.memory_space<vmem>>, %arg3: memref<1x128xf32, #tpu.memory_space<vmem>>, %arg4: memref<1xf32, #tpu.memory_space<smem>>, %arg5: memref<1x4x4x128xbf16, #tpu.memory_space<vmem>>) attributes {dimension_semantics = [#tpu.dimension_semantics<parallel>], iteration_bounds = array<i64: 2>, scalar_prefetch = 0 : i64, scratch_operands = 0 : i64, tpu.core_type = #tpu.core_type<tc>, window_params = [{transform_indices = @transform_0, window_bounds = array<i64: 1, 8, 256>}, {pipeline_mode = #tpu.pipeline_mode<synchronous>, transform_indices = @transform_1, window_bounds = array<i64: 9, 4, 8>}, {pipeline_mode = #tpu.pipeline_mode<synchronous>, transform_indices = @transform_2, window_bounds = array<i64: 1, 128>}, {transform_indices = @transform_3, window_bounds = array<i64: 1>}, {transform_indices = @transform_4, window_bounds = array<i64: 1, 4, 4, 128>}]} {
    %cst = arith.constant 0.000000e+00 : f32
    %0 = vector.broadcast %cst : f32 to vector<4x128xf32>
    %c4 = arith.constant 4 : index
    %c0 = arith.constant 0 : index
    %c0_0 = arith.constant 0 : index
    %1 = vector.load %arg2[%c4, %c0, %c0_0] : memref<9x4x8xbf16, #tpu.memory_space<vmem>>, vector<1x4x8xbf16>
    %2 = vector.shape_cast %1 : vector<1x4x8xbf16> to vector<4x8xbf16>
    %c0_1 = arith.constant 0 : index
    %c0_2 = arith.constant 0 : index
    %c0_3 = arith.constant 0 : index
    %3 = vector.load %arg1[%c0_1, %c0_2, %c0_3] : memref<1x8x256xbf16, #tpu.memory_space<vmem>>, vector<1x8x128xbf16>
    %4 = vector.shape_cast %3 : vector<1x8x128xbf16> to vector<8x128xbf16>
    %cst_4 = arith.constant dense<0.000000e+00> : vector<4x128xf32>
    %5 = tpu.matmul %2, %4, %cst_4 {dimension_numbers = #tpu.dot_dimension_numbers<[1], [0], [0], [1], [0, 0, 1, 1], [], []>} : vector<4x8xbf16>, vector<8x128xbf16>, vector<4x128xf32> -> vector<4x128xf32>
    %6 = arith.addf %0, %5 : vector<4x128xf32>
    %cst_5 = arith.constant 0.000000e+00 : f32
    %7 = vector.broadcast %cst_5 : f32 to vector<4x128xf32>
    %c5 = arith.constant 5 : index
    %c0_6 = arith.constant 0 : index
    %c0_7 = arith.constant 0 : index
    %8 = vector.load %arg2[%c5, %c0_6, %c0_7] : memref<9x4x8xbf16, #tpu.memory_space<vmem>>, vector<1x4x8xbf16>
    %9 = vector.shape_cast %8 : vector<1x4x8xbf16> to vector<4x8xbf16>
    %c0_8 = arith.constant 0 : index
    %c0_9 = arith.constant 0 : index
    %c0_10 = arith.constant 0 : index
    %10 = vector.load %arg1[%c0_8, %c0_9, %c0_10] : memref<1x8x256xbf16, #tpu.memory_space<vmem>>, vector<1x8x128xbf16>
    %11 = vector.shape_cast %10 : vector<1x8x128xbf16> to vector<8x128xbf16>
    %cst_11 = arith.constant dense<0.000000e+00> : vector<4x128xf32>
    %12 = tpu.matmul %9, %11, %cst_11 {dimension_numbers = #tpu.dot_dimension_numbers<[1], [0], [0], [1], [0, 0, 1, 1], [], []>} : vector<4x8xbf16>, vector<8x128xbf16>, vector<4x128xf32> -> vector<4x128xf32>
    %13 = arith.addf %7, %12 : vector<4x128xf32>
    %c3 = arith.constant 3 : index
    %c0_12 = arith.constant 0 : index
    %c0_13 = arith.constant 0 : index
    %14 = vector.load %arg2[%c3, %c0_12, %c0_13] : memref<9x4x8xbf16, #tpu.memory_space<vmem>>, vector<1x4x8xbf16>
    %15 = vector.shape_cast %14 : vector<1x4x8xbf16> to vector<4x8xbf16>
    %c0_14 = arith.constant 0 : index
    %c0_15 = arith.constant 0 : index
    %c1 = arith.constant 1 : index
    %16 = vector.load %arg1[%c0_14, %c0_15, %c1] : memref<1x8x256xbf16, #tpu.memory_space<vmem>>, vector<1x8x128xbf16>
    %17 = vector.shape_cast %16 : vector<1x8x128xbf16> to vector<8x128xbf16>
    %cst_16 = arith.constant dense<0.000000e+00> : vector<4x128xf32>
    %18 = tpu.matmul %15, %17, %cst_16 {dimension_numbers = #tpu.dot_dimension_numbers<[1], [0], [0], [1], [0, 0, 1, 1], [], []>} : vector<4x8xbf16>, vector<8x128xbf16>, vector<4x128xf32> -> vector<4x128xf32>
    %19 = arith.addf %13, %18 : vector<4x128xf32>
    %cst_17 = arith.constant 0.000000e+00 : f32
    %20 = vector.broadcast %cst_17 : f32 to vector<4x128xf32>
    %c7 = arith.constant 7 : index
    %c0_18 = arith.constant 0 : index
    %c0_19 = arith.constant 0 : index
    %21 = vector.load %arg2[%c7, %c0_18, %c0_19] : memref<9x4x8xbf16, #tpu.memory_space<vmem>>, vector<1x4x8xbf16>
    %22 = vector.shape_cast %21 : vector<1x4x8xbf16> to vector<4x8xbf16>
    %c0_20 = arith.constant 0 : index
    %c0_21 = arith.constant 0 : index
    %c0_22 = arith.constant 0 : index
    %23 = vector.load %arg1[%c0_20, %c0_21, %c0_22] : memref<1x8x256xbf16, #tpu.memory_space<vmem>>, vector<1x8x128xbf16>
    %24 = vector.shape_cast %23 : vector<1x8x128xbf16> to vector<8x128xbf16>
    %cst_23 = arith.constant dense<0.000000e+00> : vector<4x128xf32>
    %25 = tpu.matmul %22, %24, %cst_23 {dimension_numbers = #tpu.dot_dimension_numbers<[1], [0], [0], [1], [0, 0, 1, 1], [], []>} : vector<4x8xbf16>, vector<8x128xbf16>, vector<4x128xf32> -> vector<4x128xf32>
    %26 = arith.addf %20, %25 : vector<4x128xf32>
    %c1_24 = arith.constant 1 : index
    %c0_25 = arith.constant 0 : index
    %c0_26 = arith.constant 0 : index
    %27 = vector.load %arg2[%c1_24, %c0_25, %c0_26] : memref<9x4x8xbf16, #tpu.memory_space<vmem>>, vector<1x4x8xbf16>
    %28 = vector.shape_cast %27 : vector<1x4x8xbf16> to vector<4x8xbf16>
    %c0_27 = arith.constant 0 : index
    %c0_28 = arith.constant 0 : index
    %c9 = arith.constant 9 : index
    %29 = vector.load %arg1[%c0_27, %c0_28, %c9] : memref<1x8x256xbf16, #tpu.memory_space<vmem>>, vector<1x8x128xbf16>
    %30 = vector.shape_cast %29 : vector<1x8x128xbf16> to vector<8x128xbf16>
    %cst_29 = arith.constant dense<0.000000e+00> : vector<4x128xf32>
    %31 = tpu.matmul %28, %30, %cst_29 {dimension_numbers = #tpu.dot_dimension_numbers<[1], [0], [0], [1], [0, 0, 1, 1], [], []>} : vector<4x8xbf16>, vector<8x128xbf16>, vector<4x128xf32> -> vector<4x128xf32>
    %32 = arith.addf %26, %31 : vector<4x128xf32>
    %cst_30 = arith.constant 0.000000e+00 : f32
    %33 = vector.broadcast %cst_30 : f32 to vector<4x128xf32>
    %c8 = arith.constant 8 : index
    %c0_31 = arith.constant 0 : index
    %c0_32 = arith.constant 0 : index
    %34 = vector.load %arg2[%c8, %c0_31, %c0_32] : memref<9x4x8xbf16, #tpu.memory_space<vmem>>, vector<1x4x8xbf16>
    %35 = vector.shape_cast %34 : vector<1x4x8xbf16> to vector<4x8xbf16>
    %c0_33 = arith.constant 0 : index
    %c0_34 = arith.constant 0 : index
    %c0_35 = arith.constant 0 : index
    %36 = vector.load %arg1[%c0_33, %c0_34, %c0_35] : memref<1x8x256xbf16, #tpu.memory_space<vmem>>, vector<1x8x128xbf16>
    %37 = vector.shape_cast %36 : vector<1x8x128xbf16> to vector<8x128xbf16>
    %cst_36 = arith.constant dense<0.000000e+00> : vector<4x128xf32>
    %38 = tpu.matmul %35, %37, %cst_36 {dimension_numbers = #tpu.dot_dimension_numbers<[1], [0], [0], [1], [0, 0, 1, 1], [], []>} : vector<4x8xbf16>, vector<8x128xbf16>, vector<4x128xf32> -> vector<4x128xf32>
    %39 = arith.addf %33, %38 : vector<4x128xf32>
    %c6 = arith.constant 6 : index
    %c0_37 = arith.constant 0 : index
    %c0_38 = arith.constant 0 : index
    %40 = vector.load %arg2[%c6, %c0_37, %c0_38] : memref<9x4x8xbf16, #tpu.memory_space<vmem>>, vector<1x4x8xbf16>
    %41 = vector.shape_cast %40 : vector<1x4x8xbf16> to vector<4x8xbf16>
    %c0_39 = arith.constant 0 : index
    %c0_40 = arith.constant 0 : index
    %c1_41 = arith.constant 1 : index
    %42 = vector.load %arg1[%c0_39, %c0_40, %c1_41] : memref<1x8x256xbf16, #tpu.memory_space<vmem>>, vector<1x8x128xbf16>
    %43 = vector.shape_cast %42 : vector<1x8x128xbf16> to vector<8x128xbf16>
    %cst_42 = arith.constant dense<0.000000e+00> : vector<4x128xf32>
    %44 = tpu.matmul %41, %43, %cst_42 {dimension_numbers = #tpu.dot_dimension_numbers<[1], [0], [0], [1], [0, 0, 1, 1], [], []>} : vector<4x8xbf16>, vector<8x128xbf16>, vector<4x128xf32> -> vector<4x128xf32>
    %45 = arith.addf %39, %44 : vector<4x128xf32>
    %c2 = arith.constant 2 : index
    %c0_43 = arith.constant 0 : index
    %c0_44 = arith.constant 0 : index
    %46 = vector.load %arg2[%c2, %c0_43, %c0_44] : memref<9x4x8xbf16, #tpu.memory_space<vmem>>, vector<1x4x8xbf16>
    %47 = vector.shape_cast %46 : vector<1x4x8xbf16> to vector<4x8xbf16>
    %c0_45 = arith.constant 0 : index
    %c0_46 = arith.constant 0 : index
    %c9_47 = arith.constant 9 : index
    %48 = vector.load %arg1[%c0_45, %c0_46, %c9_47] : memref<1x8x256xbf16, #tpu.memory_space<vmem>>, vector<1x8x128xbf16>
    %49 = vector.shape_cast %48 : vector<1x8x128xbf16> to vector<8x128xbf16>
    %cst_48 = arith.constant dense<0.000000e+00> : vector<4x128xf32>
    %50 = tpu.matmul %47, %49, %cst_48 {dimension_numbers = #tpu.dot_dimension_numbers<[1], [0], [0], [1], [0, 0, 1, 1], [], []>} : vector<4x8xbf16>, vector<8x128xbf16>, vector<4x128xf32> -> vector<4x128xf32>
    %51 = arith.addf %45, %50 : vector<4x128xf32>
    %c0_49 = arith.constant 0 : index
    %c0_50 = arith.constant 0 : index
    %c0_51 = arith.constant 0 : index
    %52 = vector.load %arg2[%c0_49, %c0_50, %c0_51] : memref<9x4x8xbf16, #tpu.memory_space<vmem>>, vector<1x4x8xbf16>
    %53 = vector.shape_cast %52 : vector<1x4x8xbf16> to vector<4x8xbf16>
    %c0_52 = arith.constant 0 : index
    %c0_53 = arith.constant 0 : index
    %c10 = arith.constant 10 : index
    %54 = vector.load %arg1[%c0_52, %c0_53, %c10] : memref<1x8x256xbf16, #tpu.memory_space<vmem>>, vector<1x8x128xbf16>
    %55 = vector.shape_cast %54 : vector<1x8x128xbf16> to vector<8x128xbf16>
    %cst_54 = arith.constant dense<0.000000e+00> : vector<4x128xf32>
    %56 = tpu.matmul %53, %55, %cst_54 {dimension_numbers = #tpu.dot_dimension_numbers<[1], [0], [0], [1], [0, 0, 1, 1], [], []>} : vector<4x8xbf16>, vector<8x128xbf16>, vector<4x128xf32> -> vector<4x128xf32>
    %57 = arith.addf %51, %56 : vector<4x128xf32>
    %c0_55 = arith.constant 0 : index
    %c0_56 = arith.constant 0 : index
    %58 = vector.load %arg3[%c0_55, %c0_56] : memref<1x128xf32, #tpu.memory_space<vmem>>, vector<1x128xf32>
    %59 = vector.broadcast %58 : vector<1x128xf32> to vector<4x128xf32>
    %60 = arith.mulf %6, %59 : vector<4x128xf32>
    %cst_57 = arith.constant dense<0.000000e+00> : vector<4xf32>
    %61 = vector.multi_reduction <add>, %60, %cst_57 [1] : vector<4x128xf32> to vector<4xf32>
    %62 = vector.shape_cast %61 : vector<4xf32> to vector<4x1xf32>
    %cst_58 = arith.constant 0.000000e+00 : f32
    %63 = vector.broadcast %cst_58 : f32 to vector<4x1xf32>
    %64 = arith.addf %63, %62 : vector<4x1xf32>
    %65 = vector.broadcast %58 : vector<1x128xf32> to vector<4x128xf32>
    %66 = arith.mulf %19, %65 : vector<4x128xf32>
    %cst_59 = arith.constant dense<0.000000e+00> : vector<4xf32>
    %67 = vector.multi_reduction <add>, %66, %cst_59 [1] : vector<4x128xf32> to vector<4xf32>
    %68 = vector.shape_cast %67 : vector<4xf32> to vector<4x1xf32>
    %69 = arith.addf %64, %68 : vector<4x1xf32>
    %70 = vector.broadcast %58 : vector<1x128xf32> to vector<4x128xf32>
    %71 = arith.mulf %32, %70 : vector<4x128xf32>
    %cst_60 = arith.constant dense<0.000000e+00> : vector<4xf32>
    %72 = vector.multi_reduction <add>, %71, %cst_60 [1] : vector<4x128xf32> to vector<4xf32>
    %73 = vector.shape_cast %72 : vector<4xf32> to vector<4x1xf32>
    %74 = arith.addf %69, %73 : vector<4x1xf32>
    %75 = vector.broadcast %58 : vector<1x128xf32> to vector<4x128xf32>
    %76 = arith.mulf %57, %75 : vector<4x128xf32>
    %cst_61 = arith.constant dense<0.000000e+00> : vector<4xf32>
    %77 = vector.multi_reduction <add>, %76, %cst_61 [1] : vector<4x128xf32> to vector<4xf32>
    %78 = vector.shape_cast %77 : vector<4xf32> to vector<4x1xf32>
    %79 = arith.addf %74, %78 : vector<4x1xf32>
    %80 = arith.mulf %6, %6 : vector<4x128xf32>
    %81 = vector.broadcast %58 : vector<1x128xf32> to vector<4x128xf32>
    %82 = arith.mulf %80, %81 : vector<4x128xf32>
    %cst_62 = arith.constant dense<0.000000e+00> : vector<4xf32>
    %83 = vector.multi_reduction <add>, %82, %cst_62 [1] : vector<4x128xf32> to vector<4xf32>
    %84 = vector.shape_cast %83 : vector<4xf32> to vector<4x1xf32>
    %cst_63 = arith.constant 0.000000e+00 : f32
    %85 = vector.broadcast %cst_63 : f32 to vector<4x1xf32>
    %86 = arith.addf %85, %84 : vector<4x1xf32>
    %87 = arith.mulf %19, %19 : vector<4x128xf32>
    %88 = vector.broadcast %58 : vector<1x128xf32> to vector<4x128xf32>
    %89 = arith.mulf %87, %88 : vector<4x128xf32>
    %cst_64 = arith.constant dense<0.000000e+00> : vector<4xf32>
    %90 = vector.multi_reduction <add>, %89, %cst_64 [1] : vector<4x128xf32> to vector<4xf32>
    %91 = vector.shape_cast %90 : vector<4xf32> to vector<4x1xf32>
    %92 = arith.addf %86, %91 : vector<4x1xf32>
    %93 = arith.mulf %32, %32 : vector<4x128xf32>
    %94 = vector.broadcast %58 : vector<1x128xf32> to vector<4x128xf32>
    %95 = arith.mulf %93, %94 : vector<4x128xf32>
    %cst_65 = arith.constant dense<0.000000e+00> : vector<4xf32>
    %96 = vector.multi_reduction <add>, %95, %cst_65 [1] : vector<4x128xf32> to vector<4xf32>
    %97 = vector.shape_cast %96 : vector<4xf32> to vector<4x1xf32>
    %98 = arith.addf %92, %97 : vector<4x1xf32>
    %99 = arith.mulf %57, %57 : vector<4x128xf32>
    %100 = vector.broadcast %58 : vector<1x128xf32> to vector<4x128xf32>
    %101 = arith.mulf %99, %100 : vector<4x128xf32>
    %cst_66 = arith.constant dense<0.000000e+00> : vector<4xf32>
    %102 = vector.multi_reduction <add>, %101, %cst_66 [1] : vector<4x128xf32> to vector<4xf32>
    %103 = vector.shape_cast %102 : vector<4xf32> to vector<4x1xf32>
    %104 = arith.addf %98, %103 : vector<4x1xf32>
    %cst_67 = arith.constant 3.906250e-03 : f32
    %105 = vector.broadcast %cst_67 : f32 to vector<4x1xf32>
    %106 = arith.mulf %79, %105 : vector<4x1xf32>
    %cst_68 = arith.constant 3.906250e-03 : f32
    %107 = vector.broadcast %cst_68 : f32 to vector<4x1xf32>
    %108 = arith.mulf %104, %107 : vector<4x1xf32>
    %109 = arith.mulf %106, %106 : vector<4x1xf32>
    %110 = arith.subf %108, %109 : vector<4x1xf32>
    %cst_69 = arith.constant 9.99999974E-6 : f32
    %111 = vector.broadcast %cst_69 : f32 to vector<4x1xf32>
    %112 = arith.addf %110, %111 : vector<4x1xf32>
    %113 = math.rsqrt %112 : vector<4x1xf32>
    %c0_70 = arith.constant 0 : index
    %114 = memref.load %arg4[%c0_70] : memref<1xf32, #tpu.memory_space<smem>>
    %115 = vector.broadcast %106 : vector<4x1xf32> to vector<4x128xf32>
    %116 = arith.subf %6, %115 : vector<4x128xf32>
    %117 = vector.broadcast %113 : vector<4x1xf32> to vector<4x128xf32>
    %118 = arith.mulf %116, %117 : vector<4x128xf32>
    %cst_71 = arith.constant 0.000000e+00 : f32
    %119 = vector.broadcast %cst_71 : f32 to vector<4x128xf32>
    %120 = arith.cmpf oge, %118, %119 : vector<4x128xf32>
    %121 = vector.broadcast %114 : f32 to vector<4x128xf32>
    %122 = arith.mulf %118, %121 : vector<4x128xf32>
    %123 = arith.select %120, %118, %122 : vector<4x128xi1>, vector<4x128xf32>
    %124 = arith.truncf %123 : vector<4x128xf32> to vector<4x128xbf16>
    %c0_72 = arith.constant 0 : index
    %c0_73 = arith.constant 0 : index
    %c0_74 = arith.constant 0 : index
    %c0_75 = arith.constant 0 : index
    %125 = vector.load %arg5[%c0_72, %c0_73, %c0_74, %c0_75] : memref<1x4x4x128xbf16, #tpu.memory_space<vmem>>, vector<1x1x4x128xbf16>
    %126 = vector.shape_cast %125 : vector<1x1x4x128xbf16> to vector<4x128xbf16>
    %127 = vector.shape_cast %124 : vector<4x128xbf16> to vector<1x1x4x128xbf16>
    tpu.vector_store %arg5[%c0_72, %c0_73, %c0_74, %c0_75], %127 {strides = array<i32>} : memref<1x4x4x128xbf16, #tpu.memory_space<vmem>>, vector<1x1x4x128xbf16>,
    %128 = vector.broadcast %106 : vector<4x1xf32> to vector<4x128xf32>
    %129 = arith.subf %19, %128 : vector<4x128xf32>
    %130 = vector.broadcast %113 : vector<4x1xf32> to vector<4x128xf32>
    %131 = arith.mulf %129, %130 : vector<4x128xf32>
    %cst_76 = arith.constant 0.000000e+00 : f32
    %132 = vector.broadcast %cst_76 : f32 to vector<4x128xf32>
    %133 = arith.cmpf oge, %131, %132 : vector<4x128xf32>
    %134 = vector.broadcast %114 : f32 to vector<4x128xf32>
    %135 = arith.mulf %131, %134 : vector<4x128xf32>
    %136 = arith.select %133, %131, %135 : vector<4x128xi1>, vector<4x128xf32>
    %137 = arith.truncf %136 : vector<4x128xf32> to vector<4x128xbf16>
    %c0_77 = arith.constant 0 : index
    %c1_78 = arith.constant 1 : index
    %c0_79 = arith.constant 0 : index
    %c0_80 = arith.constant 0 : index
    %138 = vector.load %arg5[%c0_77, %c1_78, %c0_79, %c0_80] : memref<1x4x4x128xbf16, #tpu.memory_space<vmem>>, vector<1x1x4x128xbf16>
    %139 = vector.shape_cast %138 : vector<1x1x4x128xbf16> to vector<4x128xbf16>
    %140 = vector.shape_cast %137 : vector<4x128xbf16> to vector<1x1x4x128xbf16>
    tpu.vector_store %arg5[%c0_77, %c1_78, %c0_79, %c0_80], %140 {strides = array<i32>} : memref<1x4x4x128xbf16, #tpu.memory_space<vmem>>, vector<1x1x4x128xbf16>,
    %141 = vector.broadcast %106 : vector<4x1xf32> to vector<4x128xf32>
    %142 = arith.subf %32, %141 : vector<4x128xf32>
    %143 = vector.broadcast %113 : vector<4x1xf32> to vector<4x128xf32>
    %144 = arith.mulf %142, %143 : vector<4x128xf32>
    %cst_81 = arith.constant 0.000000e+00 : f32
    %145 = vector.broadcast %cst_81 : f32 to vector<4x128xf32>
    %146 = arith.cmpf oge, %144, %145 : vector<4x128xf32>
    %147 = vector.broadcast %114 : f32 to vector<4x128xf32>
    %148 = arith.mulf %144, %147 : vector<4x128xf32>
    %149 = arith.select %146, %144, %148 : vector<4x128xi1>, vector<4x128xf32>
    %150 = arith.truncf %149 : vector<4x128xf32> to vector<4x128xbf16>
    %c0_82 = arith.constant 0 : index
    %c2_83 = arith.constant 2 : index
    %c0_84 = arith.constant 0 : index
    %c0_85 = arith.constant 0 : index
    %151 = vector.load %arg5[%c0_82, %c2_83, %c0_84, %c0_85] : memref<1x4x4x128xbf16, #tpu.memory_space<vmem>>, vector<1x1x4x128xbf16>
    %152 = vector.shape_cast %151 : vector<1x1x4x128xbf16> to vector<4x128xbf16>
    %153 = vector.shape_cast %150 : vector<4x128xbf16> to vector<1x1x4x128xbf16>
    tpu.vector_store %arg5[%c0_82, %c2_83, %c0_84, %c0_85], %153 {strides = array<i32>} : memref<1x4x4x128xbf16, #tpu.memory_space<vmem>>, vector<1x1x4x128xbf16>,
    %154 = vector.broadcast %106 : vector<4x1xf32> to vector<4x128xf32>
    %155 = arith.subf %57, %154 : vector<4x128xf32>
    %156 = vector.broadcast %113 : vector<4x1xf32> to vector<4x128xf32>
    %157 = arith.mulf %155, %156 : vector<4x128xf32>
    %cst_86 = arith.constant 0.000000e+00 : f32
    %158 = vector.broadcast %cst_86 : f32 to vector<4x128xf32>
    %159 = arith.cmpf oge, %157, %158 : vector<4x128xf32>
    %160 = vector.broadcast %114 : f32 to vector<4x128xf32>
    %161 = arith.mulf %157, %160 : vector<4x128xf32>
    %162 = arith.select %159, %157, %161 : vector<4x128xi1>, vector<4x128xf32>
    %163 = arith.truncf %162 : vector<4x128xf32> to vector<4x128xbf16>
    %c0_87 = arith.constant 0 : index
    %c3_88 = arith.constant 3 : index
    %c0_89 = arith.constant 0 : index
    %c0_90 = arith.constant 0 : index
    %164 = vector.load %arg5[%c0_87, %c3_88, %c0_89, %c0_90] : memref<1x4x4x128xbf16, #tpu.memory_space<vmem>>, vector<1x1x4x128xbf16>
    %165 = vector.shape_cast %164 : vector<1x1x4x128xbf16> to vector<4x128xbf16>
    %166 = vector.shape_cast %163 : vector<4x128xbf16> to vector<1x1x4x128xbf16>
    tpu.vector_store %arg5[%c0_87, %c3_88, %c0_89, %c0_90], %166 {strides = array<i32>} : memref<1x4x4x128xbf16, #tpu.memory_space<vmem>>, vector<1x1x4x128xbf16>,
    return
  }
  func.func @transform_0(%arg0: i32) -> (i32, i32, i32) {
    %c0_i32 = arith.constant 0 : i32
    %c0_i32_0 = arith.constant 0 : i32
    %c0_i32_1 = arith.constant 0 : i32
    return %arg0, %c0_i32, %c0_i32_0 : i32, i32, i32
  }
  func.func @transform_1(%arg0: i32) -> (i32, i32, i32) {
    %c0_i32 = arith.constant 0 : i32
    %c0_i32_0 = arith.constant 0 : i32
    %c0_i32_1 = arith.constant 0 : i32
    %c0_i32_2 = arith.constant 0 : i32
    return %c0_i32, %c0_i32_0, %c0_i32_1 : i32, i32, i32
  }
  func.func @transform_2(%arg0: i32) -> (i32, i32) {
    %c0_i32 = arith.constant 0 : i32
    %c0_i32_0 = arith.constant 0 : i32
    %c0_i32_1 = arith.constant 0 : i32
    return %c0_i32, %c0_i32_0 : i32, i32
  }
  func.func @transform_3(%arg0: i32) -> i32 {
    %c0_i32 = arith.constant 0 : i32
    %c0_i32_0 = arith.constant 0 : i32
    return %c0_i32 : i32
  }
  func.func @transform_4(%arg0: i32) -> (i32, i32, i32, i32) {
    %c0_i32 = arith.constant 0 : i32
    %c0_i32_0 = arith.constant 0 : i32
    %c0_i32_1 = arith.constant 0 : i32
    %c0_i32_2 = arith.constant 0 : i32
    return %arg0, %c0_i32, %c0_i32_0, %c0_i32_1 : i32, i32, i32, i32
  }
}

module attributes {stable_mosaic.version = 11 : i64} {
  func.func @_skipconv_kernel(%arg0: i32, %arg1: memref<1x4x512xbf16, #tpu.memory_space<vmem>>, %arg2: memref<1x4x512xbf16, #tpu.memory_space<vmem>>, %arg3: memref<9x4x4xbf16, #tpu.memory_space<vmem>>, %arg4: memref<9x4x4xbf16, #tpu.memory_space<vmem>>, %arg5: memref<1x384xf32, #tpu.memory_space<vmem>>, %arg6: memref<1xf32, #tpu.memory_space<smem>>, %arg7: memref<1x4x384xf32, #tpu.memory_space<vmem>>) attributes {dimension_semantics = [#tpu.dimension_semantics<parallel>], iteration_bounds = array<i64: 2>, scalar_prefetch = 0 : i64, scratch_operands = 0 : i64, tpu.core_type = #tpu.core_type<tc>, window_params = [{transform_indices = @transform_0, window_bounds = array<i64: 1, 4, 512>}, {transform_indices = @transform_1, window_bounds = array<i64: 1, 4, 512>}, {pipeline_mode = #tpu.pipeline_mode<synchronous>, transform_indices = @transform_2, window_bounds = array<i64: 9, 4, 4>}, {pipeline_mode = #tpu.pipeline_mode<synchronous>, transform_indices = @transform_3, window_bounds = array<i64: 9, 4, 4>}, {pipeline_mode = #tpu.pipeline_mode<synchronous>, transform_indices = @transform_4, window_bounds = array<i64: 1, 384>}, {transform_indices = @transform_5, window_bounds = array<i64: 1>}, {transform_indices = @transform_6, window_bounds = array<i64: 1, 4, 384>}]} {
    %cst = arith.constant 0.000000e+00 : f32
    %0 = vector.broadcast %cst : f32 to vector<4x384xf32>
    %c0 = arith.constant 0 : index
    %c0_0 = arith.constant 0 : index
    %c0_1 = arith.constant 0 : index
    %1 = vector.load %arg3[%c0, %c0_0, %c0_1] : memref<9x4x4xbf16, #tpu.memory_space<vmem>>, vector<1x4x4xbf16>
    %2 = vector.shape_cast %1 : vector<1x4x4xbf16> to vector<4x4xbf16>
    %c0_2 = arith.constant 0 : index
    %c0_3 = arith.constant 0 : index
    %c0_4 = arith.constant 0 : index
    %3 = vector.load %arg1[%c0_2, %c0_3, %c0_4] : memref<1x4x512xbf16, #tpu.memory_space<vmem>>, vector<1x4x384xbf16>
    %4 = vector.shape_cast %3 : vector<1x4x384xbf16> to vector<4x384xbf16>
    %cst_5 = arith.constant dense<0.000000e+00> : vector<4x384xf32>
    %5 = tpu.matmul %2, %4, %cst_5 {dimension_numbers = #tpu.dot_dimension_numbers<[1], [0], [0], [1], [0, 0, 1, 1], [], []>} : vector<4x4xbf16>, vector<4x384xbf16>, vector<4x384xf32> -> vector<4x384xf32>
    %6 = arith.addf %0, %5 : vector<4x384xf32>
    %c0_6 = arith.constant 0 : index
    %c0_7 = arith.constant 0 : index
    %c0_8 = arith.constant 0 : index
    %7 = vector.load %arg4[%c0_6, %c0_7, %c0_8] : memref<9x4x4xbf16, #tpu.memory_space<vmem>>, vector<1x4x4xbf16>
    %8 = vector.shape_cast %7 : vector<1x4x4xbf16> to vector<4x4xbf16>
    %c0_9 = arith.constant 0 : index
    %c0_10 = arith.constant 0 : index
    %c0_11 = arith.constant 0 : index
    %9 = vector.load %arg2[%c0_9, %c0_10, %c0_11] : memref<1x4x512xbf16, #tpu.memory_space<vmem>>, vector<1x4x384xbf16>
    %10 = vector.shape_cast %9 : vector<1x4x384xbf16> to vector<4x384xbf16>
    %cst_12 = arith.constant dense<0.000000e+00> : vector<4x384xf32>
    %11 = tpu.matmul %8, %10, %cst_12 {dimension_numbers = #tpu.dot_dimension_numbers<[1], [0], [0], [1], [0, 0, 1, 1], [], []>} : vector<4x4xbf16>, vector<4x384xbf16>, vector<4x384xf32> -> vector<4x384xf32>
    %12 = arith.addf %6, %11 : vector<4x384xf32>
    %c1 = arith.constant 1 : index
    %c0_13 = arith.constant 0 : index
    %c0_14 = arith.constant 0 : index
    %13 = vector.load %arg3[%c1, %c0_13, %c0_14] : memref<9x4x4xbf16, #tpu.memory_space<vmem>>, vector<1x4x4xbf16>
    %14 = vector.shape_cast %13 : vector<1x4x4xbf16> to vector<4x4xbf16>
    %c0_15 = arith.constant 0 : index
    %c0_16 = arith.constant 0 : index
    %c1_17 = arith.constant 1 : index
    %15 = vector.load %arg1[%c0_15, %c0_16, %c1_17] : memref<1x4x512xbf16, #tpu.memory_space<vmem>>, vector<1x4x384xbf16>
    %16 = vector.shape_cast %15 : vector<1x4x384xbf16> to vector<4x384xbf16>
    %cst_18 = arith.constant dense<0.000000e+00> : vector<4x384xf32>
    %17 = tpu.matmul %14, %16, %cst_18 {dimension_numbers = #tpu.dot_dimension_numbers<[1], [0], [0], [1], [0, 0, 1, 1], [], []>} : vector<4x4xbf16>, vector<4x384xbf16>, vector<4x384xf32> -> vector<4x384xf32>
    %18 = arith.addf %12, %17 : vector<4x384xf32>
    %c1_19 = arith.constant 1 : index
    %c0_20 = arith.constant 0 : index
    %c0_21 = arith.constant 0 : index
    %19 = vector.load %arg4[%c1_19, %c0_20, %c0_21] : memref<9x4x4xbf16, #tpu.memory_space<vmem>>, vector<1x4x4xbf16>
    %20 = vector.shape_cast %19 : vector<1x4x4xbf16> to vector<4x4xbf16>
    %c0_22 = arith.constant 0 : index
    %c0_23 = arith.constant 0 : index
    %c1_24 = arith.constant 1 : index
    %21 = vector.load %arg2[%c0_22, %c0_23, %c1_24] : memref<1x4x512xbf16, #tpu.memory_space<vmem>>, vector<1x4x384xbf16>
    %22 = vector.shape_cast %21 : vector<1x4x384xbf16> to vector<4x384xbf16>
    %cst_25 = arith.constant dense<0.000000e+00> : vector<4x384xf32>
    %23 = tpu.matmul %20, %22, %cst_25 {dimension_numbers = #tpu.dot_dimension_numbers<[1], [0], [0], [1], [0, 0, 1, 1], [], []>} : vector<4x4xbf16>, vector<4x384xbf16>, vector<4x384xf32> -> vector<4x384xf32>
    %24 = arith.addf %18, %23 : vector<4x384xf32>
    %c2 = arith.constant 2 : index
    %c0_26 = arith.constant 0 : index
    %c0_27 = arith.constant 0 : index
    %25 = vector.load %arg3[%c2, %c0_26, %c0_27] : memref<9x4x4xbf16, #tpu.memory_space<vmem>>, vector<1x4x4xbf16>
    %26 = vector.shape_cast %25 : vector<1x4x4xbf16> to vector<4x4xbf16>
    %c0_28 = arith.constant 0 : index
    %c0_29 = arith.constant 0 : index
    %c2_30 = arith.constant 2 : index
    %27 = vector.load %arg1[%c0_28, %c0_29, %c2_30] : memref<1x4x512xbf16, #tpu.memory_space<vmem>>, vector<1x4x384xbf16>
    %28 = vector.shape_cast %27 : vector<1x4x384xbf16> to vector<4x384xbf16>
    %cst_31 = arith.constant dense<0.000000e+00> : vector<4x384xf32>
    %29 = tpu.matmul %26, %28, %cst_31 {dimension_numbers = #tpu.dot_dimension_numbers<[1], [0], [0], [1], [0, 0, 1, 1], [], []>} : vector<4x4xbf16>, vector<4x384xbf16>, vector<4x384xf32> -> vector<4x384xf32>
    %30 = arith.addf %24, %29 : vector<4x384xf32>
    %c2_32 = arith.constant 2 : index
    %c0_33 = arith.constant 0 : index
    %c0_34 = arith.constant 0 : index
    %31 = vector.load %arg4[%c2_32, %c0_33, %c0_34] : memref<9x4x4xbf16, #tpu.memory_space<vmem>>, vector<1x4x4xbf16>
    %32 = vector.shape_cast %31 : vector<1x4x4xbf16> to vector<4x4xbf16>
    %c0_35 = arith.constant 0 : index
    %c0_36 = arith.constant 0 : index
    %c2_37 = arith.constant 2 : index
    %33 = vector.load %arg2[%c0_35, %c0_36, %c2_37] : memref<1x4x512xbf16, #tpu.memory_space<vmem>>, vector<1x4x384xbf16>
    %34 = vector.shape_cast %33 : vector<1x4x384xbf16> to vector<4x384xbf16>
    %cst_38 = arith.constant dense<0.000000e+00> : vector<4x384xf32>
    %35 = tpu.matmul %32, %34, %cst_38 {dimension_numbers = #tpu.dot_dimension_numbers<[1], [0], [0], [1], [0, 0, 1, 1], [], []>} : vector<4x4xbf16>, vector<4x384xbf16>, vector<4x384xf32> -> vector<4x384xf32>
    %36 = arith.addf %30, %35 : vector<4x384xf32>
    %c3 = arith.constant 3 : index
    %c0_39 = arith.constant 0 : index
    %c0_40 = arith.constant 0 : index
    %37 = vector.load %arg3[%c3, %c0_39, %c0_40] : memref<9x4x4xbf16, #tpu.memory_space<vmem>>, vector<1x4x4xbf16>
    %38 = vector.shape_cast %37 : vector<1x4x4xbf16> to vector<4x4xbf16>
    %c0_41 = arith.constant 0 : index
    %c0_42 = arith.constant 0 : index
    %c18 = arith.constant 18 : index
    %39 = vector.load %arg1[%c0_41, %c0_42, %c18] : memref<1x4x512xbf16, #tpu.memory_space<vmem>>, vector<1x4x384xbf16>
    %40 = vector.shape_cast %39 : vector<1x4x384xbf16> to vector<4x384xbf16>
    %cst_43 = arith.constant dense<0.000000e+00> : vector<4x384xf32>
    %41 = tpu.matmul %38, %40, %cst_43 {dimension_numbers = #tpu.dot_dimension_numbers<[1], [0], [0], [1], [0, 0, 1, 1], [], []>} : vector<4x4xbf16>, vector<4x384xbf16>, vector<4x384xf32> -> vector<4x384xf32>
    %42 = arith.addf %36, %41 : vector<4x384xf32>
    %c3_44 = arith.constant 3 : index
    %c0_45 = arith.constant 0 : index
    %c0_46 = arith.constant 0 : index
    %43 = vector.load %arg4[%c3_44, %c0_45, %c0_46] : memref<9x4x4xbf16, #tpu.memory_space<vmem>>, vector<1x4x4xbf16>
    %44 = vector.shape_cast %43 : vector<1x4x4xbf16> to vector<4x4xbf16>
    %c0_47 = arith.constant 0 : index
    %c0_48 = arith.constant 0 : index
    %c18_49 = arith.constant 18 : index
    %45 = vector.load %arg2[%c0_47, %c0_48, %c18_49] : memref<1x4x512xbf16, #tpu.memory_space<vmem>>, vector<1x4x384xbf16>
    %46 = vector.shape_cast %45 : vector<1x4x384xbf16> to vector<4x384xbf16>
    %cst_50 = arith.constant dense<0.000000e+00> : vector<4x384xf32>
    %47 = tpu.matmul %44, %46, %cst_50 {dimension_numbers = #tpu.dot_dimension_numbers<[1], [0], [0], [1], [0, 0, 1, 1], [], []>} : vector<4x4xbf16>, vector<4x384xbf16>, vector<4x384xf32> -> vector<4x384xf32>
    %48 = arith.addf %42, %47 : vector<4x384xf32>
    %c4 = arith.constant 4 : index
    %c0_51 = arith.constant 0 : index
    %c0_52 = arith.constant 0 : index
    %49 = vector.load %arg3[%c4, %c0_51, %c0_52] : memref<9x4x4xbf16, #tpu.memory_space<vmem>>, vector<1x4x4xbf16>
    %50 = vector.shape_cast %49 : vector<1x4x4xbf16> to vector<4x4xbf16>
    %c0_53 = arith.constant 0 : index
    %c0_54 = arith.constant 0 : index
    %c19 = arith.constant 19 : index
    %51 = vector.load %arg1[%c0_53, %c0_54, %c19] : memref<1x4x512xbf16, #tpu.memory_space<vmem>>, vector<1x4x384xbf16>
    %52 = vector.shape_cast %51 : vector<1x4x384xbf16> to vector<4x384xbf16>
    %cst_55 = arith.constant dense<0.000000e+00> : vector<4x384xf32>
    %53 = tpu.matmul %50, %52, %cst_55 {dimension_numbers = #tpu.dot_dimension_numbers<[1], [0], [0], [1], [0, 0, 1, 1], [], []>} : vector<4x4xbf16>, vector<4x384xbf16>, vector<4x384xf32> -> vector<4x384xf32>
    %54 = arith.addf %48, %53 : vector<4x384xf32>
    %c4_56 = arith.constant 4 : index
    %c0_57 = arith.constant 0 : index
    %c0_58 = arith.constant 0 : index
    %55 = vector.load %arg4[%c4_56, %c0_57, %c0_58] : memref<9x4x4xbf16, #tpu.memory_space<vmem>>, vector<1x4x4xbf16>
    %56 = vector.shape_cast %55 : vector<1x4x4xbf16> to vector<4x4xbf16>
    %c0_59 = arith.constant 0 : index
    %c0_60 = arith.constant 0 : index
    %c19_61 = arith.constant 19 : index
    %57 = vector.load %arg2[%c0_59, %c0_60, %c19_61] : memref<1x4x512xbf16, #tpu.memory_space<vmem>>, vector<1x4x384xbf16>
    %58 = vector.shape_cast %57 : vector<1x4x384xbf16> to vector<4x384xbf16>
    %cst_62 = arith.constant dense<0.000000e+00> : vector<4x384xf32>
    %59 = tpu.matmul %56, %58, %cst_62 {dimension_numbers = #tpu.dot_dimension_numbers<[1], [0], [0], [1], [0, 0, 1, 1], [], []>} : vector<4x4xbf16>, vector<4x384xbf16>, vector<4x384xf32> -> vector<4x384xf32>
    %60 = arith.addf %54, %59 : vector<4x384xf32>
    %c5 = arith.constant 5 : index
    %c0_63 = arith.constant 0 : index
    %c0_64 = arith.constant 0 : index
    %61 = vector.load %arg3[%c5, %c0_63, %c0_64] : memref<9x4x4xbf16, #tpu.memory_space<vmem>>, vector<1x4x4xbf16>
    %62 = vector.shape_cast %61 : vector<1x4x4xbf16> to vector<4x4xbf16>
    %c0_65 = arith.constant 0 : index
    %c0_66 = arith.constant 0 : index
    %c20 = arith.constant 20 : index
    %63 = vector.load %arg1[%c0_65, %c0_66, %c20] : memref<1x4x512xbf16, #tpu.memory_space<vmem>>, vector<1x4x384xbf16>
    %64 = vector.shape_cast %63 : vector<1x4x384xbf16> to vector<4x384xbf16>
    %cst_67 = arith.constant dense<0.000000e+00> : vector<4x384xf32>
    %65 = tpu.matmul %62, %64, %cst_67 {dimension_numbers = #tpu.dot_dimension_numbers<[1], [0], [0], [1], [0, 0, 1, 1], [], []>} : vector<4x4xbf16>, vector<4x384xbf16>, vector<4x384xf32> -> vector<4x384xf32>
    %66 = arith.addf %60, %65 : vector<4x384xf32>
    %c5_68 = arith.constant 5 : index
    %c0_69 = arith.constant 0 : index
    %c0_70 = arith.constant 0 : index
    %67 = vector.load %arg4[%c5_68, %c0_69, %c0_70] : memref<9x4x4xbf16, #tpu.memory_space<vmem>>, vector<1x4x4xbf16>
    %68 = vector.shape_cast %67 : vector<1x4x4xbf16> to vector<4x4xbf16>
    %c0_71 = arith.constant 0 : index
    %c0_72 = arith.constant 0 : index
    %c20_73 = arith.constant 20 : index
    %69 = vector.load %arg2[%c0_71, %c0_72, %c20_73] : memref<1x4x512xbf16, #tpu.memory_space<vmem>>, vector<1x4x384xbf16>
    %70 = vector.shape_cast %69 : vector<1x4x384xbf16> to vector<4x384xbf16>
    %cst_74 = arith.constant dense<0.000000e+00> : vector<4x384xf32>
    %71 = tpu.matmul %68, %70, %cst_74 {dimension_numbers = #tpu.dot_dimension_numbers<[1], [0], [0], [1], [0, 0, 1, 1], [], []>} : vector<4x4xbf16>, vector<4x384xbf16>, vector<4x384xf32> -> vector<4x384xf32>
    %72 = arith.addf %66, %71 : vector<4x384xf32>
    %c6 = arith.constant 6 : index
    %c0_75 = arith.constant 0 : index
    %c0_76 = arith.constant 0 : index
    %73 = vector.load %arg3[%c6, %c0_75, %c0_76] : memref<9x4x4xbf16, #tpu.memory_space<vmem>>, vector<1x4x4xbf16>
    %74 = vector.shape_cast %73 : vector<1x4x4xbf16> to vector<4x4xbf16>
    %c0_77 = arith.constant 0 : index
    %c0_78 = arith.constant 0 : index
    %c36 = arith.constant 36 : index
    %75 = vector.load %arg1[%c0_77, %c0_78, %c36] : memref<1x4x512xbf16, #tpu.memory_space<vmem>>, vector<1x4x384xbf16>
    %76 = vector.shape_cast %75 : vector<1x4x384xbf16> to vector<4x384xbf16>
    %cst_79 = arith.constant dense<0.000000e+00> : vector<4x384xf32>
    %77 = tpu.matmul %74, %76, %cst_79 {dimension_numbers = #tpu.dot_dimension_numbers<[1], [0], [0], [1], [0, 0, 1, 1], [], []>} : vector<4x4xbf16>, vector<4x384xbf16>, vector<4x384xf32> -> vector<4x384xf32>
    %78 = arith.addf %72, %77 : vector<4x384xf32>
    %c6_80 = arith.constant 6 : index
    %c0_81 = arith.constant 0 : index
    %c0_82 = arith.constant 0 : index
    %79 = vector.load %arg4[%c6_80, %c0_81, %c0_82] : memref<9x4x4xbf16, #tpu.memory_space<vmem>>, vector<1x4x4xbf16>
    %80 = vector.shape_cast %79 : vector<1x4x4xbf16> to vector<4x4xbf16>
    %c0_83 = arith.constant 0 : index
    %c0_84 = arith.constant 0 : index
    %c36_85 = arith.constant 36 : index
    %81 = vector.load %arg2[%c0_83, %c0_84, %c36_85] : memref<1x4x512xbf16, #tpu.memory_space<vmem>>, vector<1x4x384xbf16>
    %82 = vector.shape_cast %81 : vector<1x4x384xbf16> to vector<4x384xbf16>
    %cst_86 = arith.constant dense<0.000000e+00> : vector<4x384xf32>
    %83 = tpu.matmul %80, %82, %cst_86 {dimension_numbers = #tpu.dot_dimension_numbers<[1], [0], [0], [1], [0, 0, 1, 1], [], []>} : vector<4x4xbf16>, vector<4x384xbf16>, vector<4x384xf32> -> vector<4x384xf32>
    %84 = arith.addf %78, %83 : vector<4x384xf32>
    %c7 = arith.constant 7 : index
    %c0_87 = arith.constant 0 : index
    %c0_88 = arith.constant 0 : index
    %85 = vector.load %arg3[%c7, %c0_87, %c0_88] : memref<9x4x4xbf16, #tpu.memory_space<vmem>>, vector<1x4x4xbf16>
    %86 = vector.shape_cast %85 : vector<1x4x4xbf16> to vector<4x4xbf16>
    %c0_89 = arith.constant 0 : index
    %c0_90 = arith.constant 0 : index
    %c37 = arith.constant 37 : index
    %87 = vector.load %arg1[%c0_89, %c0_90, %c37] : memref<1x4x512xbf16, #tpu.memory_space<vmem>>, vector<1x4x384xbf16>
    %88 = vector.shape_cast %87 : vector<1x4x384xbf16> to vector<4x384xbf16>
    %cst_91 = arith.constant dense<0.000000e+00> : vector<4x384xf32>
    %89 = tpu.matmul %86, %88, %cst_91 {dimension_numbers = #tpu.dot_dimension_numbers<[1], [0], [0], [1], [0, 0, 1, 1], [], []>} : vector<4x4xbf16>, vector<4x384xbf16>, vector<4x384xf32> -> vector<4x384xf32>
    %90 = arith.addf %84, %89 : vector<4x384xf32>
    %c7_92 = arith.constant 7 : index
    %c0_93 = arith.constant 0 : index
    %c0_94 = arith.constant 0 : index
    %91 = vector.load %arg4[%c7_92, %c0_93, %c0_94] : memref<9x4x4xbf16, #tpu.memory_space<vmem>>, vector<1x4x4xbf16>
    %92 = vector.shape_cast %91 : vector<1x4x4xbf16> to vector<4x4xbf16>
    %c0_95 = arith.constant 0 : index
    %c0_96 = arith.constant 0 : index
    %c37_97 = arith.constant 37 : index
    %93 = vector.load %arg2[%c0_95, %c0_96, %c37_97] : memref<1x4x512xbf16, #tpu.memory_space<vmem>>, vector<1x4x384xbf16>
    %94 = vector.shape_cast %93 : vector<1x4x384xbf16> to vector<4x384xbf16>
    %cst_98 = arith.constant dense<0.000000e+00> : vector<4x384xf32>
    %95 = tpu.matmul %92, %94, %cst_98 {dimension_numbers = #tpu.dot_dimension_numbers<[1], [0], [0], [1], [0, 0, 1, 1], [], []>} : vector<4x4xbf16>, vector<4x384xbf16>, vector<4x384xf32> -> vector<4x384xf32>
    %96 = arith.addf %90, %95 : vector<4x384xf32>
    %c8 = arith.constant 8 : index
    %c0_99 = arith.constant 0 : index
    %c0_100 = arith.constant 0 : index
    %97 = vector.load %arg3[%c8, %c0_99, %c0_100] : memref<9x4x4xbf16, #tpu.memory_space<vmem>>, vector<1x4x4xbf16>
    %98 = vector.shape_cast %97 : vector<1x4x4xbf16> to vector<4x4xbf16>
    %c0_101 = arith.constant 0 : index
    %c0_102 = arith.constant 0 : index
    %c38 = arith.constant 38 : index
    %99 = vector.load %arg1[%c0_101, %c0_102, %c38] : memref<1x4x512xbf16, #tpu.memory_space<vmem>>, vector<1x4x384xbf16>
    %100 = vector.shape_cast %99 : vector<1x4x384xbf16> to vector<4x384xbf16>
    %cst_103 = arith.constant dense<0.000000e+00> : vector<4x384xf32>
    %101 = tpu.matmul %98, %100, %cst_103 {dimension_numbers = #tpu.dot_dimension_numbers<[1], [0], [0], [1], [0, 0, 1, 1], [], []>} : vector<4x4xbf16>, vector<4x384xbf16>, vector<4x384xf32> -> vector<4x384xf32>
    %102 = arith.addf %96, %101 : vector<4x384xf32>
    %c8_104 = arith.constant 8 : index
    %c0_105 = arith.constant 0 : index
    %c0_106 = arith.constant 0 : index
    %103 = vector.load %arg4[%c8_104, %c0_105, %c0_106] : memref<9x4x4xbf16, #tpu.memory_space<vmem>>, vector<1x4x4xbf16>
    %104 = vector.shape_cast %103 : vector<1x4x4xbf16> to vector<4x4xbf16>
    %c0_107 = arith.constant 0 : index
    %c0_108 = arith.constant 0 : index
    %c38_109 = arith.constant 38 : index
    %105 = vector.load %arg2[%c0_107, %c0_108, %c38_109] : memref<1x4x512xbf16, #tpu.memory_space<vmem>>, vector<1x4x384xbf16>
    %106 = vector.shape_cast %105 : vector<1x4x384xbf16> to vector<4x384xbf16>
    %cst_110 = arith.constant dense<0.000000e+00> : vector<4x384xf32>
    %107 = tpu.matmul %104, %106, %cst_110 {dimension_numbers = #tpu.dot_dimension_numbers<[1], [0], [0], [1], [0, 0, 1, 1], [], []>} : vector<4x4xbf16>, vector<4x384xbf16>, vector<4x384xf32> -> vector<4x384xf32>
    %108 = arith.addf %102, %107 : vector<4x384xf32>
    %c0_111 = arith.constant 0 : index
    %c0_112 = arith.constant 0 : index
    %109 = vector.load %arg5[%c0_111, %c0_112] : memref<1x384xf32, #tpu.memory_space<vmem>>, vector<1x384xf32>
    %110 = vector.broadcast %109 : vector<1x384xf32> to vector<4x384xf32>
    %111 = arith.mulf %108, %110 : vector<4x384xf32>
    %cst_113 = arith.constant dense<0.000000e+00> : vector<4xf32>
    %112 = vector.multi_reduction <add>, %111, %cst_113 [1] : vector<4x384xf32> to vector<4xf32>
    %113 = vector.shape_cast %112 : vector<4xf32> to vector<4x1xf32>
    %114 = arith.mulf %108, %108 : vector<4x384xf32>
    %115 = vector.broadcast %109 : vector<1x384xf32> to vector<4x384xf32>
    %116 = arith.mulf %114, %115 : vector<4x384xf32>
    %cst_114 = arith.constant dense<0.000000e+00> : vector<4xf32>
    %117 = vector.multi_reduction <add>, %116, %cst_114 [1] : vector<4x384xf32> to vector<4xf32>
    %118 = vector.shape_cast %117 : vector<4xf32> to vector<4x1xf32>
    %cst_115 = arith.constant 3.906250e-03 : f32
    %119 = vector.broadcast %cst_115 : f32 to vector<4x1xf32>
    %120 = arith.mulf %113, %119 : vector<4x1xf32>
    %cst_116 = arith.constant 3.906250e-03 : f32
    %121 = vector.broadcast %cst_116 : f32 to vector<4x1xf32>
    %122 = arith.mulf %118, %121 : vector<4x1xf32>
    %123 = arith.mulf %120, %120 : vector<4x1xf32>
    %124 = arith.subf %122, %123 : vector<4x1xf32>
    %cst_117 = arith.constant 9.99999974E-6 : f32
    %125 = vector.broadcast %cst_117 : f32 to vector<4x1xf32>
    %126 = arith.addf %124, %125 : vector<4x1xf32>
    %127 = math.rsqrt %126 : vector<4x1xf32>
    %128 = vector.broadcast %120 : vector<4x1xf32> to vector<4x384xf32>
    %129 = arith.subf %108, %128 : vector<4x384xf32>
    %130 = vector.broadcast %127 : vector<4x1xf32> to vector<4x384xf32>
    %131 = arith.mulf %129, %130 : vector<4x384xf32>
    %cst_118 = arith.constant 0.000000e+00 : f32
    %132 = vector.broadcast %cst_118 : f32 to vector<4x384xf32>
    %133 = arith.cmpf oge, %131, %132 : vector<4x384xf32>
    %c0_119 = arith.constant 0 : index
    %134 = memref.load %arg6[%c0_119] : memref<1xf32, #tpu.memory_space<smem>>
    %135 = vector.broadcast %134 : f32 to vector<4x384xf32>
    %136 = arith.mulf %131, %135 : vector<4x384xf32>
    %137 = arith.select %133, %131, %136 : vector<4x384xi1>, vector<4x384xf32>
    %c0_120 = arith.constant 0 : index
    %c0_121 = arith.constant 0 : index
    %c0_122 = arith.constant 0 : index
    %138 = vector.load %arg7[%c0_120, %c0_121, %c0_122] : memref<1x4x384xf32, #tpu.memory_space<vmem>>, vector<1x4x384xf32>
    %139 = vector.shape_cast %138 : vector<1x4x384xf32> to vector<4x384xf32>
    %140 = vector.shape_cast %137 : vector<4x384xf32> to vector<1x4x384xf32>
    tpu.vector_store %arg7[%c0_120, %c0_121, %c0_122], %140 {strides = array<i32>} : memref<1x4x384xf32, #tpu.memory_space<vmem>>, vector<1x4x384xf32>,
    return
  }
  func.func @transform_0(%arg0: i32) -> (i32, i32, i32) {
    %c0_i32 = arith.constant 0 : i32
    %c0_i32_0 = arith.constant 0 : i32
    %c0_i32_1 = arith.constant 0 : i32
    return %arg0, %c0_i32, %c0_i32_0 : i32, i32, i32
  }
  func.func @transform_1(%arg0: i32) -> (i32, i32, i32) {
    %c0_i32 = arith.constant 0 : i32
    %c0_i32_0 = arith.constant 0 : i32
    %c0_i32_1 = arith.constant 0 : i32
    return %arg0, %c0_i32, %c0_i32_0 : i32, i32, i32
  }
  func.func @transform_2(%arg0: i32) -> (i32, i32, i32) {
    %c0_i32 = arith.constant 0 : i32
    %c0_i32_0 = arith.constant 0 : i32
    %c0_i32_1 = arith.constant 0 : i32
    %c0_i32_2 = arith.constant 0 : i32
    return %c0_i32, %c0_i32_0, %c0_i32_1 : i32, i32, i32
  }
  func.func @transform_3(%arg0: i32) -> (i32, i32, i32) {
    %c0_i32 = arith.constant 0 : i32
    %c0_i32_0 = arith.constant 0 : i32
    %c0_i32_1 = arith.constant 0 : i32
    %c0_i32_2 = arith.constant 0 : i32
    return %c0_i32, %c0_i32_0, %c0_i32_1 : i32, i32, i32
  }
  func.func @transform_4(%arg0: i32) -> (i32, i32) {
    %c0_i32 = arith.constant 0 : i32
    %c0_i32_0 = arith.constant 0 : i32
    %c0_i32_1 = arith.constant 0 : i32
    return %c0_i32, %c0_i32_0 : i32, i32
  }
  func.func @transform_5(%arg0: i32) -> i32 {
    %c0_i32 = arith.constant 0 : i32
    %c0_i32_0 = arith.constant 0 : i32
    return %c0_i32 : i32
  }
  func.func @transform_6(%arg0: i32) -> (i32, i32, i32) {
    %c0_i32 = arith.constant 0 : i32
    %c0_i32_0 = arith.constant 0 : i32
    %c0_i32_1 = arith.constant 0 : i32
    return %arg0, %c0_i32, %c0_i32_0 : i32, i32, i32
  }
}

</mosaic_0001>

<llo_original>
// kernel: unet_de_forward.2
$region0: #{unet_de_forward.2}
  #allocation0 [shape = 'u32[]', space=smem, size = 0x4, offset = 0x4, fixed_abs, tag = 'smem constant byte address 0x4 - core index']
  #allocation1 [shape = 'u32[144,128]{1,0:T(1,128)}', space=vmem, size = 0x12000, scoped, tag = 'internal scratch']
  #allocation2 [shape = 'f32[1]{0:T(128)S(6)}', space=smem, size = 0x200, scoped, tag = 'scoped memory for unet_de_forward.2']
  %s0 = inlined_call_operand.hbm [shape: bf16[2,8,256], index: 0, kind: input, shape index: {}]
  %s1 = inlined_call_operand.hbm [shape: bf16[9,4,8], index: 1, kind: input, shape index: {}]
  %s2 = inlined_call_operand.hbm [shape: f32[1,128], index: 2, kind: input, shape index: {}]
  %s3 = inlined_call_operand.<no memory space> [shape: f32[1], index: 3, kind: input, shape index: {}]
  %s4 = inlined_call_operand.hbm [shape: bf16[2,4,4,128], index: 4, kind: output, shape index: {}]
  %s5 = sld [smem:[#allocation0]]
  $region61: #{unet_de_forward.2} parent=0
    _
  %s7 = ssub.s32 1, %s5
  %s8 = scalar_select 0, %s7, %s5
  %9 = sst [smem:[#allocation2]] %s3
  $region1: #{unet_de_forward.2} parent=0
    #allocation3 [shape = 'u8[8192]{0}', space=vmem, size = 0x2000, scoped, tag = 'input window, operand 0']
    #allocation4 [shape = 's32[2]{0}', space=sflag, size = 0x8, scoped, tag = 'scoped memory for unet_de_forward.2']
    #allocation5 [shape = 's32[2]{0}', space=sflag, size = 0x8, scoped, tag = 'scoped memory for unet_de_forward.2']
    #allocation6 [shape = 'u8[9216]{0}', space=vmem, size = 0x2400, scoped, tag = 'input window, operand 1, single buffered']
    #allocation7 [shape = 's32[1]{0}', space=sflag, size = 0x4, scoped, tag = 'scoped memory for unet_de_forward.2']
    #allocation8 [shape = 'u8[512]{0}', space=vmem, size = 0x400, scoped, tag = 'input window, operand 2, single buffered']
    #allocation9 [shape = 'u8[8192]{0}', space=vmem, size = 0x2000, scoped, tag = 'output window, operand 0']
    %10 = vsyncpa [#allocation4], 0
    %s11 = scalar_lea.sflag [#allocation4], 1
    %12 = vsyncpa %s11, 0
    %13 = vsyncpa [#allocation7], 0
    %14 = vsyncpa [#allocation5], 0
    %s15 = scalar_lea.sflag [#allocation5], 1
    %16 = vsyncpa %s15, 0
    loop: start=0, step=1, limit=4
    $region2: #{unet_de_forward.2} parent=1 // loop_pre_header
      _
    $region3: #{unet_de_forward.2} parent=1 // loop_header
      %s18 = sphi 0, %s22
      %p19 = scmp.ge.s32.totalorder %s18, 4
      %s28 = sphi 0, %s30
      %s31 = sphi 0, %s28
      %s32 = sphi 0, %s31
      %s48 = sphi 0, %s32
      %s52 = sphi 0, %s52
      %s54 = sphi 0, %s52
      %s55 = sphi 0, %s54
      %s69 = sphi 0, %s55
      %s73 = sphi 0, %s73
      %s75 = sphi 0, %s73
      %s76 = sphi 0, %s75
      %s90 = sphi 0, %s76
      %s94 = sphi 0, %s94
      %s96 = sphi 0, %s94
      %s97 = sphi 0, %s96
      %s111 = sphi 0, %s97
      %s117 = sphi 0, %s119
      %s120 = sphi 0, %s117
      %s121 = sphi 0, %s120
      %s137 = sphi 0, %s121
    $region4: #{unet_de_forward.2} parent=1 // loop_header_branch
      %21 = sbr.rel (%p19) target = $region8
    $region5: #{unet_de_forward.2} parent=1 // loop_body
      %s23 = ssub.s32 %s18, 1
      %s24 = ssub.s32 %s18, 2
      %s25 = sadd.s32 %s18, 1
      %s26 = ssub.s32 %s18, %s25
      %p27 = scmp.eq.s32.totalorder %s26, 0
      %s29 = sadd.s32 %s28, 1
      %s30 = scalar_select %p27, %s28, %s29
      %p33 = pneg %p27
      %p34 = scmp.eq.s32.totalorder %s18, 1
      %p35 = por %p33, %p34
      %p36 = scmp.ne.s32.totalorder %s28, %s31
      %p37 = scmp.eq.s32.totalorder %s18, 0
      %p38 = por %p36, %p37
      %p39 = scmp.ne.s32.totalorder %s28, %s31
      %p40 = scmp.eq.s32.totalorder %s23, 1
      %p41 = por %p39, %p40
      %p42 = scmp.ne.s32.totalorder %s31, %s32
      %p43 = scmp.eq.s32.totalorder %s23, 0
      %p44 = por %p42, %p43
      %p45 = scmp.ne.s32.totalorder %s31, %s32
      %p46 = scmp.eq.s32.totalorder %s24, 1
      %p47 = por %p45, %p46
      %p49 = scmp.ne.s32.totalorder %s32, %s48
      %p50 = scmp.eq.s32.totalorder %s24, 0
      %p51 = por %p49, %p50
      %s53 = sadd.s32 %s52, 1
      %p56 = scmp.eq.s32.totalorder %s18, 1
      %p57 = scmp.ne.s32.totalorder %s52, %s54
      %p58 = scmp.eq.s32.totalorder %s18, 0
      %p59 = por %p57, %p58
      %p60 = scmp.ne.s32.totalorder %s52, %s54
      %p61 = scmp.eq.s32.totalorder %s23, 1
      %p62 = por %p60, %p61
      %p63 = scmp.ne.s32.totalorder %s54, %s55
      %p64 = scmp.eq.s32.totalorder %s23, 0
      %p65 = por %p63, %p64
      %p66 = scmp.ne.s32.totalorder %s54, %s55
      %p67 = scmp.eq.s32.totalorder %s24, 1
      %p68 = por %p66, %p67
      %p70 = scmp.ne.s32.totalorder %s55, %s69
      %p71 = scmp.eq.s32.totalorder %s24, 0
      %p72 = por %p70, %p71
      %s74 = sadd.s32 %s73, 1
      %p77 = scmp.eq.s32.totalorder %s18, 1
      %p78 = scmp.ne.s32.totalorder %s73, %s75
      %p79 = scmp.eq.s32.totalorder %s18, 0
      %p80 = por %p78, %p79
      %p81 = scmp.ne.s32.totalorder %s73, %s75
      %p82 = scmp.eq.s32.totalorder %s23, 1
      %p83 = por %p81, %p82
      %p84 = scmp.ne.s32.totalorder %s75, %s76
      %p85 = scmp.eq.s32.totalorder %s23, 0
      %p86 = por %p84, %p85
      %p87 = scmp.ne.s32.totalorder %s75, %s76
      %p88 = scmp.eq.s32.totalorder %s24, 1
      %p89 = por %p87, %p88
      %p91 = scmp.ne.s32.totalorder %s76, %s90
      %p92 = scmp.eq.s32.totalorder %s24, 0
      %p93 = por %p91, %p92
      %s95 = sadd.s32 %s94, 1
      %p98 = scmp.eq.s32.totalorder %s18, 1
      %p99 = scmp.ne.s32.totalorder %s94, %s96
      %p100 = scmp.eq.s32.totalorder %s18, 0
      %p101 = por %p99, %p100
      %p102 = scmp.ne.s32.totalorder %s94, %s96
      %p103 = scmp.eq.s32.totalorder %s23, 1
      %p104 = por %p102, %p103
      %p105 = scmp.ne.s32.totalorder %s96, %s97
      %p106 = scmp.eq.s32.totalorder %s23, 0
      %p107 = por %p105, %p106
      %p108 = scmp.ne.s32.totalorder %s96, %s97
      %p109 = scmp.eq.s32.totalorder %s24, 1
      %p110 = por %p108, %p109
      %p112 = scmp.ne.s32.totalorder %s97, %s111
      %p113 = scmp.eq.s32.totalorder %s24, 0
      %p114 = por %p112, %p113
      %s115 = ssub.s32 %s18, %s25
      %p116 = scmp.eq.s32.totalorder %s115, 0
      %s118 = sadd.s32 %s117, 1
      %s119 = scalar_select %p116, %s117, %s118
      %p122 = pneg %p116
      %p123 = scmp.eq.s32.totalorder %s18, 1
      %p124 = por %p122, %p123
      %p125 = scmp.ne.s32.totalorder %s117, %s120
      %p126 = scmp.eq.s32.totalorder %s18, 0
      %p127 = por %p125, %p126
      %p128 = scmp.ne.s32.totalorder %s117, %s120
      %p129 = scmp.eq.s32.totalorder %s23, 1
      %p130 = por %p128, %p129
      %p131 = scmp.ne.s32.totalorder %s120, %s121
      %p132 = scmp.eq.s32.totalorder %s23, 0
      %p133 = por %p131, %p132
      %p134 = scmp.ne.s32.totalorder %s120, %s121
      %p135 = scmp.eq.s32.totalorder %s24, 1
      %p136 = por %p134, %p135
      %p138 = scmp.ne.s32.totalorder %s121, %s137
      %p139 = scmp.eq.s32.totalorder %s24, 0
      %p140 = por %p138, %p139
      %p141 = scmp.le.s32.totalorder 1, %s18
      %p142 = scmp.lt.s32.totalorder %s18, 3
      %p143 = pnand %p141, %p142
      %p144 = pneg %p143
      // Predicated region
      $region9: #{unet_de_forward.2} parent=5 // pred_check
        _
      $region10: #{unet_de_forward.2} parent=5 // pred_check_branch
        %146 = sbr.rel (%p143) target = $region12
      $region11: #{unet_de_forward.2} parent=5 // pred_region
        %s147 = ssub.s32 %s18, 1
        // Predicated region
        $region13: #{unet_de_forward.2} parent=11 // pred_check
          %p148 = pneg %p65
        $region14: #{unet_de_forward.2} parent=11 // pred_check_branch
          %150 = sbr.rel (%p148) target = $region16
        $region15: #{unet_de_forward.2} parent=11 // pred_region
          %s152 = ssub.s32 288, 288
          %153 = vsyncadd [#allocation7], %s152
          %s154 = sshll.u32 [#allocation6], 4
          %s155 = int_to_ptr.vmem [resolvable:$true] %s154
          %160 = dma.hbm_to_vmem [thread:$0]  %s1, 288, %s155, [#allocation7], 32, 32, 2
        $region16: #{unet_de_forward.2} parent=11 // pred_fallthru
          _
        // Predicated region
        $region17: #{unet_de_forward.2} parent=11 // pred_check
          %p161 = pneg %p86
        $region18: #{unet_de_forward.2} parent=11 // pred_check_branch
          %163 = sbr.rel (%p161) target = $region20
        $region19: #{unet_de_forward.2} parent=11 // pred_region
          %s165 = ssub.s32 16, 16
          %166 = vsyncadd [#allocation7], %s165
          %s168 = sshll.u32 [#allocation8], 4
          %s169 = int_to_ptr.vmem [resolvable:$true] %s168
          %171 = dma.hbm_to_vmem [thread:$0]  %s2, 16, %s169, [#allocation7]
        $region20: #{unet_de_forward.2} parent=11 // pred_fallthru
          _
        // Predicated region
        $region21: #{unet_de_forward.2} parent=11 // pred_check
          %p172 = pneg %p107
        $region22: #{unet_de_forward.2} parent=11 // pred_check_branch
          %174 = sbr.rel (%p172) target = $region24
        $region23: #{unet_de_forward.2} parent=11 // pred_region
          _
        $region24: #{unet_de_forward.2} parent=11 // pred_fallthru
          _
      $region12: #{unet_de_forward.2} parent=5 // pred_fallthru
        _
      %p175 = scmp.lt.s32.totalorder %s18, 2
      // Predicated region
      $region25: #{unet_de_forward.2} parent=5 // pred_check
        %p176 = pneg %p175
      $region26: #{unet_de_forward.2} parent=5 // pred_check_branch
        %178 = sbr.rel (%p176) target = $region28
      $region27: #{unet_de_forward.2} parent=5 // pred_region
        // Predicated region
        $region29: #{unet_de_forward.2} parent=27 // pred_check
          %p179 = pneg %p38
        $region30: #{unet_de_forward.2} parent=27 // pred_check_branch
          %181 = sbr.rel (%p179) target = $region32
        $region31: #{unet_de_forward.2} parent=27 // pred_region
          %s182 = sand.u32 %s28, 1
          %s183 = scalar_lea.sflag [#allocation4], %s182
          %s184 = sand.u32 %s28, 1
          %s185 = smul.addr %s184, 8
          %s186 = scalar_lea.vmem [#allocation3], %s185
          %s188 = ssub.s32 128, 128
          %189 = vsyncadd %s183, %s188
          %s190 = smul.addr %s18, 2
          %s191 = smul.addr %s190, 64
          %s192 = scalar_lea.hbm %s0, %s191
          %s194 = sshll.u32 %s186, 4
          %s195 = int_to_ptr.vmem [resolvable:$true] %s194
          %197 = dma.hbm_to_vmem [thread:$0]  %s192, 128, %s195, %s183
        $region32: #{unet_de_forward.2} parent=27 // pred_fallthru
          _
      $region28: #{unet_de_forward.2} parent=5 // pred_fallthru
        _
      %p198 = scmp.le.s32.totalorder 1, %s18
      %p199 = scmp.lt.s32.totalorder %s18, 3
      %p200 = pnand %p198, %p199
      %p201 = pneg %p200
      // Predicated region
      $region33: #{unet_de_forward.2} parent=5 // pred_check
        _
      $region34: #{unet_de_forward.2} parent=5 // pred_check_branch
        %203 = sbr.rel (%p200) target = $region36
      $region35: #{unet_de_forward.2} parent=5 // pred_region
        %s204 = ssub.s32 %s18, 1
        %s205 = sand.u32 %s31, 1
        %s206 = scalar_lea.sflag [#allocation4], %s205
        %s207 = sand.u32 %s31, 1
        %s208 = smul.addr %s207, 8
        %s209 = scalar_lea.vmem [#allocation3], %s208
        // Predicated region
        $region37: #{unet_de_forward.2} parent=35 // pred_check
          %p210 = pneg %p44
        $region38: #{unet_de_forward.2} parent=35 // pred_check_branch
          %212 = sbr.rel (%p210) target = $region40
        $region39: #{unet_de_forward.2} parent=35 // pred_region
          %213 = dma.done %s206, 128
        $region40: #{unet_de_forward.2} parent=35 // pred_fallthru
          _
        // Predicated region
        $region41: #{unet_de_forward.2} parent=35 // pred_check
          %p214 = pneg %p65
        $region42: #{unet_de_forward.2} parent=35 // pred_check_branch
          %216 = sbr.rel (%p214) target = $region44
        $region43: #{unet_de_forward.2} parent=35 // pred_region
          %217 = dma.done [#allocation7], 288
        $region44: #{unet_de_forward.2} parent=35 // pred_fallthru
          _
        // Predicated region
        $region45: #{unet_de_forward.2} parent=35 // pred_check
          %p218 = pneg %p86
        $region46: #{unet_de_forward.2} parent=35 // pred_check_branch
          %220 = sbr.rel (%p218) target = $region48
        $region47: #{unet_de_forward.2} parent=35 // pred_region
          %221 = dma.done [#allocation7], 16
        $region48: #{unet_de_forward.2} parent=35 // pred_fallthru
          _
        %s222 = sand.u32 %s31, 1
        %s223 = scalar_lea.sflag [#allocation4], %s222
        %s224 = sand.u32 %s31, 1
        %s225 = smul.addr %s224, 8
        %s226 = scalar_lea.vmem [#allocation3], %s225
        %p227 = pneg %p44
        %p228 = pneg %p41
        %p229 = pneg %p65
        %p230 = pneg %p62
        %p231 = pneg %p86
        %p232 = pneg %p83
        %p233 = pneg %p107
        %p234 = pneg %p104
        %p235 = pneg %p133
        %p236 = pneg %p130
        %s237 = sand.u32 %s120, 1
        %s238 = scalar_lea.sflag [#allocation5], %s237
        %s239 = sand.u32 %s120, 1
        %s240 = smul.addr %s239, 8
        %s241 = scalar_lea.vmem [#allocation9], %s240
        %s243 = scalar_lea.vmem [#allocation6], 8
        %v244 = vld [vmem:[%s243] sm:$0x3]
        %v245 = vld [vmem:[%s209] sm:$0xf]
        %vm246 = vcmask 64512
        %v248 = vsel %vm246, %v244, 0
        %vm250 = vcmask 1043456
        %v252 = vsel %vm250, %v245, 0
        %254 = vmatprep.subr.bf16.mxu0 0
        %255 = vmatpush1.bf16.msra.mxu0 %v252
        %256 = vmatprep.subr.bf16.mxu0 0
        %257 = vmatpush1.bf16.msra.mxu0 0
        %258 = vmatprep.subr.bf16.mxu0 0
        %259 = vmatpush1.bf16.msra.mxu0 0
        %260 = vmatprep.subr.bf16.mxu0 0
        %261 = vmatpush1.bf16.msra.mxu0 0
        %262 = vmatprep.subr.bf16.mxu0 0
        %263 = vmatpush1.bf16.msra.mxu0 0
        %264 = vmatprep.subr.bf16.mxu0 0
        %265 = vmatpush1.bf16.msra.mxu0 0
        %266 = vmatprep.subr.bf16.mxu0 0
        %267 = vmatpush1.bf16.msra.mxu0 0
        %268 = vmatprep.subr.bf16.mxu0 0
        %269 = vmatpush1.bf16.msra.mxu0 0
        %270 = vmatprep.subr.bf16.mxu0 0
        %271 = vmatpush1.bf16.msra.mxu0 0
        %272 = vmatprep.subr.bf16.mxu0 0
        %273 = vmatpush1.bf16.msra.mxu0 0
        %274 = vmatprep.subr.bf16.mxu0 0
        %275 = vmatpush1.bf16.msra.mxu0 0
        %276 = vmatprep.subr.bf16.mxu0 0
        %277 = vmatpush1.bf16.msra.mxu0 0
        %278 = vmatprep.subr.bf16.mxu0 0
        %279 = vmatpush1.bf16.msra.mxu0 0
        %280 = vmatprep.subr.bf16.mxu0 0
        %281 = vmatpush1.bf16.msra.mxu0 0
        %282 = vmatprep.subr.bf16.mxu0 0
        %283 = vmatpush1.bf16.msra.mxu0 0
        %284 = vmatprep.subr.bf16.mxu0 0
        %285 = vmatpush1.bf16.msra.mxu0 0
        %286 = vmatprep.mubr.bf16.mxu0 0
        %287 = vmatmul.mubr.bf16.gmra.mrb[0].mxu0 %v248
        %v288 = vpop.f32.mrb[0].mxu0
        %v289 = vadd.f32 0.0, %v288
        %v290 = vpop.f32.mrb[0].mxu0
        %v291 = vpop.f32.mrb[0].mxu0
        %v292 = vpop.f32.mrb[0].mxu0
        %293 = vdwg.mxu0
        %s294 = scalar_lea.vmem [#allocation6], 10
        %v295 = vld [vmem:[%s294] sm:$0x3]
        %s296 = scalar_lea.vmem [#allocation6], 6
        %v297 = vld [vmem:[%s296] sm:$0x3]
        %v298 = vld [vmem:[%s209] sm:$0xff]
        %v300 = vunpack.c.l.b16 %v298
        %v301 = vunpack.c.h.b16 %v298
        %v302 = vpack.c.b16 %v300, %v300
        %v303 = vpack.c.b16 %v301, %v301
        %304 = vrot.lane.b32.xlu0 %v302, 127
        %v305 = vpop.permute.xlu0 %304
        %306 = vrot.lane.b32.xlu0 %v303, 127
        %v307 = vpop.permute.xlu0 %306
        %vm308 = vcmask 1039360
        %v309 = vsel %vm308, %v305, %v307
        %v311 = vsel %vm246, %v297, 0
        %v314 = vsel %vm250, %v309, 0
        %316 = vmatprep.subr.bf16.mxu0 0
        %317 = vmatpush1.bf16.msra.mxu0 %v314
        %318 = vmatprep.subr.bf16.mxu0 0
        %319 = vmatpush1.bf16.msra.mxu0 0
        %320 = vmatprep.subr.bf16.mxu0 0
        %321 = vmatpush1.bf16.msra.mxu0 0
        %322 = vmatprep.subr.bf16.mxu0 0
        %323 = vmatpush1.bf16.msra.mxu0 0
        %324 = vmatprep.subr.bf16.mxu0 0
        %325 = vmatpush1.bf16.msra.mxu0 0
        %326 = vmatprep.subr.bf16.mxu0 0
        %327 = vmatpush1.bf16.msra.mxu0 0
        %328 = vmatprep.subr.bf16.mxu0 0
        %329 = vmatpush1.bf16.msra.mxu0 0
        %330 = vmatprep.subr.bf16.mxu0 0
        %331 = vmatpush1.bf16.msra.mxu0 0
        %332 = vmatprep.subr.bf16.mxu0 0
        %333 = vmatpush1.bf16.msra.mxu0 0
        %334 = vmatprep.subr.bf16.mxu0 0
        %335 = vmatpush1.bf16.msra.mxu0 0
        %336 = vmatprep.subr.bf16.mxu0 0
        %337 = vmatpush1.bf16.msra.mxu0 0
        %338 = vmatprep.subr.bf16.mxu0 0
        %339 = vmatpush1.bf16.msra.mxu0 0
        %340 = vmatprep.subr.bf16.mxu0 0
        %341 = vmatpush1.bf16.msra.mxu0 0
        %342 = vmatprep.subr.bf16.mxu0 0
        %343 = vmatpush1.bf16.msra.mxu0 0
        %344 = vmatprep.subr.bf16.mxu0 0
        %345 = vmatpush1.bf16.msra.mxu0 0
        %346 = vmatprep.subr.bf16.mxu0 0
        %347 = vmatpush1.bf16.msra.mxu0 0
        %348 = vmatprep.mubr.bf16.mxu0 0
        %349 = vmatmul.mubr.bf16.gmra.mrb[0].mxu0 %v311
        %v350 = vpop.f32.mrb[0].mxu0
        %v351 = vadd.f32 0.0, %v350
        %v352 = vpop.f32.mrb[0].mxu0
        %v353 = vpop.f32.mrb[0].mxu0
        %v354 = vpop.f32.mrb[0].mxu0
        %355 = vdwg.mxu0
        %v357 = vsel %vm246, %v295, 0
        %359 = vmatprep.subr.bf16.mxu0 0
        %360 = vmatpush1.bf16.msra.mxu0 %v252
        %361 = vmatprep.subr.bf16.mxu0 0
        %362 = vmatpush1.bf16.msra.mxu0 0
        %363 = vmatprep.subr.bf16.mxu0 0
        %364 = vmatpush1.bf16.msra.mxu0 0
        %365 = vmatprep.subr.bf16.mxu0 0
        %366 = vmatpush1.bf16.msra.mxu0 0
        %367 = vmatprep.subr.bf16.mxu0 0
        %368 = vmatpush1.bf16.msra.mxu0 0
        %369 = vmatprep.subr.bf16.mxu0 0
        %370 = vmatpush1.bf16.msra.mxu0 0
        %371 = vmatprep.subr.bf16.mxu0 0
        %372 = vmatpush1.bf16.msra.mxu0 0
        %373 = vmatprep.subr.bf16.mxu0 0
        %374 = vmatpush1.bf16.msra.mxu0 0
        %375 = vmatprep.subr.bf16.mxu0 0
        %376 = vmatpush1.bf16.msra.mxu0 0
        %377 = vmatprep.subr.bf16.mxu0 0
        %378 = vmatpush1.bf16.msra.mxu0 0
        %379 = vmatprep.subr.bf16.mxu0 0
        %380 = vmatpush1.bf16.msra.mxu0 0
        %381 = vmatprep.subr.bf16.mxu0 0
        %382 = vmatpush1.bf16.msra.mxu0 0
        %383 = vmatprep.subr.bf16.mxu0 0
        %384 = vmatpush1.bf16.msra.mxu0 0
        %385 = vmatprep.subr.bf16.mxu0 0
        %386 = vmatpush1.bf16.msra.mxu0 0
        %387 = vmatprep.subr.bf16.mxu0 0
        %388 = vmatpush1.bf16.msra.mxu0 0
        %389 = vmatprep.subr.bf16.mxu0 0
        %390 = vmatpush1.bf16.msra.mxu0 0
        %391 = vmatprep.mubr.bf16.mxu0 0
        %392 = vmatmul.mubr.bf16.gmra.mrb[0].mxu0 %v357
        %v393 = vpop.f32.mrb[0].mxu0
        %v394 = vadd.f32 %v351, %v393
        %v395 = vpop.f32.mrb[0].mxu0
        %v396 = vpop.f32.mrb[0].mxu0
        %v397 = vpop.f32.mrb[0].mxu0
        %398 = vdwg.mxu0
        %s399 = scalar_lea.vmem [#allocation6], 14
        %v400 = vld [vmem:[%s399] sm:$0x3]
        %s401 = scalar_lea.vmem [#allocation6], 2
        %v402 = vld [vmem:[%s401] sm:$0x3]
        %403 = vrot.lane.b32.xlu0 %v302, 119
        %v404 = vpop.permute.xlu0 %403
        %405 = vrot.lane.b32.xlu0 %v303, 119
        %v406 = vpop.permute.xlu0 %405
        %vm407 = vcmask 973824
        %v408 = vsel %vm407, %v404, %v406
        %v410 = vsel %vm246, %v402, 0
        %v413 = vsel %vm250, %v408, 0
        %415 = vmatprep.subr.bf16.mxu0 0
        %416 = vmatpush1.bf16.msra.mxu0 %v413
        %417 = vmatprep.subr.bf16.mxu0 0
        %418 = vmatpush1.bf16.msra.mxu0 0
        %419 = vmatprep.subr.bf16.mxu0 0
        %420 = vmatpush1.bf16.msra.mxu0 0
        %421 = vmatprep.subr.bf16.mxu0 0
        %422 = vmatpush1.bf16.msra.mxu0 0
        %423 = vmatprep.subr.bf16.mxu0 0
        %424 = vmatpush1.bf16.msra.mxu0 0
        %425 = vmatprep.subr.bf16.mxu0 0
        %426 = vmatpush1.bf16.msra.mxu0 0
        %427 = vmatprep.subr.bf16.mxu0 0
        %428 = vmatpush1.bf16.msra.mxu0 0
        %429 = vmatprep.subr.bf16.mxu0 0
        %430 = vmatpush1.bf16.msra.mxu0 0
        %431 = vmatprep.subr.bf16.mxu0 0
        %432 = vmatpush1.bf16.msra.mxu0 0
        %433 = vmatprep.subr.bf16.mxu0 0
        %434 = vmatpush1.bf16.msra.mxu0 0
        %435 = vmatprep.subr.bf16.mxu0 0
        %436 = vmatpush1.bf16.msra.mxu0 0
        %437 = vmatprep.subr.bf16.mxu0 0
        %438 = vmatpush1.bf16.msra.mxu0 0
        %439 = vmatprep.subr.bf16.mxu0 0
        %440 = vmatpush1.bf16.msra.mxu0 0
        %441 = vmatprep.subr.bf16.mxu0 0
        %442 = vmatpush1.bf16.msra.mxu0 0
        %443 = vmatprep.subr.bf16.mxu0 0
        %444 = vmatpush1.bf16.msra.mxu0 0
        %445 = vmatprep.subr.bf16.mxu0 0
        %446 = vmatpush1.bf16.msra.mxu0 0
        %447 = vmatprep.mubr.bf16.mxu0 0
        %448 = vmatmul.mubr.bf16.gmra.mrb[0].mxu0 %v410
        %v449 = vpop.f32.mrb[0].mxu0
        %v450 = vadd.f32 0.0, %v449
        %v451 = vpop.f32.mrb[0].mxu0
        %v452 = vpop.f32.mrb[0].mxu0
        %v453 = vpop.f32.mrb[0].mxu0
        %454 = vdwg.mxu0
        %v456 = vsel %vm246, %v400, 0
        %458 = vmatprep.subr.bf16.mxu0 0
        %459 = vmatpush1.bf16.msra.mxu0 %v252
        %460 = vmatprep.subr.bf16.mxu0 0
        %461 = vmatpush1.bf16.msra.mxu0 0
        %462 = vmatprep.subr.bf16.mxu0 0
        %463 = vmatpush1.bf16.msra.mxu0 0
        %464 = vmatprep.subr.bf16.mxu0 0
        %465 = vmatpush1.bf16.msra.mxu0 0
        %466 = vmatprep.subr.bf16.mxu0 0
        %467 = vmatpush1.bf16.msra.mxu0 0
        %468 = vmatprep.subr.bf16.mxu0 0
        %469 = vmatpush1.bf16.msra.mxu0 0
        %470 = vmatprep.subr.bf16.mxu0 0
        %471 = vmatpush1.bf16.msra.mxu0 0
        %472 = vmatprep.subr.bf16.mxu0 0
        %473 = vmatpush1.bf16.msra.mxu0 0
        %474 = vmatprep.subr.bf16.mxu0 0
        %475 = vmatpush1.bf16.msra.mxu0 0
        %476 = vmatprep.subr.bf16.mxu0 0
        %477 = vmatpush1.bf16.msra.mxu0 0
        %478 = vmatprep.subr.bf16.mxu0 0
        %479 = vmatpush1.bf16.msra.mxu0 0
        %480 = vmatprep.subr.bf16.mxu0 0
        %481 = vmatpush1.bf16.msra.mxu0 0
        %482 = vmatprep.subr.bf16.mxu0 0
        %483 = vmatpush1.bf16.msra.mxu0 0
        %484 = vmatprep.subr.bf16.mxu0 0
        %485 = vmatpush1.bf16.msra.mxu0 0
        %486 = vmatprep.subr.bf16.mxu0 0
        %487 = vmatpush1.bf16.msra.mxu0 0
        %488 = vmatprep.subr.bf16.mxu0 0
        %489 = vmatpush1.bf16.msra.mxu0 0
        %490 = vmatprep.mubr.bf16.mxu0 0
        %491 = vmatmul.mubr.bf16.gmra.mrb[0].mxu0 %v456
        %v492 = vpop.f32.mrb[0].mxu0
        %v493 = vadd.f32 %v450, %v492
        %v494 = vpop.f32.mrb[0].mxu0
        %v495 = vpop.f32.mrb[0].mxu0
        %v496 = vpop.f32.mrb[0].mxu0
        %497 = vdwg.mxu0
        %s498 = scalar_lea.vmem [#allocation6], 16
        %v499 = vld [vmem:[%s498] sm:$0x3]
        %s500 = scalar_lea.vmem [#allocation6], 12
        %v501 = vld [vmem:[%s500] sm:$0x3]
        %v503 = vsel %vm246, %v501, 0
        %505 = vmatprep.subr.bf16.mxu0 0
        %506 = vmatpush1.bf16.msra.mxu0 %v314
        %507 = vmatprep.subr.bf16.mxu0 0
        %508 = vmatpush1.bf16.msra.mxu0 0
        %509 = vmatprep.subr.bf16.mxu0 0
        %510 = vmatpush1.bf16.msra.mxu0 0
        %511 = vmatprep.subr.bf16.mxu0 0
        %512 = vmatpush1.bf16.msra.mxu0 0
        %513 = vmatprep.subr.bf16.mxu0 0
        %514 = vmatpush1.bf16.msra.mxu0 0
        %515 = vmatprep.subr.bf16.mxu0 0
        %516 = vmatpush1.bf16.msra.mxu0 0
        %517 = vmatprep.subr.bf16.mxu0 0
        %518 = vmatpush1.bf16.msra.mxu0 0
        %519 = vmatprep.subr.bf16.mxu0 0
        %520 = vmatpush1.bf16.msra.mxu0 0
        %521 = vmatprep.subr.bf16.mxu0 0
        %522 = vmatpush1.bf16.msra.mxu0 0
        %523 = vmatprep.subr.bf16.mxu0 0
        %524 = vmatpush1.bf16.msra.mxu0 0
        %525 = vmatprep.subr.bf16.mxu0 0
        %526 = vmatpush1.bf16.msra.mxu0 0
        %527 = vmatprep.subr.bf16.mxu0 0
        %528 = vmatpush1.bf16.msra.mxu0 0
        %529 = vmatprep.subr.bf16.mxu0 0
        %530 = vmatpush1.bf16.msra.mxu0 0
        %531 = vmatprep.subr.bf16.mxu0 0
        %532 = vmatpush1.bf16.msra.mxu0 0
        %533 = vmatprep.subr.bf16.mxu0 0
        %534 = vmatpush1.bf16.msra.mxu0 0
        %535 = vmatprep.subr.bf16.mxu0 0
        %536 = vmatpush1.bf16.msra.mxu0 0
        %537 = vmatprep.mubr.bf16.mxu0 0
        %538 = vmatmul.mubr.bf16.gmra.mrb[0].mxu0 %v503
        %v539 = vpop.f32.mrb[0].mxu0
        %v540 = vadd.f32 0.0, %v539
        %v541 = vpop.f32.mrb[0].mxu0
        %v542 = vpop.f32.mrb[0].mxu0
        %v543 = vpop.f32.mrb[0].mxu0
        %544 = vdwg.mxu0
        %v546 = vsel %vm246, %v499, 0
        %548 = vmatprep.subr.bf16.mxu0 0
        %549 = vmatpush1.bf16.msra.mxu0 %v252
        %550 = vmatprep.subr.bf16.mxu0 0
        %551 = vmatpush1.bf16.msra.mxu0 0
        %552 = vmatprep.subr.bf16.mxu0 0
        %553 = vmatpush1.bf16.msra.mxu0 0
        %554 = vmatprep.subr.bf16.mxu0 0
        %555 = vmatpush1.bf16.msra.mxu0 0
        %556 = vmatprep.subr.bf16.mxu0 0
        %557 = vmatpush1.bf16.msra.mxu0 0
        %558 = vmatprep.subr.bf16.mxu0 0
        %559 = vmatpush1.bf16.msra.mxu0 0
        %560 = vmatprep.subr.bf16.mxu0 0
        %561 = vmatpush1.bf16.msra.mxu0 0
        %562 = vmatprep.subr.bf16.mxu0 0
        %563 = vmatpush1.bf16.msra.mxu0 0
        %564 = vmatprep.subr.bf16.mxu0 0
        %565 = vmatpush1.bf16.msra.mxu0 0
        %566 = vmatprep.subr.bf16.mxu0 0
        %567 = vmatpush1.bf16.msra.mxu0 0
        %568 = vmatprep.subr.bf16.mxu0 0
        %569 = vmatpush1.bf16.msra.mxu0 0
        %570 = vmatprep.subr.bf16.mxu0 0
        %571 = vmatpush1.bf16.msra.mxu0 0
        %572 = vmatprep.subr.bf16.mxu0 0
        %573 = vmatpush1.bf16.msra.mxu0 0
        %574 = vmatprep.subr.bf16.mxu0 0
        %575 = vmatpush1.bf16.msra.mxu0 0
        %576 = vmatprep.subr.bf16.mxu0 0
        %577 = vmatpush1.bf16.msra.mxu0 0
        %578 = vmatprep.subr.bf16.mxu0 0
        %579 = vmatpush1.bf16.msra.mxu0 0
        %580 = vmatprep.mubr.bf16.mxu0 0
        %581 = vmatmul.mubr.bf16.gmra.mrb[0].mxu0 %v546
        %v582 = vpop.f32.mrb[0].mxu0
        %v583 = vadd.f32 %v540, %v582
        %v584 = vpop.f32.mrb[0].mxu0
        %v585 = vpop.f32.mrb[0].mxu0
        %v586 = vpop.f32.mrb[0].mxu0
        %587 = vdwg.mxu0
        %s588 = scalar_lea.vmem [#allocation6], 4
        %v589 = vld [vmem:[%s588] sm:$0x3]
        %v591 = vsel %vm246, %v589, 0
        %593 = vmatprep.subr.bf16.mxu0 0
        %594 = vmatpush1.bf16.msra.mxu0 %v413
        %595 = vmatprep.subr.bf16.mxu0 0
        %596 = vmatpush1.bf16.msra.mxu0 0
        %597 = vmatprep.subr.bf16.mxu0 0
        %598 = vmatpush1.bf16.msra.mxu0 0
        %599 = vmatprep.subr.bf16.mxu0 0
        %600 = vmatpush1.bf16.msra.mxu0 0
        %601 = vmatprep.subr.bf16.mxu0 0
        %602 = vmatpush1.bf16.msra.mxu0 0
        %603 = vmatprep.subr.bf16.mxu0 0
        %604 = vmatpush1.bf16.msra.mxu0 0
        %605 = vmatprep.subr.bf16.mxu0 0
        %606 = vmatpush1.bf16.msra.mxu0 0
        %607 = vmatprep.subr.bf16.mxu0 0
        %608 = vmatpush1.bf16.msra.mxu0 0
        %609 = vmatprep.subr.bf16.mxu0 0
        %610 = vmatpush1.bf16.msra.mxu0 0
        %611 = vmatprep.subr.bf16.mxu0 0
        %612 = vmatpush1.bf16.msra.mxu0 0
        %613 = vmatprep.subr.bf16.mxu0 0
        %614 = vmatpush1.bf16.msra.mxu0 0
        %615 = vmatprep.subr.bf16.mxu0 0
        %616 = vmatpush1.bf16.msra.mxu0 0
        %617 = vmatprep.subr.bf16.mxu0 0
        %618 = vmatpush1.bf16.msra.mxu0 0
        %619 = vmatprep.subr.bf16.mxu0 0
        %620 = vmatpush1.bf16.msra.mxu0 0
        %621 = vmatprep.subr.bf16.mxu0 0
        %622 = vmatpush1.bf16.msra.mxu0 0
        %623 = vmatprep.subr.bf16.mxu0 0
        %624 = vmatpush1.bf16.msra.mxu0 0
        %625 = vmatprep.mubr.bf16.mxu0 0
        %626 = vmatmul.mubr.bf16.gmra.mrb[0].mxu0 %v591
        %v627 = vpop.f32.mrb[0].mxu0
        %v628 = vadd.f32 0.0, %v627
        %v629 = vpop.f32.mrb[0].mxu0
        %v630 = vpop.f32.mrb[0].mxu0
        %v631 = vpop.f32.mrb[0].mxu0
        %632 = vdwg.mxu0
        %v633 = vadd.f32 %v583, %v628
        %v634 = vld [vmem:[#allocation6] sm:$0x3]
        %635 = vrot.lane.b32.xlu0 %v302, 118
        %v636 = vpop.permute.xlu0 %635
        %637 = vrot.lane.b32.xlu0 %v303, 118
        %v638 = vpop.permute.xlu0 %637
        %vm639 = vcmask 965632
        %v640 = vsel %vm639, %v636, %v638
        %v642 = vsel %vm246, %v634, 0
        %v645 = vsel %vm250, %v640, 0
        %647 = vmatprep.subr.bf16.mxu0 0
        %648 = vmatpush1.bf16.msra.mxu0 %v645
        %649 = vmatprep.subr.bf16.mxu0 0
        %650 = vmatpush1.bf16.msra.mxu0 0
        %651 = vmatprep.subr.bf16.mxu0 0
        %652 = vmatpush1.bf16.msra.mxu0 0
        %653 = vmatprep.subr.bf16.mxu0 0
        %654 = vmatpush1.bf16.msra.mxu0 0
        %655 = vmatprep.subr.bf16.mxu0 0
        %656 = vmatpush1.bf16.msra.mxu0 0
        %657 = vmatprep.subr.bf16.mxu0 0
        %658 = vmatpush1.bf16.msra.mxu0 0
        %659 = vmatprep.subr.bf16.mxu0 0
        %660 = vmatpush1.bf16.msra.mxu0 0
        %661 = vmatprep.subr.bf16.mxu0 0
        %662 = vmatpush1.bf16.msra.mxu0 0
        %663 = vmatprep.subr.bf16.mxu0 0
        %664 = vmatpush1.bf16.msra.mxu0 0
        %665 = vmatprep.subr.bf16.mxu0 0
        %666 = vmatpush1.bf16.msra.mxu0 0
        %667 = vmatprep.subr.bf16.mxu0 0
        %668 = vmatpush1.bf16.msra.mxu0 0
        %669 = vmatprep.subr.bf16.mxu0 0
        %670 = vmatpush1.bf16.msra.mxu0 0
        %671 = vmatprep.subr.bf16.mxu0 0
        %672 = vmatpush1.bf16.msra.mxu0 0
        %673 = vmatprep.subr.bf16.mxu0 0
        %674 = vmatpush1.bf16.msra.mxu0 0
        %675 = vmatprep.subr.bf16.mxu0 0
        %676 = vmatpush1.bf16.msra.mxu0 0
        %677 = vmatprep.subr.bf16.mxu0 0
        %678 = vmatpush1.bf16.msra.mxu0 0
        %679 = vmatprep.mubr.bf16.mxu0 0
        %680 = vmatmul.mubr.bf16.gmra.mrb[0].mxu0 %v642
        %v681 = vpop.f32.mrb[0].mxu0
        %v682 = vadd.f32 0.0, %v681
        %v683 = vpop.f32.mrb[0].mxu0
        %v684 = vpop.f32.mrb[0].mxu0
        %v685 = vpop.f32.mrb[0].mxu0
        %686 = vdwg.mxu0
        %v687 = vadd.f32 %v633, %v682
        %v688 = vld [vmem:[#allocation8] sm:$0x1]
        %v690 = vlaneseq
        %v691 = vshrl.u32 %v690, 7
        %v692 = vsub.s32 0, %v691
        %v693 = vrot.slane %v688, %v692
        %v695 = vmul.f32 %v289, %v693
        %v696 = vsel %vm250, %v695, 0.0
        %697 = vadd.xlane.f32.xlu0 %v696
        %v698 = vpop.xlane.xlu0 %697
        %v699 = vadd.f32 %v698, 0.0
        %v700 = vmul.f32 %v394, %v693
        %v701 = vsel %vm250, %v700, 0.0
        %702 = vadd.xlane.f32.xlu0 %v701
        %v703 = vpop.xlane.xlu0 %702
        %v704 = vadd.f32 %v699, %v703
        %v705 = vmul.f32 %v493, %v693
        %v706 = vsel %vm250, %v705, 0.0
        %707 = vadd.xlane.f32.xlu0 %v706
        %v708 = vpop.xlane.xlu0 %707
        %v709 = vadd.f32 %v704, %v708
        %v710 = vmul.f32 %v687, %v693
        %v711 = vsel %vm250, %v710, 0.0
        %712 = vadd.xlane.f32.xlu0 %v711
        %v713 = vpop.xlane.xlu0 %712
        %v714 = vadd.f32 %v709, %v713
        %v715 = vmul.f32 %v289, %v289
        %v716 = vmul.f32 %v715, %v693
        %v717 = vsel %vm250, %v716, 0.0
        %718 = vadd.xlane.f32.xlu0 %v717
        %v719 = vpop.xlane.xlu0 %718
        %v720 = vadd.f32 %v719, 0.0
        %v721 = vmul.f32 %v394, %v394
        %v722 = vmul.f32 %v721, %v693
        %v723 = vsel %vm250, %v722, 0.0
        %724 = vadd.xlane.f32.xlu0 %v723
        %v725 = vpop.xlane.xlu0 %724
        %v726 = vadd.f32 %v720, %v725
        %v727 = vmul.f32 %v493, %v493
        %v728 = vmul.f32 %v727, %v693
        %v729 = vsel %vm250, %v728, 0.0
        %730 = vadd.xlane.f32.xlu0 %v729
        %v731 = vpop.xlane.xlu0 %730
        %v732 = vadd.f32 %v726, %v731
        %v733 = vmul.f32 %v687, %v687
        %v734 = vmul.f32 %v733, %v693
        %v735 = vsel %vm250, %v734, 0.0
        %736 = vadd.xlane.f32.xlu0 %v735
        %v737 = vpop.xlane.xlu0 %736
        %v738 = vadd.f32 %v732, %v737
        %v739 = vmul.f32 %v714, 0.00390625
        %v740 = vmul.f32 %v738, 0.00390625
        %v741 = vmul.f32 %v739, %v739
        %v742 = vsub.f32 %v740, %v741
        %v743 = vadd.f32 %v742, 1e-05
        %v744 = vrsqrt.pop %v743
        %s745 = sld [smem:[#allocation2]]
        %v746 = vsub.f32 %v289, %v739
        %v747 = vmul.f32 %v746, %v744
        %vm748 = vcmp.ge.f32.partialorder %v747, 0.0
        %v749 = vstv %s745
        %v750 = vmul.f32 %v747, %v749
        %v751 = vsel %vm748, %v747, %v750
        %v752 = vpack.c.bf16 %v751, %v751
        %753 = vst [vmem:[%s241] sm:$0x3] %v752
        %v754 = vsub.f32 %v394, %v739
        %v755 = vmul.f32 %v754, %v744
        %vm756 = vcmp.ge.f32.partialorder %v755, 0.0
        %v757 = vmul.f32 %v755, %v749
        %v758 = vsel %vm756, %v755, %v757
        %v759 = vpack.c.bf16 %v758, %v758
        %s760 = scalar_lea.vmem %s241, 2 [#allocation9]
        %761 = vst [vmem:[%s760] sm:$0x3] %v759
        %v762 = vsub.f32 %v493, %v739
        %v763 = vmul.f32 %v762, %v744
        %vm764 = vcmp.ge.f32.partialorder %v763, 0.0
        %v765 = vmul.f32 %v763, %v749
        %v766 = vsel %vm764, %v763, %v765
        %v767 = vpack.c.bf16 %v766, %v766
        %s768 = scalar_lea.vmem %s241, 4 [#allocation9]
        %769 = vst [vmem:[%s768] sm:$0x3] %v767
        %v770 = vsub.f32 %v687, %v739
        %v771 = vmul.f32 %v770, %v744
        %vm772 = vcmp.ge.f32.partialorder %v771, 0.0
        %v773 = vmul.f32 %v771, %v749
        %v774 = vsel %vm772, %v771, %v773
        %v775 = vpack.c.bf16 %v774, %v774
        %s776 = scalar_lea.vmem %s241, 6 [#allocation9]
        %777 = vst [vmem:[%s776] sm:$0x3] %v775
        %s778 = sand.u32 %s120, 1
        %s779 = scalar_lea.sflag [#allocation5], %s778
        %s780 = sand.u32 %s120, 1
        %s781 = smul.addr %s780, 8
        %s782 = scalar_lea.vmem [#allocation9], %s781
        // Predicated region
        $region49: #{unet_de_forward.2} parent=35 // pred_check
          %p783 = pneg %p130
        $region50: #{unet_de_forward.2} parent=35 // pred_check_branch
          %785 = sbr.rel (%p783) target = $region52
        $region51: #{unet_de_forward.2} parent=35 // pred_region
          %s787 = ssub.s32 128, 128
          %788 = vsyncadd %s779, %s787
          %s789 = smul.addr %s23, 4
          %s790 = smul.addr %s789, 32
          %s791 = scalar_lea.hbm %s4, %s790
          %s792 = sshll.u32 %s782, 4
          %s793 = int_to_ptr.vmem [resolvable:$true] %s792
          %798 = dma.vmem_to_hbm [thread:$0]  %s793, 128, %s791, %s779, 32, 32, 2
        $region52: #{unet_de_forward.2} parent=35 // pred_fallthru
          _
      $region36: #{unet_de_forward.2} parent=5 // pred_fallthru
        _
      %p799 = scmp.le.s32.totalorder 2, %s18
      // Predicated region
      $region53: #{unet_de_forward.2} parent=5 // pred_check
        %p800 = pneg %p799
      $region54: #{unet_de_forward.2} parent=5 // pred_check_branch
        %802 = sbr.rel (%p800) target = $region56
      $region55: #{unet_de_forward.2} parent=5 // pred_region
        %s803 = ssub.s32 %s18, 2
        // Predicated region
        $region57: #{unet_de_forward.2} parent=55 // pred_check
          %p804 = pneg %p136
        $region58: #{unet_de_forward.2} parent=55 // pred_check_branch
          %806 = sbr.rel (%p804) target = $region60
        $region59: #{unet_de_forward.2} parent=55 // pred_region
          %s807 = sand.u32 %s121, 1
          %s808 = scalar_lea.sflag [#allocation5], %s807
          %s809 = sand.u32 %s121, 1
          %s810 = smul.addr %s809, 8
          %s811 = scalar_lea.vmem [#allocation9], %s810
          %812 = dma.done %s808, 128
        $region60: #{unet_de_forward.2} parent=55 // pred_fallthru
          _
      $region56: #{unet_de_forward.2} parent=5 // pred_fallthru
        _
    $region6: #{unet_de_forward.2} parent=1 // loop_footer
      %s22 = sadd.s32 1, %s18
    $region7: #{unet_de_forward.2} parent=1 // loop_footer_branch
      %17 = sbr.rel target = $region3
    $region8: #{unet_de_forward.2} parent=1 // loop_exit
      _
    %813 = vsyncpa [#allocation4], 1
    %s814 = scalar_lea.sflag [#allocation4], 1
    %815 = vsyncpa %s814, 1
    %816 = vsyncpa [#allocation7], 1
    %817 = vsyncpa [#allocation5], 1
    %s818 = scalar_lea.sflag [#allocation5], 1
    %819 = vsyncpa %s818, 1

// kernel: unet_de_forward.3
$region0: #{unet_de_forward.3}
  #allocation0 [shape = 'u32[]', space=smem, size = 0x4, offset = 0x4, fixed_abs, tag = 'smem constant byte address 0x4 - core index']
  #allocation1 [shape = 'u32[144,128]{1,0:T(1,128)}', space=vmem, size = 0x12000, scoped, tag = 'internal scratch']
  #allocation2 [shape = 'f32[1]{0:T(128)S(6)}', space=smem, size = 0x200, scoped, tag = 'scoped memory for unet_de_forward.3']
  %s0 = inlined_call_operand.hbm [shape: bf16[2,4,512], index: 0, kind: input, shape index: {}]
  %s1 = inlined_call_operand.hbm [shape: bf16[2,4,512], index: 1, kind: input, shape index: {}]
  %s2 = inlined_call_operand.hbm [shape: bf16[9,4,4], index: 2, kind: input, shape index: {}]
  %s3 = inlined_call_operand.hbm [shape: bf16[9,4,4], index: 3, kind: input, shape index: {}]
  %s4 = inlined_call_operand.hbm [shape: f32[1,384], index: 4, kind: input, shape index: {}]
  %s5 = inlined_call_operand.<no memory space> [shape: f32[1], index: 5, kind: input, shape index: {}]
  %s6 = inlined_call_operand.hbm [shape: f32[2,4,384], index: 6, kind: output, shape index: {}]
  %s7 = sld [smem:[#allocation0]]
  $region77: #{unet_de_forward.3} parent=0
    _
  %s9 = ssub.s32 1, %s7
  %s10 = scalar_select 0, %s9, %s7
  %11 = sst [smem:[#allocation2]] %s5
  $region1: #{unet_de_forward.3} parent=0
    #allocation3 [shape = 'u8[8192]{0}', space=vmem, size = 0x2000, scoped, tag = 'input window, operand 0']
    #allocation4 [shape = 's32[2]{0}', space=sflag, size = 0x8, scoped, tag = 'scoped memory for unet_de_forward.3']
    #allocation5 [shape = 's32[2]{0}', space=sflag, size = 0x8, scoped, tag = 'scoped memory for unet_de_forward.3']
    #allocation6 [shape = 'u8[8192]{0}', space=vmem, size = 0x2000, scoped, tag = 'input window, operand 1']
    #allocation7 [shape = 's32[2]{0}', space=sflag, size = 0x8, scoped, tag = 'scoped memory for unet_de_forward.3']
    #allocation8 [shape = 'u8[9216]{0}', space=vmem, size = 0x2400, scoped, tag = 'input window, operand 2, single buffered']
    #allocation9 [shape = 'u8[9216]{0}', space=vmem, size = 0x2400, scoped, tag = 'input window, operand 3, single buffered']
    #allocation10 [shape = 's32[1]{0}', space=sflag, size = 0x4, scoped, tag = 'scoped memory for unet_de_forward.3']
    #allocation11 [shape = 'u8[1536]{0}', space=vmem, size = 0x800, scoped, tag = 'input window, operand 4, single buffered']
    #allocation12 [shape = 'u8[12288]{0}', space=vmem, size = 0x3000, scoped, tag = 'output window, operand 0']
    %12 = vsyncpa [#allocation4], 0
    %s13 = scalar_lea.sflag [#allocation4], 1
    %14 = vsyncpa %s13, 0
    %15 = vsyncpa [#allocation7], 0
    %s16 = scalar_lea.sflag [#allocation7], 1
    %17 = vsyncpa %s16, 0
    %18 = vsyncpa [#allocation10], 0
    %19 = vsyncpa [#allocation5], 0
    %s20 = scalar_lea.sflag [#allocation5], 1
    %21 = vsyncpa %s20, 0
    loop: start=0, step=1, limit=4
    $region2: #{unet_de_forward.3} parent=1 // loop_pre_header
      _
    $region3: #{unet_de_forward.3} parent=1 // loop_header
      %s23 = sphi 0, %s27
      %p24 = scmp.ge.s32.totalorder %s23, 4
      %s33 = sphi 0, %s35
      %s36 = sphi 0, %s33
      %s37 = sphi 0, %s36
      %s53 = sphi 0, %s37
      %s59 = sphi 0, %s61
      %s62 = sphi 0, %s59
      %s63 = sphi 0, %s62
      %s79 = sphi 0, %s63
      %s83 = sphi 0, %s83
      %s85 = sphi 0, %s83
      %s86 = sphi 0, %s85
      %s100 = sphi 0, %s86
      %s104 = sphi 0, %s104
      %s106 = sphi 0, %s104
      %s107 = sphi 0, %s106
      %s121 = sphi 0, %s107
      %s125 = sphi 0, %s125
      %s127 = sphi 0, %s125
      %s128 = sphi 0, %s127
      %s142 = sphi 0, %s128
      %s146 = sphi 0, %s146
      %s148 = sphi 0, %s146
      %s149 = sphi 0, %s148
      %s163 = sphi 0, %s149
      %s169 = sphi 0, %s171
      %s172 = sphi 0, %s169
      %s173 = sphi 0, %s172
      %s189 = sphi 0, %s173
    $region4: #{unet_de_forward.3} parent=1 // loop_header_branch
      %26 = sbr.rel (%p24) target = $region8
    $region5: #{unet_de_forward.3} parent=1 // loop_body
      %s28 = ssub.s32 %s23, 1
      %s29 = ssub.s32 %s23, 2
      %s30 = sadd.s32 %s23, 1
      %s31 = ssub.s32 %s23, %s30
      %p32 = scmp.eq.s32.totalorder %s31, 0
      %s34 = sadd.s32 %s33, 1
      %s35 = scalar_select %p32, %s33, %s34
      %p38 = pneg %p32
      %p39 = scmp.eq.s32.totalorder %s23, 1
      %p40 = por %p38, %p39
      %p41 = scmp.ne.s32.totalorder %s33, %s36
      %p42 = scmp.eq.s32.totalorder %s23, 0
      %p43 = por %p41, %p42
      %p44 = scmp.ne.s32.totalorder %s33, %s36
      %p45 = scmp.eq.s32.totalorder %s28, 1
      %p46 = por %p44, %p45
      %p47 = scmp.ne.s32.totalorder %s36, %s37
      %p48 = scmp.eq.s32.totalorder %s28, 0
      %p49 = por %p47, %p48
      %p50 = scmp.ne.s32.totalorder %s36, %s37
      %p51 = scmp.eq.s32.totalorder %s29, 1
      %p52 = por %p50, %p51
      %p54 = scmp.ne.s32.totalorder %s37, %s53
      %p55 = scmp.eq.s32.totalorder %s29, 0
      %p56 = por %p54, %p55
      %s57 = ssub.s32 %s23, %s30
      %p58 = scmp.eq.s32.totalorder %s57, 0
      %s60 = sadd.s32 %s59, 1
      %s61 = scalar_select %p58, %s59, %s60
      %p64 = pneg %p58
      %p65 = scmp.eq.s32.totalorder %s23, 1
      %p66 = por %p64, %p65
      %p67 = scmp.ne.s32.totalorder %s59, %s62
      %p68 = scmp.eq.s32.totalorder %s23, 0
      %p69 = por %p67, %p68
      %p70 = scmp.ne.s32.totalorder %s59, %s62
      %p71 = scmp.eq.s32.totalorder %s28, 1
      %p72 = por %p70, %p71
      %p73 = scmp.ne.s32.totalorder %s62, %s63
      %p74 = scmp.eq.s32.totalorder %s28, 0
      %p75 = por %p73, %p74
      %p76 = scmp.ne.s32.totalorder %s62, %s63
      %p77 = scmp.eq.s32.totalorder %s29, 1
      %p78 = por %p76, %p77
      %p80 = scmp.ne.s32.totalorder %s63, %s79
      %p81 = scmp.eq.s32.totalorder %s29, 0
      %p82 = por %p80, %p81
      %s84 = sadd.s32 %s83, 1
      %p87 = scmp.eq.s32.totalorder %s23, 1
      %p88 = scmp.ne.s32.totalorder %s83, %s85
      %p89 = scmp.eq.s32.totalorder %s23, 0
      %p90 = por %p88, %p89
      %p91 = scmp.ne.s32.totalorder %s83, %s85
      %p92 = scmp.eq.s32.totalorder %s28, 1
      %p93 = por %p91, %p92
      %p94 = scmp.ne.s32.totalorder %s85, %s86
      %p95 = scmp.eq.s32.totalorder %s28, 0
      %p96 = por %p94, %p95
      %p97 = scmp.ne.s32.totalorder %s85, %s86
      %p98 = scmp.eq.s32.totalorder %s29, 1
      %p99 = por %p97, %p98
      %p101 = scmp.ne.s32.totalorder %s86, %s100
      %p102 = scmp.eq.s32.totalorder %s29, 0
      %p103 = por %p101, %p102
      %s105 = sadd.s32 %s104, 1
      %p108 = scmp.eq.s32.totalorder %s23, 1
      %p109 = scmp.ne.s32.totalorder %s104, %s106
      %p110 = scmp.eq.s32.totalorder %s23, 0
      %p111 = por %p109, %p110
      %p112 = scmp.ne.s32.totalorder %s104, %s106
      %p113 = scmp.eq.s32.totalorder %s28, 1
      %p114 = por %p112, %p113
      %p115 = scmp.ne.s32.totalorder %s106, %s107
      %p116 = scmp.eq.s32.totalorder %s28, 0
      %p117 = por %p115, %p116
      %p118 = scmp.ne.s32.totalorder %s106, %s107
      %p119 = scmp.eq.s32.totalorder %s29, 1
      %p120 = por %p118, %p119
      %p122 = scmp.ne.s32.totalorder %s107, %s121
      %p123 = scmp.eq.s32.totalorder %s29, 0
      %p124 = por %p122, %p123
      %s126 = sadd.s32 %s125, 1
      %p129 = scmp.eq.s32.totalorder %s23, 1
      %p130 = scmp.ne.s32.totalorder %s125, %s127
      %p131 = scmp.eq.s32.totalorder %s23, 0
      %p132 = por %p130, %p131
      %p133 = scmp.ne.s32.totalorder %s125, %s127
      %p134 = scmp.eq.s32.totalorder %s28, 1
      %p135 = por %p133, %p134
      %p136 = scmp.ne.s32.totalorder %s127, %s128
      %p137 = scmp.eq.s32.totalorder %s28, 0
      %p138 = por %p136, %p137
      %p139 = scmp.ne.s32.totalorder %s127, %s128
      %p140 = scmp.eq.s32.totalorder %s29, 1
      %p141 = por %p139, %p140
      %p143 = scmp.ne.s32.totalorder %s128, %s142
      %p144 = scmp.eq.s32.totalorder %s29, 0
      %p145 = por %p143, %p144
      %s147 = sadd.s32 %s146, 1
      %p150 = scmp.eq.s32.totalorder %s23, 1
      %p151 = scmp.ne.s32.totalorder %s146, %s148
      %p152 = scmp.eq.s32.totalorder %s23, 0
      %p153 = por %p151, %p152
      %p154 = scmp.ne.s32.totalorder %s146, %s148
      %p155 = scmp.eq.s32.totalorder %s28, 1
      %p156 = por %p154, %p155
      %p157 = scmp.ne.s32.totalorder %s148, %s149
      %p158 = scmp.eq.s32.totalorder %s28, 0
      %p159 = por %p157, %p158
      %p160 = scmp.ne.s32.totalorder %s148, %s149
      %p161 = scmp.eq.s32.totalorder %s29, 1
      %p162 = por %p160, %p161
      %p164 = scmp.ne.s32.totalorder %s149, %s163
      %p165 = scmp.eq.s32.totalorder %s29, 0
      %p166 = por %p164, %p165
      %s167 = ssub.s32 %s23, %s30
      %p168 = scmp.eq.s32.totalorder %s167, 0
      %s170 = sadd.s32 %s169, 1
      %s171 = scalar_select %p168, %s169, %s170
      %p174 = pneg %p168
      %p175 = scmp.eq.s32.totalorder %s23, 1
      %p176 = por %p174, %p175
      %p177 = scmp.ne.s32.totalorder %s169, %s172
      %p178 = scmp.eq.s32.totalorder %s23, 0
      %p179 = por %p177, %p178
      %p180 = scmp.ne.s32.totalorder %s169, %s172
      %p181 = scmp.eq.s32.totalorder %s28, 1
      %p182 = por %p180, %p181
      %p183 = scmp.ne.s32.totalorder %s172, %s173
      %p184 = scmp.eq.s32.totalorder %s28, 0
      %p185 = por %p183, %p184
      %p186 = scmp.ne.s32.totalorder %s172, %s173
      %p187 = scmp.eq.s32.totalorder %s29, 1
      %p188 = por %p186, %p187
      %p190 = scmp.ne.s32.totalorder %s173, %s189
      %p191 = scmp.eq.s32.totalorder %s29, 0
      %p192 = por %p190, %p191
      %p193 = scmp.le.s32.totalorder 1, %s23
      %p194 = scmp.lt.s32.totalorder %s23, 3
      %p195 = pnand %p193, %p194
      %p196 = pneg %p195
      // Predicated region
      $region9: #{unet_de_forward.3} parent=5 // pred_check
        _
      $region10: #{unet_de_forward.3} parent=5 // pred_check_branch
        %198 = sbr.rel (%p195) target = $region12
      $region11: #{unet_de_forward.3} parent=5 // pred_region
        %s199 = ssub.s32 %s23, 1
        // Predicated region
        $region13: #{unet_de_forward.3} parent=11 // pred_check
          %p200 = pneg %p96
        $region14: #{unet_de_forward.3} parent=11 // pred_check_branch
          %202 = sbr.rel (%p200) target = $region16
        $region15: #{unet_de_forward.3} parent=11 // pred_region
          %s204 = ssub.s32 288, 288
          %205 = vsyncadd [#allocation7], %s204
          %s206 = sshll.u32 [#allocation8], 4
          %s207 = int_to_ptr.vmem [resolvable:$true] %s206
          %212 = dma.hbm_to_vmem [thread:$0]  %s2, 288, %s207, [#allocation7], 32, 32, 2
        $region16: #{unet_de_forward.3} parent=11 // pred_fallthru
          _
        // Predicated region
        $region17: #{unet_de_forward.3} parent=11 // pred_check
          %p213 = pneg %p117
        $region18: #{unet_de_forward.3} parent=11 // pred_check_branch
          %215 = sbr.rel (%p213) target = $region20
        $region19: #{unet_de_forward.3} parent=11 // pred_region
          %s217 = ssub.s32 288, 288
          %218 = vsyncadd [#allocation10], %s217
          %s219 = sshll.u32 [#allocation9], 4
          %s220 = int_to_ptr.vmem [resolvable:$true] %s219
          %225 = dma.hbm_to_vmem [thread:$0]  %s3, 288, %s220, [#allocation10], 32, 32, 2
        $region20: #{unet_de_forward.3} parent=11 // pred_fallthru
          _
        // Predicated region
        $region21: #{unet_de_forward.3} parent=11 // pred_check
          %p226 = pneg %p138
        $region22: #{unet_de_forward.3} parent=11 // pred_check_branch
          %228 = sbr.rel (%p226) target = $region24
        $region23: #{unet_de_forward.3} parent=11 // pred_region
          %s230 = ssub.s32 48, 48
          %231 = vsyncadd [#allocation10], %s230
          %s233 = sshll.u32 [#allocation11], 4
          %s234 = int_to_ptr.vmem [resolvable:$true] %s233
          %236 = dma.hbm_to_vmem [thread:$0]  %s4, 48, %s234, [#allocation10]
        $region24: #{unet_de_forward.3} parent=11 // pred_fallthru
          _
        // Predicated region
        $region25: #{unet_de_forward.3} parent=11 // pred_check
          %p237 = pneg %p159
        $region26: #{unet_de_forward.3} parent=11 // pred_check_branch
          %239 = sbr.rel (%p237) target = $region28
        $region27: #{unet_de_forward.3} parent=11 // pred_region
          _
        $region28: #{unet_de_forward.3} parent=11 // pred_fallthru
          _
      $region12: #{unet_de_forward.3} parent=5 // pred_fallthru
        _
      %p240 = scmp.lt.s32.totalorder %s23, 2
      // Predicated region
      $region29: #{unet_de_forward.3} parent=5 // pred_check
        %p241 = pneg %p240
      $region30: #{unet_de_forward.3} parent=5 // pred_check_branch
        %243 = sbr.rel (%p241) target = $region32
      $region31: #{unet_de_forward.3} parent=5 // pred_region
        // Predicated region
        $region33: #{unet_de_forward.3} parent=31 // pred_check
          %p244 = pneg %p43
        $region34: #{unet_de_forward.3} parent=31 // pred_check_branch
          %246 = sbr.rel (%p244) target = $region36
        $region35: #{unet_de_forward.3} parent=31 // pred_region
          %s247 = sand.u32 %s33, 1
          %s248 = scalar_lea.sflag [#allocation4], %s247
          %s249 = sand.u32 %s33, 1
          %s250 = smul.addr %s249, 8
          %s251 = scalar_lea.vmem [#allocation3], %s250
          %s253 = ssub.s32 128, 128
          %254 = vsyncadd %s248, %s253
          %s255 = smul.addr %s23, 4
          %s256 = smul.addr %s255, 32
          %s257 = scalar_lea.hbm %s0, %s256
          %s259 = sshll.u32 %s251, 4
          %s260 = int_to_ptr.vmem [resolvable:$true] %s259
          %262 = dma.hbm_to_vmem [thread:$0]  %s257, 128, %s260, %s248
        $region36: #{unet_de_forward.3} parent=31 // pred_fallthru
          _
        // Predicated region
        $region37: #{unet_de_forward.3} parent=31 // pred_check
          %p263 = pneg %p69
        $region38: #{unet_de_forward.3} parent=31 // pred_check_branch
          %265 = sbr.rel (%p263) target = $region40
        $region39: #{unet_de_forward.3} parent=31 // pred_region
          %s266 = sand.u32 %s23, 1
          %s267 = scalar_lea.sflag [#allocation7], %s266
          %s268 = sand.u32 %s59, 1
          %s269 = smul.addr %s268, 8
          %s270 = scalar_lea.vmem [#allocation6], %s269
          %s272 = ssub.s32 128, 128
          %273 = vsyncadd %s267, %s272
          %s274 = smul.addr %s23, 4
          %s275 = smul.addr %s274, 32
          %s276 = scalar_lea.hbm %s1, %s275
          %s278 = sshll.u32 %s270, 4
          %s279 = int_to_ptr.vmem [resolvable:$true] %s278
          %281 = dma.hbm_to_vmem [thread:$0]  %s276, 128, %s279, %s267
        $region40: #{unet_de_forward.3} parent=31 // pred_fallthru
          _
      $region32: #{unet_de_forward.3} parent=5 // pred_fallthru
        _
      %p282 = scmp.le.s32.totalorder 1, %s23
      %p283 = scmp.lt.s32.totalorder %s23, 3
      %p284 = pnand %p282, %p283
      %p285 = pneg %p284
      // Predicated region
      $region41: #{unet_de_forward.3} parent=5 // pred_check
        _
      $region42: #{unet_de_forward.3} parent=5 // pred_check_branch
        %287 = sbr.rel (%p284) target = $region44
      $region43: #{unet_de_forward.3} parent=5 // pred_region
        %s288 = ssub.s32 %s23, 1
        %s289 = sand.u32 %s36, 1
        %s290 = scalar_lea.sflag [#allocation4], %s289
        %s291 = sand.u32 %s36, 1
        %s292 = smul.addr %s291, 8
        %s293 = scalar_lea.vmem [#allocation3], %s292
        // Predicated region
        $region45: #{unet_de_forward.3} parent=43 // pred_check
          %p294 = pneg %p49
        $region46: #{unet_de_forward.3} parent=43 // pred_check_branch
          %296 = sbr.rel (%p294) target = $region48
        $region47: #{unet_de_forward.3} parent=43 // pred_region
          %297 = dma.done %s290, 128
        $region48: #{unet_de_forward.3} parent=43 // pred_fallthru
          _
        %s298 = sand.u32 %s28, 1
        %s299 = scalar_lea.sflag [#allocation7], %s298
        %s300 = sand.u32 %s62, 1
        %s301 = smul.addr %s300, 8
        %s302 = scalar_lea.vmem [#allocation6], %s301
        // Predicated region
        $region49: #{unet_de_forward.3} parent=43 // pred_check
          %p303 = pneg %p75
        $region50: #{unet_de_forward.3} parent=43 // pred_check_branch
          %305 = sbr.rel (%p303) target = $region52
        $region51: #{unet_de_forward.3} parent=43 // pred_region
          %306 = dma.done %s299, 128
        $region52: #{unet_de_forward.3} parent=43 // pred_fallthru
          _
        // Predicated region
        $region53: #{unet_de_forward.3} parent=43 // pred_check
          %p307 = pneg %p96
        $region54: #{unet_de_forward.3} parent=43 // pred_check_branch
          %309 = sbr.rel (%p307) target = $region56
        $region55: #{unet_de_forward.3} parent=43 // pred_region
          %310 = dma.done [#allocation7], 288
        $region56: #{unet_de_forward.3} parent=43 // pred_fallthru
          _
        // Predicated region
        $region57: #{unet_de_forward.3} parent=43 // pred_check
          %p311 = pneg %p117
        $region58: #{unet_de_forward.3} parent=43 // pred_check_branch
          %313 = sbr.rel (%p311) target = $region60
        $region59: #{unet_de_forward.3} parent=43 // pred_region
          %314 = dma.done [#allocation10], 288
        $region60: #{unet_de_forward.3} parent=43 // pred_fallthru
          _
        // Predicated region
        $region61: #{unet_de_forward.3} parent=43 // pred_check
          %p315 = pneg %p138
        $region62: #{unet_de_forward.3} parent=43 // pred_check_branch
          %317 = sbr.rel (%p315) target = $region64
        $region63: #{unet_de_forward.3} parent=43 // pred_region
          %318 = dma.done [#allocation10], 48
        $region64: #{unet_de_forward.3} parent=43 // pred_fallthru
          _
        %s319 = sand.u32 %s36, 1
        %s320 = scalar_lea.sflag [#allocation4], %s319
        %s321 = sand.u32 %s36, 1
        %s322 = smul.addr %s321, 8
        %s323 = scalar_lea.vmem [#allocation3], %s322
        %p324 = pneg %p49
        %p325 = pneg %p46
        %s326 = sand.u32 %s28, 1
        %s327 = scalar_lea.sflag [#allocation7], %s326
        %s328 = sand.u32 %s62, 1
        %s329 = smul.addr %s328, 8
        %s330 = scalar_lea.vmem [#allocation6], %s329
        %p331 = pneg %p75
        %p332 = pneg %p72
        %p333 = pneg %p96
        %p334 = pneg %p93
        %p335 = pneg %p117
        %p336 = pneg %p114
        %p337 = pneg %p138
        %p338 = pneg %p135
        %p339 = pneg %p159
        %p340 = pneg %p156
        %p341 = pneg %p185
        %p342 = pneg %p182
        %s343 = sand.u32 %s172, 1
        %s344 = scalar_lea.sflag [#allocation5], %s343
        %s345 = sand.u32 %s172, 1
        %s346 = smul.addr %s345, 12
        %s347 = scalar_lea.vmem [#allocation12], %s346
        %v349 = vld [vmem:[#allocation8] sm:$0x3]
        %v350 = vld [vmem:[%s293] sm:$0x3f]
        %v351 = vld [vmem:[#allocation9] sm:$0x3]
        %v352 = vld [vmem:[%s302] sm:$0x3f]
        %v354 = vcombine.high %v352, %v352
        %v356 = vunpack.c.l.s4 1983009808
        %v357 = vunpack.c.0.s8 %v356
        %v358 = vlaneseq
        %v359 = vshrl.u32 %v358, 7
        %v360 = vsub.s32 %v357, %v359
        %v361 = vrot.slane %v352, %v360
        %v363 = vunpack.c.l.s4 1983009808
        %v364 = vunpack.c.0.s8 %v363
        %v365 = vlaneseq
        %v366 = vshrl.u32 %v365, 7
        %v367 = vsub.s32 %v364, %v366
        %v368 = vrot.slane %v354, %v367
        %v369 = vcombine.high %v361, %v361
        %vm370 = vcmask 31744
        %v372 = vsel %vm370, %v351, 0
        %vm374 = vcmask 1041408
        %v376 = vsel %vm374, %v361, 0
        %v379 = vsel %vm374, %v369, 0
        %v382 = vsel %vm374, %v368, 0
        %384 = vmatprep.subr.bf16.mxu0 %v379
        %385 = vmatpush1.bf16.msra.mxu0 %v376
        %386 = vmatprep.subr.bf16.mxu0 0
        %387 = vmatpush1.bf16.msra.mxu0 0
        %388 = vmatprep.subr.bf16.mxu0 0
        %389 = vmatpush1.bf16.msra.mxu0 0
        %390 = vmatprep.subr.bf16.mxu0 0
        %391 = vmatpush1.bf16.msra.mxu0 0
        %392 = vmatprep.subr.bf16.mxu0 0
        %393 = vmatpush1.bf16.msra.mxu0 0
        %394 = vmatprep.subr.bf16.mxu0 0
        %395 = vmatpush1.bf16.msra.mxu0 0
        %396 = vmatprep.subr.bf16.mxu0 0
        %397 = vmatpush1.bf16.msra.mxu0 0
        %398 = vmatprep.subr.bf16.mxu0 0
        %399 = vmatpush1.bf16.msra.mxu0 0
        %400 = vmatprep.subr.bf16.mxu0 0
        %401 = vmatpush1.bf16.msra.mxu0 0
        %402 = vmatprep.subr.bf16.mxu0 0
        %403 = vmatpush1.bf16.msra.mxu0 0
        %404 = vmatprep.subr.bf16.mxu0 0
        %405 = vmatpush1.bf16.msra.mxu0 0
        %406 = vmatprep.subr.bf16.mxu0 0
        %407 = vmatpush1.bf16.msra.mxu0 0
        %408 = vmatprep.subr.bf16.mxu0 0
        %409 = vmatpush1.bf16.msra.mxu0 0
        %410 = vmatprep.subr.bf16.mxu0 0
        %411 = vmatpush1.bf16.msra.mxu0 0
        %412 = vmatprep.subr.bf16.mxu0 0
        %413 = vmatpush1.bf16.msra.mxu0 0
        %414 = vmatprep.subr.bf16.mxu0 0
        %415 = vmatpush1.bf16.msra.mxu0 0
        %416 = vmatprep.mubr.bf16.mxu0 0
        %417 = vmatmul.mubr.bf16.gmra.mrb[0].mxu0 %v372
        %v418 = vpop.f32.mrb[0].mxu0
        %v419 = vadd.f32 0.0, %v418
        %v420 = vpop.f32.mrb[0].mxu0
        %v421 = vadd.f32 0.0, %v420
        %v422 = vpop.f32.mrb[0].mxu0
        %v423 = vpop.f32.mrb[0].mxu0
        %424 = vdwg.mxu0
        %425 = vmatprep.subr.bf16.mxu0 0
        %426 = vmatpush1.bf16.msra.mxu0 %v382
        %427 = vmatprep.subr.bf16.mxu0 0
        %428 = vmatpush1.bf16.msra.mxu0 0
        %429 = vmatprep.subr.bf16.mxu0 0
        %430 = vmatpush1.bf16.msra.mxu0 0
        %431 = vmatprep.subr.bf16.mxu0 0
        %432 = vmatpush1.bf16.msra.mxu0 0
        %433 = vmatprep.subr.bf16.mxu0 0
        %434 = vmatpush1.bf16.msra.mxu0 0
        %435 = vmatprep.subr.bf16.mxu0 0
        %436 = vmatpush1.bf16.msra.mxu0 0
        %437 = vmatprep.subr.bf16.mxu0 0
        %438 = vmatpush1.bf16.msra.mxu0 0
        %439 = vmatprep.subr.bf16.mxu0 0
        %440 = vmatpush1.bf16.msra.mxu0 0
        %441 = vmatprep.subr.bf16.mxu0 0
        %442 = vmatpush1.bf16.msra.mxu0 0
        %443 = vmatprep.subr.bf16.mxu0 0
        %444 = vmatpush1.bf16.msra.mxu0 0
        %445 = vmatprep.subr.bf16.mxu0 0
        %446 = vmatpush1.bf16.msra.mxu0 0
        %447 = vmatprep.subr.bf16.mxu0 0
        %448 = vmatpush1.bf16.msra.mxu0 0
        %449 = vmatprep.subr.bf16.mxu0 0
        %450 = vmatpush1.bf16.msra.mxu0 0
        %451 = vmatprep.subr.bf16.mxu0 0
        %452 = vmatpush1.bf16.msra.mxu0 0
        %453 = vmatprep.subr.bf16.mxu0 0
        %454 = vmatpush1.bf16.msra.mxu0 0
        %455 = vmatprep.subr.bf16.mxu0 0
        %456 = vmatpush1.bf16.msra.mxu0 0
        %457 = vmatprep.mubr.bf16.mxu0 0
        %458 = vmatmul.mubr.bf16.gmra.mrb[0].mxu0 %v372
        %v459 = vpop.f32.mrb[0].mxu0
        %v460 = vadd.f32 0.0, %v459
        %v461 = vpop.f32.mrb[0].mxu0
        %v462 = vpop.f32.mrb[0].mxu0
        %v463 = vpop.f32.mrb[0].mxu0
        %464 = vdwg.mxu0
        %v466 = vcombine.high %v350, %v350
        %v468 = vunpack.c.l.s4 1983009808
        %v469 = vunpack.c.0.s8 %v468
        %v470 = vlaneseq
        %v471 = vshrl.u32 %v470, 7
        %v472 = vsub.s32 %v469, %v471
        %v473 = vrot.slane %v350, %v472
        %v475 = vunpack.c.l.s4 1983009808
        %v476 = vunpack.c.0.s8 %v475
        %v477 = vlaneseq
        %v478 = vshrl.u32 %v477, 7
        %v479 = vsub.s32 %v476, %v478
        %v480 = vrot.slane %v466, %v479
        %v481 = vcombine.high %v473, %v473
        %v483 = vsel %vm370, %v349, 0
        %v486 = vsel %vm374, %v473, 0
        %v489 = vsel %vm374, %v481, 0
        %v492 = vsel %vm374, %v480, 0
        %494 = vmatprep.subr.bf16.mxu0 %v489
        %495 = vmatpush1.bf16.msra.mxu0 %v486
        %496 = vmatprep.subr.bf16.mxu0 0
        %497 = vmatpush1.bf16.msra.mxu0 0
        %498 = vmatprep.subr.bf16.mxu0 0
        %499 = vmatpush1.bf16.msra.mxu0 0
        %500 = vmatprep.subr.bf16.mxu0 0
        %501 = vmatpush1.bf16.msra.mxu0 0
        %502 = vmatprep.subr.bf16.mxu0 0
        %503 = vmatpush1.bf16.msra.mxu0 0
        %504 = vmatprep.subr.bf16.mxu0 0
        %505 = vmatpush1.bf16.msra.mxu0 0
        %506 = vmatprep.subr.bf16.mxu0 0
        %507 = vmatpush1.bf16.msra.mxu0 0
        %508 = vmatprep.subr.bf16.mxu0 0
        %509 = vmatpush1.bf16.msra.mxu0 0
        %510 = vmatprep.subr.bf16.mxu0 0
        %511 = vmatpush1.bf16.msra.mxu0 0
        %512 = vmatprep.subr.bf16.mxu0 0
        %513 = vmatpush1.bf16.msra.mxu0 0
        %514 = vmatprep.subr.bf16.mxu0 0
        %515 = vmatpush1.bf16.msra.mxu0 0
        %516 = vmatprep.subr.bf16.mxu0 0
        %517 = vmatpush1.bf16.msra.mxu0 0
        %518 = vmatprep.subr.bf16.mxu0 0
        %519 = vmatpush1.bf16.msra.mxu0 0
        %520 = vmatprep.subr.bf16.mxu0 0
        %521 = vmatpush1.bf16.msra.mxu0 0
        %522 = vmatprep.subr.bf16.mxu0 0
        %523 = vmatpush1.bf16.msra.mxu0 0
        %524 = vmatprep.subr.bf16.mxu0 0
        %525 = vmatpush1.bf16.msra.mxu0 0
        %526 = vmatprep.mubr.bf16.mxu0 0
        %527 = vmatmul.mubr.bf16.gmra.mrb[0].mxu0 %v483
        %v528 = vpop.f32.mrb[0].mxu0
        %v529 = vadd.f32 %v419, %v528
        %v530 = vpop.f32.mrb[0].mxu0
        %v531 = vadd.f32 %v421, %v530
        %v532 = vpop.f32.mrb[0].mxu0
        %v533 = vpop.f32.mrb[0].mxu0
        %534 = vdwg.mxu0
        %535 = vmatprep.subr.bf16.mxu0 0
        %536 = vmatpush1.bf16.msra.mxu0 %v492
        %537 = vmatprep.subr.bf16.mxu0 0
        %538 = vmatpush1.bf16.msra.mxu0 0
        %539 = vmatprep.subr.bf16.mxu0 0
        %540 = vmatpush1.bf16.msra.mxu0 0
        %541 = vmatprep.subr.bf16.mxu0 0
        %542 = vmatpush1.bf16.msra.mxu0 0
        %543 = vmatprep.subr.bf16.mxu0 0
        %544 = vmatpush1.bf16.msra.mxu0 0
        %545 = vmatprep.subr.bf16.mxu0 0
        %546 = vmatpush1.bf16.msra.mxu0 0
        %547 = vmatprep.subr.bf16.mxu0 0
        %548 = vmatpush1.bf16.msra.mxu0 0
        %549 = vmatprep.subr.bf16.mxu0 0
        %550 = vmatpush1.bf16.msra.mxu0 0
        %551 = vmatprep.subr.bf16.mxu0 0
        %552 = vmatpush1.bf16.msra.mxu0 0
        %553 = vmatprep.subr.bf16.mxu0 0
        %554 = vmatpush1.bf16.msra.mxu0 0
        %555 = vmatprep.subr.bf16.mxu0 0
        %556 = vmatpush1.bf16.msra.mxu0 0
        %557 = vmatprep.subr.bf16.mxu0 0
        %558 = vmatpush1.bf16.msra.mxu0 0
        %559 = vmatprep.subr.bf16.mxu0 0
        %560 = vmatpush1.bf16.msra.mxu0 0
        %561 = vmatprep.subr.bf16.mxu0 0
        %562 = vmatpush1.bf16.msra.mxu0 0
        %563 = vmatprep.subr.bf16.mxu0 0
        %564 = vmatpush1.bf16.msra.mxu0 0
        %565 = vmatprep.subr.bf16.mxu0 0
        %566 = vmatpush1.bf16.msra.mxu0 0
        %567 = vmatprep.mubr.bf16.mxu0 0
        %568 = vmatmul.mubr.bf16.gmra.mrb[0].mxu0 %v483
        %v569 = vpop.f32.mrb[0].mxu0
        %v570 = vadd.f32 %v460, %v569
        %v571 = vpop.f32.mrb[0].mxu0
        %v572 = vpop.f32.mrb[0].mxu0
        %v573 = vpop.f32.mrb[0].mxu0
        %574 = vdwg.mxu0
        %s575 = scalar_lea.vmem [#allocation8], 2
        %v576 = vld [vmem:[%s575] sm:$0x3]
        %v577 = vld [vmem:[%s293] sm:$0xff]
        %v579 = vcombine.high %v577, %v577
        %v581 = vunpack.c.l.s4 1983009808
        %v582 = vunpack.c.0.s8 %v581
        %v583 = vlaneseq
        %v584 = vshrl.u32 %v583, 7
        %v585 = vsub.s32 %v582, %v584
        %v586 = vrot.slane %v577, %v585
        %v588 = vunpack.c.l.s4 1983009808
        %v589 = vunpack.c.0.s8 %v588
        %v590 = vlaneseq
        %v591 = vshrl.u32 %v590, 7
        %v592 = vsub.s32 %v589, %v591
        %v593 = vrot.slane %v579, %v592
        %v594 = vcombine.high %v586, %v586
        %v595 = vcombine.high %v593, %v593
        %596 = vrot.lane.b32.xlu0 %v586, 127
        %v597 = vpop.permute.xlu0 %596
        %598 = vrot.lane.b32.xlu0 %v594, 127
        %v599 = vpop.permute.xlu0 %598
        %600 = vrot.lane.b32.xlu0 %v593, 127
        %v601 = vpop.permute.xlu0 %600
        %602 = vrot.lane.b32.xlu0 %v595, 127
        %v603 = vpop.permute.xlu0 %602
        %vm604 = vcmask 1039360
        %v605 = vsel %vm604, %v597, %v599
        %v606 = vsel %vm604, %v599, %v601
        %v607 = vsel %vm604, %v601, %v603
        %v609 = vsel %vm370, %v576, 0
        %v612 = vsel %vm374, %v605, 0
        %v615 = vsel %vm374, %v606, 0
        %v618 = vsel %vm374, %v607, 0
        %620 = vmatprep.subr.bf16.mxu0 %v615
        %621 = vmatpush1.bf16.msra.mxu0 %v612
        %622 = vmatprep.subr.bf16.mxu0 0
        %623 = vmatpush1.bf16.msra.mxu0 0
        %624 = vmatprep.subr.bf16.mxu0 0
        %625 = vmatpush1.bf16.msra.mxu0 0
        %626 = vmatprep.subr.bf16.mxu0 0
        %627 = vmatpush1.bf16.msra.mxu0 0
        %628 = vmatprep.subr.bf16.mxu0 0
        %629 = vmatpush1.bf16.msra.mxu0 0
        %630 = vmatprep.subr.bf16.mxu0 0
        %631 = vmatpush1.bf16.msra.mxu0 0
        %632 = vmatprep.subr.bf16.mxu0 0
        %633 = vmatpush1.bf16.msra.mxu0 0
        %634 = vmatprep.subr.bf16.mxu0 0
        %635 = vmatpush1.bf16.msra.mxu0 0
        %636 = vmatprep.subr.bf16.mxu0 0
        %637 = vmatpush1.bf16.msra.mxu0 0
        %638 = vmatprep.subr.bf16.mxu0 0
        %639 = vmatpush1.bf16.msra.mxu0 0
        %640 = vmatprep.subr.bf16.mxu0 0
        %641 = vmatpush1.bf16.msra.mxu0 0
        %642 = vmatprep.subr.bf16.mxu0 0
        %643 = vmatpush1.bf16.msra.mxu0 0
        %644 = vmatprep.subr.bf16.mxu0 0
        %645 = vmatpush1.bf16.msra.mxu0 0
        %646 = vmatprep.subr.bf16.mxu0 0
        %647 = vmatpush1.bf16.msra.mxu0 0
        %648 = vmatprep.subr.bf16.mxu0 0
        %649 = vmatpush1.bf16.msra.mxu0 0
        %650 = vmatprep.subr.bf16.mxu0 0
        %651 = vmatpush1.bf16.msra.mxu0 0
        %652 = vmatprep.mubr.bf16.mxu0 0
        %653 = vmatmul.mubr.bf16.gmra.mrb[0].mxu0 %v609
        %v654 = vpop.f32.mrb[0].mxu0
        %v655 = vadd.f32 0.0, %v654
        %v656 = vpop.f32.mrb[0].mxu0
        %v657 = vadd.f32 0.0, %v656
        %v658 = vpop.f32.mrb[0].mxu0
        %v659 = vpop.f32.mrb[0].mxu0
        %660 = vdwg.mxu0
        %661 = vmatprep.subr.bf16.mxu0 0
        %662 = vmatpush1.bf16.msra.mxu0 %v618
        %663 = vmatprep.subr.bf16.mxu0 0
        %664 = vmatpush1.bf16.msra.mxu0 0
        %665 = vmatprep.subr.bf16.mxu0 0
        %666 = vmatpush1.bf16.msra.mxu0 0
        %667 = vmatprep.subr.bf16.mxu0 0
        %668 = vmatpush1.bf16.msra.mxu0 0
        %669 = vmatprep.subr.bf16.mxu0 0
        %670 = vmatpush1.bf16.msra.mxu0 0
        %671 = vmatprep.subr.bf16.mxu0 0
        %672 = vmatpush1.bf16.msra.mxu0 0
        %673 = vmatprep.subr.bf16.mxu0 0
        %674 = vmatpush1.bf16.msra.mxu0 0
        %675 = vmatprep.subr.bf16.mxu0 0
        %676 = vmatpush1.bf16.msra.mxu0 0
        %677 = vmatprep.subr.bf16.mxu0 0
        %678 = vmatpush1.bf16.msra.mxu0 0
        %679 = vmatprep.subr.bf16.mxu0 0
        %680 = vmatpush1.bf16.msra.mxu0 0
        %681 = vmatprep.subr.bf16.mxu0 0
        %682 = vmatpush1.bf16.msra.mxu0 0
        %683 = vmatprep.subr.bf16.mxu0 0
        %684 = vmatpush1.bf16.msra.mxu0 0
        %685 = vmatprep.subr.bf16.mxu0 0
        %686 = vmatpush1.bf16.msra.mxu0 0
        %687 = vmatprep.subr.bf16.mxu0 0
        %688 = vmatpush1.bf16.msra.mxu0 0
        %689 = vmatprep.subr.bf16.mxu0 0
        %690 = vmatpush1.bf16.msra.mxu0 0
        %691 = vmatprep.subr.bf16.mxu0 0
        %692 = vmatpush1.bf16.msra.mxu0 0
        %693 = vmatprep.mubr.bf16.mxu0 0
        %694 = vmatmul.mubr.bf16.gmra.mrb[0].mxu0 %v609
        %v695 = vpop.f32.mrb[0].mxu0
        %v696 = vadd.f32 0.0, %v695
        %v697 = vpop.f32.mrb[0].mxu0
        %v698 = vpop.f32.mrb[0].mxu0
        %v699 = vpop.f32.mrb[0].mxu0
        %700 = vdwg.mxu0
        %v701 = vadd.f32 %v529, %v655
        %v702 = vadd.f32 %v531, %v657
        %v703 = vadd.f32 %v570, %v696
        %s704 = scalar_lea.vmem [#allocation9], 2
        %v705 = vld [vmem:[%s704] sm:$0x3]
        %v706 = vld [vmem:[%s302] sm:$0xff]
        %v708 = vcombine.high %v706, %v706
        %v710 = vunpack.c.l.s4 1983009808
        %v711 = vunpack.c.0.s8 %v710
        %v712 = vlaneseq
        %v713 = vshrl.u32 %v712, 7
        %v714 = vsub.s32 %v711, %v713
        %v715 = vrot.slane %v706, %v714
        %v717 = vunpack.c.l.s4 1983009808
        %v718 = vunpack.c.0.s8 %v717
        %v719 = vlaneseq
        %v720 = vshrl.u32 %v719, 7
        %v721 = vsub.s32 %v718, %v720
        %v722 = vrot.slane %v708, %v721
        %v723 = vcombine.high %v715, %v715
        %v724 = vcombine.high %v722, %v722
        %725 = vrot.lane.b32.xlu0 %v715, 127
        %v726 = vpop.permute.xlu0 %725
        %727 = vrot.lane.b32.xlu0 %v723, 127
        %v728 = vpop.permute.xlu0 %727
        %729 = vrot.lane.b32.xlu0 %v722, 127
        %v730 = vpop.permute.xlu0 %729
        %731 = vrot.lane.b32.xlu0 %v724, 127
        %v732 = vpop.permute.xlu0 %731
        %v733 = vsel %vm604, %v726, %v728
        %v734 = vsel %vm604, %v728, %v730
        %v735 = vsel %vm604, %v730, %v732
        %v737 = vsel %vm370, %v705, 0
        %v740 = vsel %vm374, %v733, 0
        %v743 = vsel %vm374, %v734, 0
        %v746 = vsel %vm374, %v735, 0
        %748 = vmatprep.subr.bf16.mxu0 %v743
        %749 = vmatpush1.bf16.msra.mxu0 %v740
        %750 = vmatprep.subr.bf16.mxu0 0
        %751 = vmatpush1.bf16.msra.mxu0 0
        %752 = vmatprep.subr.bf16.mxu0 0
        %753 = vmatpush1.bf16.msra.mxu0 0
        %754 = vmatprep.subr.bf16.mxu0 0
        %755 = vmatpush1.bf16.msra.mxu0 0
        %756 = vmatprep.subr.bf16.mxu0 0
        %757 = vmatpush1.bf16.msra.mxu0 0
        %758 = vmatprep.subr.bf16.mxu0 0
        %759 = vmatpush1.bf16.msra.mxu0 0
        %760 = vmatprep.subr.bf16.mxu0 0
        %761 = vmatpush1.bf16.msra.mxu0 0
        %762 = vmatprep.subr.bf16.mxu0 0
        %763 = vmatpush1.bf16.msra.mxu0 0
        %764 = vmatprep.subr.bf16.mxu0 0
        %765 = vmatpush1.bf16.msra.mxu0 0
        %766 = vmatprep.subr.bf16.mxu0 0
        %767 = vmatpush1.bf16.msra.mxu0 0
        %768 = vmatprep.subr.bf16.mxu0 0
        %769 = vmatpush1.bf16.msra.mxu0 0
        %770 = vmatprep.subr.bf16.mxu0 0
        %771 = vmatpush1.bf16.msra.mxu0 0
        %772 = vmatprep.subr.bf16.mxu0 0
        %773 = vmatpush1.bf16.msra.mxu0 0
        %774 = vmatprep.subr.bf16.mxu0 0
        %775 = vmatpush1.bf16.msra.mxu0 0
        %776 = vmatprep.subr.bf16.mxu0 0
        %777 = vmatpush1.bf16.msra.mxu0 0
        %778 = vmatprep.subr.bf16.mxu0 0
        %779 = vmatpush1.bf16.msra.mxu0 0
        %780 = vmatprep.mubr.bf16.mxu0 0
        %781 = vmatmul.mubr.bf16.gmra.mrb[0].mxu0 %v737
        %v782 = vpop.f32.mrb[0].mxu0
        %v783 = vadd.f32 0.0, %v782
        %v784 = vpop.f32.mrb[0].mxu0
        %v785 = vadd.f32 0.0, %v784
        %v786 = vpop.f32.mrb[0].mxu0
        %v787 = vpop.f32.mrb[0].mxu0
        %788 = vdwg.mxu0
        %789 = vmatprep.subr.bf16.mxu0 0
        %790 = vmatpush1.bf16.msra.mxu0 %v746
        %791 = vmatprep.subr.bf16.mxu0 0
        %792 = vmatpush1.bf16.msra.mxu0 0
        %793 = vmatprep.subr.bf16.mxu0 0
        %794 = vmatpush1.bf16.msra.mxu0 0
        %795 = vmatprep.subr.bf16.mxu0 0
        %796 = vmatpush1.bf16.msra.mxu0 0
        %797 = vmatprep.subr.bf16.mxu0 0
        %798 = vmatpush1.bf16.msra.mxu0 0
        %799 = vmatprep.subr.bf16.mxu0 0
        %800 = vmatpush1.bf16.msra.mxu0 0
        %801 = vmatprep.subr.bf16.mxu0 0
        %802 = vmatpush1.bf16.msra.mxu0 0
        %803 = vmatprep.subr.bf16.mxu0 0
        %804 = vmatpush1.bf16.msra.mxu0 0
        %805 = vmatprep.subr.bf16.mxu0 0
        %806 = vmatpush1.bf16.msra.mxu0 0
        %807 = vmatprep.subr.bf16.mxu0 0
        %808 = vmatpush1.bf16.msra.mxu0 0
        %809 = vmatprep.subr.bf16.mxu0 0
        %810 = vmatpush1.bf16.msra.mxu0 0
        %811 = vmatprep.subr.bf16.mxu0 0
        %812 = vmatpush1.bf16.msra.mxu0 0
        %813 = vmatprep.subr.bf16.mxu0 0
        %814 = vmatpush1.bf16.msra.mxu0 0
        %815 = vmatprep.subr.bf16.mxu0 0
        %816 = vmatpush1.bf16.msra.mxu0 0
        %817 = vmatprep.subr.bf16.mxu0 0
        %818 = vmatpush1.bf16.msra.mxu0 0
        %819 = vmatprep.subr.bf16.mxu0 0
        %820 = vmatpush1.bf16.msra.mxu0 0
        %821 = vmatprep.mubr.bf16.mxu0 0
        %822 = vmatmul.mubr.bf16.gmra.mrb[0].mxu0 %v737
        %v823 = vpop.f32.mrb[0].mxu0
        %v824 = vadd.f32 0.0, %v823
        %v825 = vpop.f32.mrb[0].mxu0
        %v826 = vpop.f32.mrb[0].mxu0
        %v827 = vpop.f32.mrb[0].mxu0
        %828 = vdwg.mxu0
        %v829 = vadd.f32 %v701, %v783
        %v830 = vadd.f32 %v702, %v785
        %v831 = vadd.f32 %v703, %v824
        %s832 = scalar_lea.vmem [#allocation8], 4
        %v833 = vld [vmem:[%s832] sm:$0x3]
        %v834 = vld [vmem:[%s293] sm:$0xff]
        %v836 = vcombine.high %v834, %v834
        %v838 = vunpack.c.l.s4 1983009808
        %v839 = vunpack.c.0.s8 %v838
        %v840 = vlaneseq
        %v841 = vshrl.u32 %v840, 7
        %v842 = vsub.s32 %v839, %v841
        %v843 = vrot.slane %v834, %v842
        %v845 = vunpack.c.l.s4 1983009808
        %v846 = vunpack.c.0.s8 %v845
        %v847 = vlaneseq
        %v848 = vshrl.u32 %v847, 7
        %v849 = vsub.s32 %v846, %v848
        %v850 = vrot.slane %v836, %v849
        %v851 = vcombine.high %v843, %v843
        %v852 = vcombine.high %v850, %v850
        %853 = vrot.lane.b32.xlu0 %v843, 126
        %v854 = vpop.permute.xlu0 %853
        %855 = vrot.lane.b32.xlu0 %v851, 126
        %v856 = vpop.permute.xlu0 %855
        %857 = vrot.lane.b32.xlu0 %v850, 126
        %v858 = vpop.permute.xlu0 %857
        %859 = vrot.lane.b32.xlu0 %v852, 126
        %v860 = vpop.permute.xlu0 %859
        %vm861 = vcmask 1031168
        %v862 = vsel %vm861, %v854, %v856
        %v863 = vsel %vm861, %v856, %v858
        %v864 = vsel %vm861, %v858, %v860
        %v866 = vsel %vm370, %v833, 0
        %v869 = vsel %vm374, %v862, 0
        %v872 = vsel %vm374, %v863, 0
        %v875 = vsel %vm374, %v864, 0
        %877 = vmatprep.subr.bf16.mxu0 %v872
        %878 = vmatpush1.bf16.msra.mxu0 %v869
        %879 = vmatprep.subr.bf16.mxu0 0
        %880 = vmatpush1.bf16.msra.mxu0 0
        %881 = vmatprep.subr.bf16.mxu0 0
        %882 = vmatpush1.bf16.msra.mxu0 0
        %883 = vmatprep.subr.bf16.mxu0 0
        %884 = vmatpush1.bf16.msra.mxu0 0
        %885 = vmatprep.subr.bf16.mxu0 0
        %886 = vmatpush1.bf16.msra.mxu0 0
        %887 = vmatprep.subr.bf16.mxu0 0
        %888 = vmatpush1.bf16.msra.mxu0 0
        %889 = vmatprep.subr.bf16.mxu0 0
        %890 = vmatpush1.bf16.msra.mxu0 0
        %891 = vmatprep.subr.bf16.mxu0 0
        %892 = vmatpush1.bf16.msra.mxu0 0
        %893 = vmatprep.subr.bf16.mxu0 0
        %894 = vmatpush1.bf16.msra.mxu0 0
        %895 = vmatprep.subr.bf16.mxu0 0
        %896 = vmatpush1.bf16.msra.mxu0 0
        %897 = vmatprep.subr.bf16.mxu0 0
        %898 = vmatpush1.bf16.msra.mxu0 0
        %899 = vmatprep.subr.bf16.mxu0 0
        %900 = vmatpush1.bf16.msra.mxu0 0
        %901 = vmatprep.subr.bf16.mxu0 0
        %902 = vmatpush1.bf16.msra.mxu0 0
        %903 = vmatprep.subr.bf16.mxu0 0
        %904 = vmatpush1.bf16.msra.mxu0 0
        %905 = vmatprep.subr.bf16.mxu0 0
        %906 = vmatpush1.bf16.msra.mxu0 0
        %907 = vmatprep.subr.bf16.mxu0 0
        %908 = vmatpush1.bf16.msra.mxu0 0
        %909 = vmatprep.mubr.bf16.mxu0 0
        %910 = vmatmul.mubr.bf16.gmra.mrb[0].mxu0 %v866
        %v911 = vpop.f32.mrb[0].mxu0
        %v912 = vadd.f32 0.0, %v911
        %v913 = vpop.f32.mrb[0].mxu0
        %v914 = vadd.f32 0.0, %v913
        %v915 = vpop.f32.mrb[0].mxu0
        %v916 = vpop.f32.mrb[0].mxu0
        %917 = vdwg.mxu0
        %918 = vmatprep.subr.bf16.mxu0 0
        %919 = vmatpush1.bf16.msra.mxu0 %v875
        %920 = vmatprep.subr.bf16.mxu0 0
        %921 = vmatpush1.bf16.msra.mxu0 0
        %922 = vmatprep.subr.bf16.mxu0 0
        %923 = vmatpush1.bf16.msra.mxu0 0
        %924 = vmatprep.subr.bf16.mxu0 0
        %925 = vmatpush1.bf16.msra.mxu0 0
        %926 = vmatprep.subr.bf16.mxu0 0
        %927 = vmatpush1.bf16.msra.mxu0 0
        %928 = vmatprep.subr.bf16.mxu0 0
        %929 = vmatpush1.bf16.msra.mxu0 0
        %930 = vmatprep.subr.bf16.mxu0 0
        %931 = vmatpush1.bf16.msra.mxu0 0
        %932 = vmatprep.subr.bf16.mxu0 0
        %933 = vmatpush1.bf16.msra.mxu0 0
        %934 = vmatprep.subr.bf16.mxu0 0
        %935 = vmatpush1.bf16.msra.mxu0 0
        %936 = vmatprep.subr.bf16.mxu0 0
        %937 = vmatpush1.bf16.msra.mxu0 0
        %938 = vmatprep.subr.bf16.mxu0 0
        %939 = vmatpush1.bf16.msra.mxu0 0
        %940 = vmatprep.subr.bf16.mxu0 0
        %941 = vmatpush1.bf16.msra.mxu0 0
        %942 = vmatprep.subr.bf16.mxu0 0
        %943 = vmatpush1.bf16.msra.mxu0 0
        %944 = vmatprep.subr.bf16.mxu0 0
        %945 = vmatpush1.bf16.msra.mxu0 0
        %946 = vmatprep.subr.bf16.mxu0 0
        %947 = vmatpush1.bf16.msra.mxu0 0
        %948 = vmatprep.subr.bf16.mxu0 0
        %949 = vmatpush1.bf16.msra.mxu0 0
        %950 = vmatprep.mubr.bf16.mxu0 0
        %951 = vmatmul.mubr.bf16.gmra.mrb[0].mxu0 %v866
        %v952 = vpop.f32.mrb[0].mxu0
        %v953 = vadd.f32 0.0, %v952
        %v954 = vpop.f32.mrb[0].mxu0
        %v955 = vpop.f32.mrb[0].mxu0
        %v956 = vpop.f32.mrb[0].mxu0
        %957 = vdwg.mxu0
        %v958 = vadd.f32 %v829, %v912
        %v959 = vadd.f32 %v830, %v914
        %v960 = vadd.f32 %v831, %v953
        %s961 = scalar_lea.vmem [#allocation9], 4
        %v962 = vld [vmem:[%s961] sm:$0x3]
        %v963 = vld [vmem:[%s302] sm:$0xff]
        %v965 = vcombine.high %v963, %v963
        %v967 = vunpack.c.l.s4 1983009808
        %v968 = vunpack.c.0.s8 %v967
        %v969 = vlaneseq
        %v970 = vshrl.u32 %v969, 7
        %v971 = vsub.s32 %v968, %v970
        %v972 = vrot.slane %v963, %v971
        %v974 = vunpack.c.l.s4 1983009808
        %v975 = vunpack.c.0.s8 %v974
        %v976 = vlaneseq
        %v977 = vshrl.u32 %v976, 7
        %v978 = vsub.s32 %v975, %v977
        %v979 = vrot.slane %v965, %v978
        %v980 = vcombine.high %v972, %v972
        %v981 = vcombine.high %v979, %v979
        %982 = vrot.lane.b32.xlu0 %v972, 126
        %v983 = vpop.permute.xlu0 %982
        %984 = vrot.lane.b32.xlu0 %v980, 126
        %v985 = vpop.permute.xlu0 %984
        %986 = vrot.lane.b32.xlu0 %v979, 126
        %v987 = vpop.permute.xlu0 %986
        %988 = vrot.lane.b32.xlu0 %v981, 126
        %v989 = vpop.permute.xlu0 %988
        %v990 = vsel %vm861, %v983, %v985
        %v991 = vsel %vm861, %v985, %v987
        %v992 = vsel %vm861, %v987, %v989
        %v994 = vsel %vm370, %v962, 0
        %v997 = vsel %vm374, %v990, 0
        %v1000 = vsel %vm374, %v991, 0
        %v1003 = vsel %vm374, %v992, 0
        %1005 = vmatprep.subr.bf16.mxu0 %v1000
        %1006 = vmatpush1.bf16.msra.mxu0 %v997
        %1007 = vmatprep.subr.bf16.mxu0 0
        %1008 = vmatpush1.bf16.msra.mxu0 0
        %1009 = vmatprep.subr.bf16.mxu0 0
        %1010 = vmatpush1.bf16.msra.mxu0 0
        %1011 = vmatprep.subr.bf16.mxu0 0
        %1012 = vmatpush1.bf16.msra.mxu0 0
        %1013 = vmatprep.subr.bf16.mxu0 0
        %1014 = vmatpush1.bf16.msra.mxu0 0
        %1015 = vmatprep.subr.bf16.mxu0 0
        %1016 = vmatpush1.bf16.msra.mxu0 0
        %1017 = vmatprep.subr.bf16.mxu0 0
        %1018 = vmatpush1.bf16.msra.mxu0 0
        %1019 = vmatprep.subr.bf16.mxu0 0
        %1020 = vmatpush1.bf16.msra.mxu0 0
        %1021 = vmatprep.subr.bf16.mxu0 0
        %1022 = vmatpush1.bf16.msra.mxu0 0
        %1023 = vmatprep.subr.bf16.mxu0 0
        %1024 = vmatpush1.bf16.msra.mxu0 0
        %1025 = vmatprep.subr.bf16.mxu0 0
        %1026 = vmatpush1.bf16.msra.mxu0 0
        %1027 = vmatprep.subr.bf16.mxu0 0
        %1028 = vmatpush1.bf16.msra.mxu0 0
        %1029 = vmatprep.subr.bf16.mxu0 0
        %1030 = vmatpush1.bf16.msra.mxu0 0
        %1031 = vmatprep.subr.bf16.mxu0 0
        %1032 = vmatpush1.bf16.msra.mxu0 0
        %1033 = vmatprep.subr.bf16.mxu0 0
        %1034 = vmatpush1.bf16.msra.mxu0 0
        %1035 = vmatprep.subr.bf16.mxu0 0
        %1036 = vmatpush1.bf16.msra.mxu0 0
        %1037 = vmatprep.mubr.bf16.mxu0 0
        %1038 = vmatmul.mubr.bf16.gmra.mrb[0].mxu0 %v994
        %v1039 = vpop.f32.mrb[0].mxu0
        %v1040 = vadd.f32 0.0, %v1039
        %v1041 = vpop.f32.mrb[0].mxu0
        %v1042 = vadd.f32 0.0, %v1041
        %v1043 = vpop.f32.mrb[0].mxu0
        %v1044 = vpop.f32.mrb[0].mxu0
        %1045 = vdwg.mxu0
        %1046 = vmatprep.subr.bf16.mxu0 0
        %1047 = vmatpush1.bf16.msra.mxu0 %v1003
        %1048 = vmatprep.subr.bf16.mxu0 0
        %1049 = vmatpush1.bf16.msra.mxu0 0
        %1050 = vmatprep.subr.bf16.mxu0 0
        %1051 = vmatpush1.bf16.msra.mxu0 0
        %1052 = vmatprep.subr.bf16.mxu0 0
        %1053 = vmatpush1.bf16.msra.mxu0 0
        %1054 = vmatprep.subr.bf16.mxu0 0
        %1055 = vmatpush1.bf16.msra.mxu0 0
        %1056 = vmatprep.subr.bf16.mxu0 0
        %1057 = vmatpush1.bf16.msra.mxu0 0
        %1058 = vmatprep.subr.bf16.mxu0 0
        %1059 = vmatpush1.bf16.msra.mxu0 0
        %1060 = vmatprep.subr.bf16.mxu0 0
        %1061 = vmatpush1.bf16.msra.mxu0 0
        %1062 = vmatprep.subr.bf16.mxu0 0
        %1063 = vmatpush1.bf16.msra.mxu0 0
        %1064 = vmatprep.subr.bf16.mxu0 0
        %1065 = vmatpush1.bf16.msra.mxu0 0
        %1066 = vmatprep.subr.bf16.mxu0 0
        %1067 = vmatpush1.bf16.msra.mxu0 0
        %1068 = vmatprep.subr.bf16.mxu0 0
        %1069 = vmatpush1.bf16.msra.mxu0 0
        %1070 = vmatprep.subr.bf16.mxu0 0
        %1071 = vmatpush1.bf16.msra.mxu0 0
        %1072 = vmatprep.subr.bf16.mxu0 0
        %1073 = vmatpush1.bf16.msra.mxu0 0
        %1074 = vmatprep.subr.bf16.mxu0 0
        %1075 = vmatpush1.bf16.msra.mxu0 0
        %1076 = vmatprep.subr.bf16.mxu0 0
        %1077 = vmatpush1.bf16.msra.mxu0 0
        %1078 = vmatprep.mubr.bf16.mxu0 0
        %1079 = vmatmul.mubr.bf16.gmra.mrb[0].mxu0 %v994
        %v1080 = vpop.f32.mrb[0].mxu0
        %v1081 = vadd.f32 0.0, %v1080
        %v1082 = vpop.f32.mrb[0].mxu0
        %v1083 = vpop.f32.mrb[0].mxu0
        %v1084 = vpop.f32.mrb[0].mxu0
        %1085 = vdwg.mxu0
        %v1086 = vadd.f32 %v958, %v1040
        %v1087 = vadd.f32 %v959, %v1042
        %v1088 = vadd.f32 %v960, %v1081
        %s1089 = scalar_lea.vmem [#allocation8], 6
        %v1090 = vld [vmem:[%s1089] sm:$0x3]
        %v1091 = vld [vmem:[%s293] sm:$0xff]
        %v1093 = vcombine.high %v1091, %v1091
        %v1095 = vunpack.c.l.s4 1983009808
        %v1096 = vunpack.c.0.s8 %v1095
        %v1097 = vlaneseq
        %v1098 = vshrl.u32 %v1097, 7
        %v1099 = vsub.s32 %v1096, %v1098
        %v1100 = vrot.slane %v1091, %v1099
        %v1102 = vunpack.c.l.s4 1983009808
        %v1103 = vunpack.c.0.s8 %v1102
        %v1104 = vlaneseq
        %v1105 = vshrl.u32 %v1104, 7
        %v1106 = vsub.s32 %v1103, %v1105
        %v1107 = vrot.slane %v1093, %v1106
        %v1108 = vcombine.high %v1100, %v1100
        %v1109 = vcombine.high %v1107, %v1107
        %1110 = vrot.lane.b32.xlu0 %v1100, 110
        %v1111 = vpop.permute.xlu0 %1110
        %1112 = vrot.lane.b32.xlu0 %v1108, 110
        %v1113 = vpop.permute.xlu0 %1112
        %1114 = vrot.lane.b32.xlu0 %v1107, 110
        %v1115 = vpop.permute.xlu0 %1114
        %1116 = vrot.lane.b32.xlu0 %v1109, 110
        %v1117 = vpop.permute.xlu0 %1116
        %vm1118 = vcmask 900096
        %v1119 = vsel %vm1118, %v1111, %v1113
        %v1120 = vsel %vm1118, %v1113, %v1115
        %v1121 = vsel %vm1118, %v1115, %v1117
        %v1123 = vsel %vm370, %v1090, 0
        %v1126 = vsel %vm374, %v1119, 0
        %v1129 = vsel %vm374, %v1120, 0
        %v1132 = vsel %vm374, %v1121, 0
        %1134 = vmatprep.subr.bf16.mxu0 %v1129
        %1135 = vmatpush1.bf16.msra.mxu0 %v1126
        %1136 = vmatprep.subr.bf16.mxu0 0
        %1137 = vmatpush1.bf16.msra.mxu0 0
        %1138 = vmatprep.subr.bf16.mxu0 0
        %1139 = vmatpush1.bf16.msra.mxu0 0
        %1140 = vmatprep.subr.bf16.mxu0 0
        %1141 = vmatpush1.bf16.msra.mxu0 0
        %1142 = vmatprep.subr.bf16.mxu0 0
        %1143 = vmatpush1.bf16.msra.mxu0 0
        %1144 = vmatprep.subr.bf16.mxu0 0
        %1145 = vmatpush1.bf16.msra.mxu0 0
        %1146 = vmatprep.subr.bf16.mxu0 0
        %1147 = vmatpush1.bf16.msra.mxu0 0
        %1148 = vmatprep.subr.bf16.mxu0 0
        %1149 = vmatpush1.bf16.msra.mxu0 0
        %1150 = vmatprep.subr.bf16.mxu0 0
        %1151 = vmatpush1.bf16.msra.mxu0 0
        %1152 = vmatprep.subr.bf16.mxu0 0
        %1153 = vmatpush1.bf16.msra.mxu0 0
        %1154 = vmatprep.subr.bf16.mxu0 0
        %1155 = vmatpush1.bf16.msra.mxu0 0
        %1156 = vmatprep.subr.bf16.mxu0 0
        %1157 = vmatpush1.bf16.msra.mxu0 0
        %1158 = vmatprep.subr.bf16.mxu0 0
        %1159 = vmatpush1.bf16.msra.mxu0 0
        %1160 = vmatprep.subr.bf16.mxu0 0
        %1161 = vmatpush1.bf16.msra.mxu0 0
        %1162 = vmatprep.subr.bf16.mxu0 0
        %1163 = vmatpush1.bf16.msra.mxu0 0
        %1164 = vmatprep.subr.bf16.mxu0 0
        %1165 = vmatpush1.bf16.msra.mxu0 0
        %1166 = vmatprep.mubr.bf16.mxu0 0
        %1167 = vmatmul.mubr.bf16.gmra.mrb[0].mxu0 %v1123
        %v1168 = vpop.f32.mrb[0].mxu0
        %v1169 = vadd.f32 0.0, %v1168
        %v1170 = vpop.f32.mrb[0].mxu0
        %v1171 = vadd.f32 0.0, %v1170
        %v1172 = vpop.f32.mrb[0].mxu0
        %v1173 = vpop.f32.mrb[0].mxu0
        %1174 = vdwg.mxu0
        %1175 = vmatprep.subr.bf16.mxu0 0
        %1176 = vmatpush1.bf16.msra.mxu0 %v1132
        %1177 = vmatprep.subr.bf16.mxu0 0
        %1178 = vmatpush1.bf16.msra.mxu0 0
        %1179 = vmatprep.subr.bf16.mxu0 0
        %1180 = vmatpush1.bf16.msra.mxu0 0
        %1181 = vmatprep.subr.bf16.mxu0 0
        %1182 = vmatpush1.bf16.msra.mxu0 0
        %1183 = vmatprep.subr.bf16.mxu0 0
        %1184 = vmatpush1.bf16.msra.mxu0 0
        %1185 = vmatprep.subr.bf16.mxu0 0
        %1186 = vmatpush1.bf16.msra.mxu0 0
        %1187 = vmatprep.subr.bf16.mxu0 0
        %1188 = vmatpush1.bf16.msra.mxu0 0
        %1189 = vmatprep.subr.bf16.mxu0 0
        %1190 = vmatpush1.bf16.msra.mxu0 0
        %1191 = vmatprep.subr.bf16.mxu0 0
        %1192 = vmatpush1.bf16.msra.mxu0 0
        %1193 = vmatprep.subr.bf16.mxu0 0
        %1194 = vmatpush1.bf16.msra.mxu0 0
        %1195 = vmatprep.subr.bf16.mxu0 0
        %1196 = vmatpush1.bf16.msra.mxu0 0
        %1197 = vmatprep.subr.bf16.mxu0 0
        %1198 = vmatpush1.bf16.msra.mxu0 0
        %1199 = vmatprep.subr.bf16.mxu0 0
        %1200 = vmatpush1.bf16.msra.mxu0 0
        %1201 = vmatprep.subr.bf16.mxu0 0
        %1202 = vmatpush1.bf16.msra.mxu0 0
        %1203 = vmatprep.subr.bf16.mxu0 0
        %1204 = vmatpush1.bf16.msra.mxu0 0
        %1205 = vmatprep.subr.bf16.mxu0 0
        %1206 = vmatpush1.bf16.msra.mxu0 0
        %1207 = vmatprep.mubr.bf16.mxu0 0
        %1208 = vmatmul.mubr.bf16.gmra.mrb[0].mxu0 %v1123
        %v1209 = vpop.f32.mrb[0].mxu0
        %v1210 = vadd.f32 0.0, %v1209
        %v1211 = vpop.f32.mrb[0].mxu0
        %v1212 = vpop.f32.mrb[0].mxu0
        %v1213 = vpop.f32.mrb[0].mxu0
        %1214 = vdwg.mxu0
        %v1215 = vadd.f32 %v1086, %v1169
        %v1216 = vadd.f32 %v1087, %v1171
        %v1217 = vadd.f32 %v1088, %v1210
        %s1218 = scalar_lea.vmem [#allocation9], 6
        %v1219 = vld [vmem:[%s1218] sm:$0x3]
        %v1220 = vld [vmem:[%s302] sm:$0xff]
        %v1222 = vcombine.high %v1220, %v1220
        %v1224 = vunpack.c.l.s4 1983009808
        %v1225 = vunpack.c.0.s8 %v1224
        %v1226 = vlaneseq
        %v1227 = vshrl.u32 %v1226, 7
        %v1228 = vsub.s32 %v1225, %v1227
        %v1229 = vrot.slane %v1220, %v1228
        %v1231 = vunpack.c.l.s4 1983009808
        %v1232 = vunpack.c.0.s8 %v1231
        %v1233 = vlaneseq
        %v1234 = vshrl.u32 %v1233, 7
        %v1235 = vsub.s32 %v1232, %v1234
        %v1236 = vrot.slane %v1222, %v1235
        %v1237 = vcombine.high %v1229, %v1229
        %v1238 = vcombine.high %v1236, %v1236
        %1239 = vrot.lane.b32.xlu0 %v1229, 110
        %v1240 = vpop.permute.xlu0 %1239
        %1241 = vrot.lane.b32.xlu0 %v1237, 110
        %v1242 = vpop.permute.xlu0 %1241
        %1243 = vrot.lane.b32.xlu0 %v1236, 110
        %v1244 = vpop.permute.xlu0 %1243
        %1245 = vrot.lane.b32.xlu0 %v1238, 110
        %v1246 = vpop.permute.xlu0 %1245
        %v1247 = vsel %vm1118, %v1240, %v1242
        %v1248 = vsel %vm1118, %v1242, %v1244
        %v1249 = vsel %vm1118, %v1244, %v1246
        %v1251 = vsel %vm370, %v1219, 0
        %v1254 = vsel %vm374, %v1247, 0
        %v1257 = vsel %vm374, %v1248, 0
        %v1260 = vsel %vm374, %v1249, 0
        %1262 = vmatprep.subr.bf16.mxu0 %v1257
        %1263 = vmatpush1.bf16.msra.mxu0 %v1254
        %1264 = vmatprep.subr.bf16.mxu0 0
        %1265 = vmatpush1.bf16.msra.mxu0 0
        %1266 = vmatprep.subr.bf16.mxu0 0
        %1267 = vmatpush1.bf16.msra.mxu0 0
        %1268 = vmatprep.subr.bf16.mxu0 0
        %1269 = vmatpush1.bf16.msra.mxu0 0
        %1270 = vmatprep.subr.bf16.mxu0 0
        %1271 = vmatpush1.bf16.msra.mxu0 0
        %1272 = vmatprep.subr.bf16.mxu0 0
        %1273 = vmatpush1.bf16.msra.mxu0 0
        %1274 = vmatprep.subr.bf16.mxu0 0
        %1275 = vmatpush1.bf16.msra.mxu0 0
        %1276 = vmatprep.subr.bf16.mxu0 0
        %1277 = vmatpush1.bf16.msra.mxu0 0
        %1278 = vmatprep.subr.bf16.mxu0 0
        %1279 = vmatpush1.bf16.msra.mxu0 0
        %1280 = vmatprep.subr.bf16.mxu0 0
        %1281 = vmatpush1.bf16.msra.mxu0 0
        %1282 = vmatprep.subr.bf16.mxu0 0
        %1283 = vmatpush1.bf16.msra.mxu0 0
        %1284 = vmatprep.subr.bf16.mxu0 0
        %1285 = vmatpush1.bf16.msra.mxu0 0
        %1286 = vmatprep.subr.bf16.mxu0 0
        %1287 = vmatpush1.bf16.msra.mxu0 0
        %1288 = vmatprep.subr.bf16.mxu0 0
        %1289 = vmatpush1.bf16.msra.mxu0 0
        %1290 = vmatprep.subr.bf16.mxu0 0
        %1291 = vmatpush1.bf16.msra.mxu0 0
        %1292 = vmatprep.subr.bf16.mxu0 0
        %1293 = vmatpush1.bf16.msra.mxu0 0
        %1294 = vmatprep.mubr.bf16.mxu0 0
        %1295 = vmatmul.mubr.bf16.gmra.mrb[0].mxu0 %v1251
        %v1296 = vpop.f32.mrb[0].mxu0
        %v1297 = vadd.f32 0.0, %v1296
        %v1298 = vpop.f32.mrb[0].mxu0
        %v1299 = vadd.f32 0.0, %v1298
        %v1300 = vpop.f32.mrb[0].mxu0
        %v1301 = vpop.f32.mrb[0].mxu0
        %1302 = vdwg.mxu0
        %1303 = vmatprep.subr.bf16.mxu0 0
        %1304 = vmatpush1.bf16.msra.mxu0 %v1260
        %1305 = vmatprep.subr.bf16.mxu0 0
        %1306 = vmatpush1.bf16.msra.mxu0 0
        %1307 = vmatprep.subr.bf16.mxu0 0
        %1308 = vmatpush1.bf16.msra.mxu0 0
        %1309 = vmatprep.subr.bf16.mxu0 0
        %1310 = vmatpush1.bf16.msra.mxu0 0
        %1311 = vmatprep.subr.bf16.mxu0 0
        %1312 = vmatpush1.bf16.msra.mxu0 0
        %1313 = vmatprep.subr.bf16.mxu0 0
        %1314 = vmatpush1.bf16.msra.mxu0 0
        %1315 = vmatprep.subr.bf16.mxu0 0
        %1316 = vmatpush1.bf16.msra.mxu0 0
        %1317 = vmatprep.subr.bf16.mxu0 0
        %1318 = vmatpush1.bf16.msra.mxu0 0
        %1319 = vmatprep.subr.bf16.mxu0 0
        %1320 = vmatpush1.bf16.msra.mxu0 0
        %1321 = vmatprep.subr.bf16.mxu0 0
        %1322 = vmatpush1.bf16.msra.mxu0 0
        %1323 = vmatprep.subr.bf16.mxu0 0
        %1324 = vmatpush1.bf16.msra.mxu0 0
        %1325 = vmatprep.subr.bf16.mxu0 0
        %1326 = vmatpush1.bf16.msra.mxu0 0
        %1327 = vmatprep.subr.bf16.mxu0 0
        %1328 = vmatpush1.bf16.msra.mxu0 0
        %1329 = vmatprep.subr.bf16.mxu0 0
        %1330 = vmatpush1.bf16.msra.mxu0 0
        %1331 = vmatprep.subr.bf16.mxu0 0
        %1332 = vmatpush1.bf16.msra.mxu0 0
        %1333 = vmatprep.subr.bf16.mxu0 0
        %1334 = vmatpush1.bf16.msra.mxu0 0
        %1335 = vmatprep.mubr.bf16.mxu0 0
        %1336 = vmatmul.mubr.bf16.gmra.mrb[0].mxu0 %v1251
        %v1337 = vpop.f32.mrb[0].mxu0
        %v1338 = vadd.f32 0.0, %v1337
        %v1339 = vpop.f32.mrb[0].mxu0
        %v1340 = vpop.f32.mrb[0].mxu0
        %v1341 = vpop.f32.mrb[0].mxu0
        %1342 = vdwg.mxu0
        %v1343 = vadd.f32 %v1215, %v1297
        %v1344 = vadd.f32 %v1216, %v1299
        %v1345 = vadd.f32 %v1217, %v1338
        %s1346 = scalar_lea.vmem [#allocation8], 8
        %v1347 = vld [vmem:[%s1346] sm:$0x3]
        %v1348 = vld [vmem:[%s293] sm:$0xff]
        %v1350 = vcombine.high %v1348, %v1348
        %v1352 = vunpack.c.l.s4 1983009808
        %v1353 = vunpack.c.0.s8 %v1352
        %v1354 = vlaneseq
        %v1355 = vshrl.u32 %v1354, 7
        %v1356 = vsub.s32 %v1353, %v1355
        %v1357 = vrot.slane %v1348, %v1356
        %v1359 = vunpack.c.l.s4 1983009808
        %v1360 = vunpack.c.0.s8 %v1359
        %v1361 = vlaneseq
        %v1362 = vshrl.u32 %v1361, 7
        %v1363 = vsub.s32 %v1360, %v1362
        %v1364 = vrot.slane %v1350, %v1363
        %v1365 = vcombine.high %v1357, %v1357
        %v1366 = vcombine.high %v1364, %v1364
        %1367 = vrot.lane.b32.xlu0 %v1357, 109
        %v1368 = vpop.permute.xlu0 %1367
        %1369 = vrot.lane.b32.xlu0 %v1365, 109
        %v1370 = vpop.permute.xlu0 %1369
        %1371 = vrot.lane.b32.xlu0 %v1364, 109
        %v1372 = vpop.permute.xlu0 %1371
        %1373 = vrot.lane.b32.xlu0 %v1366, 109
        %v1374 = vpop.permute.xlu0 %1373
        %vm1375 = vcmask 891904
        %v1376 = vsel %vm1375, %v1368, %v1370
        %v1377 = vsel %vm1375, %v1370, %v1372
        %v1378 = vsel %vm1375, %v1372, %v1374
        %v1380 = vsel %vm370, %v1347, 0
        %v1383 = vsel %vm374, %v1376, 0
        %v1386 = vsel %vm374, %v1377, 0
        %v1389 = vsel %vm374, %v1378, 0
        %1391 = vmatprep.subr.bf16.mxu0 %v1386
        %1392 = vmatpush1.bf16.msra.mxu0 %v1383
        %1393 = vmatprep.subr.bf16.mxu0 0
        %1394 = vmatpush1.bf16.msra.mxu0 0
        %1395 = vmatprep.subr.bf16.mxu0 0
        %1396 = vmatpush1.bf16.msra.mxu0 0
        %1397 = vmatprep.subr.bf16.mxu0 0
        %1398 = vmatpush1.bf16.msra.mxu0 0
        %1399 = vmatprep.subr.bf16.mxu0 0
        %1400 = vmatpush1.bf16.msra.mxu0 0
        %1401 = vmatprep.subr.bf16.mxu0 0
        %1402 = vmatpush1.bf16.msra.mxu0 0
        %1403 = vmatprep.subr.bf16.mxu0 0
        %1404 = vmatpush1.bf16.msra.mxu0 0
        %1405 = vmatprep.subr.bf16.mxu0 0
        %1406 = vmatpush1.bf16.msra.mxu0 0
        %1407 = vmatprep.subr.bf16.mxu0 0
        %1408 = vmatpush1.bf16.msra.mxu0 0
        %1409 = vmatprep.subr.bf16.mxu0 0
        %1410 = vmatpush1.bf16.msra.mxu0 0
        %1411 = vmatprep.subr.bf16.mxu0 0
        %1412 = vmatpush1.bf16.msra.mxu0 0
        %1413 = vmatprep.subr.bf16.mxu0 0
        %1414 = vmatpush1.bf16.msra.mxu0 0
        %1415 = vmatprep.subr.bf16.mxu0 0
        %1416 = vmatpush1.bf16.msra.mxu0 0
        %1417 = vmatprep.subr.bf16.mxu0 0
        %1418 = vmatpush1.bf16.msra.mxu0 0
        %1419 = vmatprep.subr.bf16.mxu0 0
        %1420 = vmatpush1.bf16.msra.mxu0 0
        %1421 = vmatprep.subr.bf16.mxu0 0
        %1422 = vmatpush1.bf16.msra.mxu0 0
        %1423 = vmatprep.mubr.bf16.mxu0 0
        %1424 = vmatmul.mubr.bf16.gmra.mrb[0].mxu0 %v1380
        %v1425 = vpop.f32.mrb[0].mxu0
        %v1426 = vadd.f32 0.0, %v1425
        %v1427 = vpop.f32.mrb[0].mxu0
        %v1428 = vadd.f32 0.0, %v1427
        %v1429 = vpop.f32.mrb[0].mxu0
        %v1430 = vpop.f32.mrb[0].mxu0
        %1431 = vdwg.mxu0
        %1432 = vmatprep.subr.bf16.mxu0 0
        %1433 = vmatpush1.bf16.msra.mxu0 %v1389
        %1434 = vmatprep.subr.bf16.mxu0 0
        %1435 = vmatpush1.bf16.msra.mxu0 0
        %1436 = vmatprep.subr.bf16.mxu0 0
        %1437 = vmatpush1.bf16.msra.mxu0 0
        %1438 = vmatprep.subr.bf16.mxu0 0
        %1439 = vmatpush1.bf16.msra.mxu0 0
        %1440 = vmatprep.subr.bf16.mxu0 0
        %1441 = vmatpush1.bf16.msra.mxu0 0
        %1442 = vmatprep.subr.bf16.mxu0 0
        %1443 = vmatpush1.bf16.msra.mxu0 0
        %1444 = vmatprep.subr.bf16.mxu0 0
        %1445 = vmatpush1.bf16.msra.mxu0 0
        %1446 = vmatprep.subr.bf16.mxu0 0
        %1447 = vmatpush1.bf16.msra.mxu0 0
        %1448 = vmatprep.subr.bf16.mxu0 0
        %1449 = vmatpush1.bf16.msra.mxu0 0
        %1450 = vmatprep.subr.bf16.mxu0 0
        %1451 = vmatpush1.bf16.msra.mxu0 0
        %1452 = vmatprep.subr.bf16.mxu0 0
        %1453 = vmatpush1.bf16.msra.mxu0 0
        %1454 = vmatprep.subr.bf16.mxu0 0
        %1455 = vmatpush1.bf16.msra.mxu0 0
        %1456 = vmatprep.subr.bf16.mxu0 0
        %1457 = vmatpush1.bf16.msra.mxu0 0
        %1458 = vmatprep.subr.bf16.mxu0 0
        %1459 = vmatpush1.bf16.msra.mxu0 0
        %1460 = vmatprep.subr.bf16.mxu0 0
        %1461 = vmatpush1.bf16.msra.mxu0 0
        %1462 = vmatprep.subr.bf16.mxu0 0
        %1463 = vmatpush1.bf16.msra.mxu0 0
        %1464 = vmatprep.mubr.bf16.mxu0 0
        %1465 = vmatmul.mubr.bf16.gmra.mrb[0].mxu0 %v1380
        %v1466 = vpop.f32.mrb[0].mxu0
        %v1467 = vadd.f32 0.0, %v1466
        %v1468 = vpop.f32.mrb[0].mxu0
        %v1469 = vpop.f32.mrb[0].mxu0
        %v1470 = vpop.f32.mrb[0].mxu0
        %1471 = vdwg.mxu0
        %v1472 = vadd.f32 %v1343, %v1426
        %v1473 = vadd.f32 %v1344, %v1428
        %v1474 = vadd.f32 %v1345, %v1467
        %s1475 = scalar_lea.vmem [#allocation9], 8
        %v1476 = vld [vmem:[%s1475] sm:$0x3]
        %v1477 = vld [vmem:[%s302] sm:$0xff]
        %v1479 = vcombine.high %v1477, %v1477
        %v1481 = vunpack.c.l.s4 1983009808
        %v1482 = vunpack.c.0.s8 %v1481
        %v1483 = vlaneseq
        %v1484 = vshrl.u32 %v1483, 7
        %v1485 = vsub.s32 %v1482, %v1484
        %v1486 = vrot.slane %v1477, %v1485
        %v1488 = vunpack.c.l.s4 1983009808
        %v1489 = vunpack.c.0.s8 %v1488
        %v1490 = vlaneseq
        %v1491 = vshrl.u32 %v1490, 7
        %v1492 = vsub.s32 %v1489, %v1491
        %v1493 = vrot.slane %v1479, %v1492
        %v1494 = vcombine.high %v1486, %v1486
        %v1495 = vcombine.high %v1493, %v1493
        %1496 = vrot.lane.b32.xlu0 %v1486, 109
        %v1497 = vpop.permute.xlu0 %1496
        %1498 = vrot.lane.b32.xlu0 %v1494, 109
        %v1499 = vpop.permute.xlu0 %1498
        %1500 = vrot.lane.b32.xlu0 %v1493, 109
        %v1501 = vpop.permute.xlu0 %1500
        %1502 = vrot.lane.b32.xlu0 %v1495, 109
        %v1503 = vpop.permute.xlu0 %1502
        %v1504 = vsel %vm1375, %v1497, %v1499
        %v1505 = vsel %vm1375, %v1499, %v1501
        %v1506 = vsel %vm1375, %v1501, %v1503
        %v1508 = vsel %vm370, %v1476, 0
        %v1511 = vsel %vm374, %v1504, 0
        %v1514 = vsel %vm374, %v1505, 0
        %v1517 = vsel %vm374, %v1506, 0
        %1519 = vmatprep.subr.bf16.mxu0 %v1514
        %1520 = vmatpush1.bf16.msra.mxu0 %v1511
        %1521 = vmatprep.subr.bf16.mxu0 0
        %1522 = vmatpush1.bf16.msra.mxu0 0
        %1523 = vmatprep.subr.bf16.mxu0 0
        %1524 = vmatpush1.bf16.msra.mxu0 0
        %1525 = vmatprep.subr.bf16.mxu0 0
        %1526 = vmatpush1.bf16.msra.mxu0 0
        %1527 = vmatprep.subr.bf16.mxu0 0
        %1528 = vmatpush1.bf16.msra.mxu0 0
        %1529 = vmatprep.subr.bf16.mxu0 0
        %1530 = vmatpush1.bf16.msra.mxu0 0
        %1531 = vmatprep.subr.bf16.mxu0 0
        %1532 = vmatpush1.bf16.msra.mxu0 0
        %1533 = vmatprep.subr.bf16.mxu0 0
        %1534 = vmatpush1.bf16.msra.mxu0 0
        %1535 = vmatprep.subr.bf16.mxu0 0
        %1536 = vmatpush1.bf16.msra.mxu0 0
        %1537 = vmatprep.subr.bf16.mxu0 0
        %1538 = vmatpush1.bf16.msra.mxu0 0
        %1539 = vmatprep.subr.bf16.mxu0 0
        %1540 = vmatpush1.bf16.msra.mxu0 0
        %1541 = vmatprep.subr.bf16.mxu0 0
        %1542 = vmatpush1.bf16.msra.mxu0 0
        %1543 = vmatprep.subr.bf16.mxu0 0
        %1544 = vmatpush1.bf16.msra.mxu0 0
        %1545 = vmatprep.subr.bf16.mxu0 0
        %1546 = vmatpush1.bf16.msra.mxu0 0
        %1547 = vmatprep.subr.bf16.mxu0 0
        %1548 = vmatpush1.bf16.msra.mxu0 0
        %1549 = vmatprep.subr.bf16.mxu0 0
        %1550 = vmatpush1.bf16.msra.mxu0 0
        %1551 = vmatprep.mubr.bf16.mxu0 0
        %1552 = vmatmul.mubr.bf16.gmra.mrb[0].mxu0 %v1508
        %v1553 = vpop.f32.mrb[0].mxu0
        %v1554 = vadd.f32 0.0, %v1553
        %v1555 = vpop.f32.mrb[0].mxu0
        %v1556 = vadd.f32 0.0, %v1555
        %v1557 = vpop.f32.mrb[0].mxu0
        %v1558 = vpop.f32.mrb[0].mxu0
        %1559 = vdwg.mxu0
        %1560 = vmatprep.subr.bf16.mxu0 0
        %1561 = vmatpush1.bf16.msra.mxu0 %v1517
        %1562 = vmatprep.subr.bf16.mxu0 0
        %1563 = vmatpush1.bf16.msra.mxu0 0
        %1564 = vmatprep.subr.bf16.mxu0 0
        %1565 = vmatpush1.bf16.msra.mxu0 0
        %1566 = vmatprep.subr.bf16.mxu0 0
        %1567 = vmatpush1.bf16.msra.mxu0 0
        %1568 = vmatprep.subr.bf16.mxu0 0
        %1569 = vmatpush1.bf16.msra.mxu0 0
        %1570 = vmatprep.subr.bf16.mxu0 0
        %1571 = vmatpush1.bf16.msra.mxu0 0
        %1572 = vmatprep.subr.bf16.mxu0 0
        %1573 = vmatpush1.bf16.msra.mxu0 0
        %1574 = vmatprep.subr.bf16.mxu0 0
        %1575 = vmatpush1.bf16.msra.mxu0 0
        %1576 = vmatprep.subr.bf16.mxu0 0
        %1577 = vmatpush1.bf16.msra.mxu0 0
        %1578 = vmatprep.subr.bf16.mxu0 0
        %1579 = vmatpush1.bf16.msra.mxu0 0
        %1580 = vmatprep.subr.bf16.mxu0 0
        %1581 = vmatpush1.bf16.msra.mxu0 0
        %1582 = vmatprep.subr.bf16.mxu0 0
        %1583 = vmatpush1.bf16.msra.mxu0 0
        %1584 = vmatprep.subr.bf16.mxu0 0
        %1585 = vmatpush1.bf16.msra.mxu0 0
        %1586 = vmatprep.subr.bf16.mxu0 0
        %1587 = vmatpush1.bf16.msra.mxu0 0
        %1588 = vmatprep.subr.bf16.mxu0 0
        %1589 = vmatpush1.bf16.msra.mxu0 0
        %1590 = vmatprep.subr.bf16.mxu0 0
        %1591 = vmatpush1.bf16.msra.mxu0 0
        %1592 = vmatprep.mubr.bf16.mxu0 0
        %1593 = vmatmul.mubr.bf16.gmra.mrb[0].mxu0 %v1508
        %v1594 = vpop.f32.mrb[0].mxu0
        %v1595 = vadd.f32 0.0, %v1594
        %v1596 = vpop.f32.mrb[0].mxu0
        %v1597 = vpop.f32.mrb[0].mxu0
        %v1598 = vpop.f32.mrb[0].mxu0
        %1599 = vdwg.mxu0
        %v1600 = vadd.f32 %v1472, %v1554
        %v1601 = vadd.f32 %v1473, %v1556
        %v1602 = vadd.f32 %v1474, %v1595
        %s1603 = scalar_lea.vmem [#allocation8], 10
        %v1604 = vld [vmem:[%s1603] sm:$0x3]
        %v1605 = vld [vmem:[%s293] sm:$0xff]
        %v1607 = vcombine.high %v1605, %v1605
        %v1609 = vunpack.c.l.s4 1983009808
        %v1610 = vunpack.c.0.s8 %v1609
        %v1611 = vlaneseq
        %v1612 = vshrl.u32 %v1611, 7
        %v1613 = vsub.s32 %v1610, %v1612
        %v1614 = vrot.slane %v1605, %v1613
        %v1616 = vunpack.c.l.s4 1983009808
        %v1617 = vunpack.c.0.s8 %v1616
        %v1618 = vlaneseq
        %v1619 = vshrl.u32 %v1618, 7
        %v1620 = vsub.s32 %v1617, %v1619
        %v1621 = vrot.slane %v1607, %v1620
        %v1622 = vcombine.high %v1614, %v1614
        %v1623 = vcombine.high %v1621, %v1621
        %1624 = vrot.lane.b32.xlu0 %v1614, 108
        %v1625 = vpop.permute.xlu0 %1624
        %1626 = vrot.lane.b32.xlu0 %v1622, 108
        %v1627 = vpop.permute.xlu0 %1626
        %1628 = vrot.lane.b32.xlu0 %v1621, 108
        %v1629 = vpop.permute.xlu0 %1628
        %1630 = vrot.lane.b32.xlu0 %v1623, 108
        %v1631 = vpop.permute.xlu0 %1630
        %vm1632 = vcmask 883712
        %v1633 = vsel %vm1632, %v1625, %v1627
        %v1634 = vsel %vm1632, %v1627, %v1629
        %v1635 = vsel %vm1632, %v1629, %v1631
        %v1637 = vsel %vm370, %v1604, 0
        %v1640 = vsel %vm374, %v1633, 0
        %v1643 = vsel %vm374, %v1634, 0
        %v1646 = vsel %vm374, %v1635, 0
        %1648 = vmatprep.subr.bf16.mxu0 %v1643
        %1649 = vmatpush1.bf16.msra.mxu0 %v1640
        %1650 = vmatprep.subr.bf16.mxu0 0
        %1651 = vmatpush1.bf16.msra.mxu0 0
        %1652 = vmatprep.subr.bf16.mxu0 0
        %1653 = vmatpush1.bf16.msra.mxu0 0
        %1654 = vmatprep.subr.bf16.mxu0 0
        %1655 = vmatpush1.bf16.msra.mxu0 0
        %1656 = vmatprep.subr.bf16.mxu0 0
        %1657 = vmatpush1.bf16.msra.mxu0 0
        %1658 = vmatprep.subr.bf16.mxu0 0
        %1659 = vmatpush1.bf16.msra.mxu0 0
        %1660 = vmatprep.subr.bf16.mxu0 0
        %1661 = vmatpush1.bf16.msra.mxu0 0
        %1662 = vmatprep.subr.bf16.mxu0 0
        %1663 = vmatpush1.bf16.msra.mxu0 0
        %1664 = vmatprep.subr.bf16.mxu0 0
        %1665 = vmatpush1.bf16.msra.mxu0 0
        %1666 = vmatprep.subr.bf16.mxu0 0
        %1667 = vmatpush1.bf16.msra.mxu0 0
        %1668 = vmatprep.subr.bf16.mxu0 0
        %1669 = vmatpush1.bf16.msra.mxu0 0
        %1670 = vmatprep.subr.bf16.mxu0 0
        %1671 = vmatpush1.bf16.msra.mxu0 0
        %1672 = vmatprep.subr.bf16.mxu0 0
        %1673 = vmatpush1.bf16.msra.mxu0 0
        %1674 = vmatprep.subr.bf16.mxu0 0
        %1675 = vmatpush1.bf16.msra.mxu0 0
        %1676 = vmatprep.subr.bf16.mxu0 0
        %1677 = vmatpush1.bf16.msra.mxu0 0
        %1678 = vmatprep.subr.bf16.mxu0 0
        %1679 = vmatpush1.bf16.msra.mxu0 0
        %1680 = vmatprep.mubr.bf16.mxu0 0
        %1681 = vmatmul.mubr.bf16.gmra.mrb[0].mxu0 %v1637
        %v1682 = vpop.f32.mrb[0].mxu0
        %v1683 = vadd.f32 0.0, %v1682
        %v1684 = vpop.f32.mrb[0].mxu0
        %v1685 = vadd.f32 0.0, %v1684
        %v1686 = vpop.f32.mrb[0].mxu0
        %v1687 = vpop.f32.mrb[0].mxu0
        %1688 = vdwg.mxu0
        %1689 = vmatprep.subr.bf16.mxu0 0
        %1690 = vmatpush1.bf16.msra.mxu0 %v1646
        %1691 = vmatprep.subr.bf16.mxu0 0
        %1692 = vmatpush1.bf16.msra.mxu0 0
        %1693 = vmatprep.subr.bf16.mxu0 0
        %1694 = vmatpush1.bf16.msra.mxu0 0
        %1695 = vmatprep.subr.bf16.mxu0 0
        %1696 = vmatpush1.bf16.msra.mxu0 0
        %1697 = vmatprep.subr.bf16.mxu0 0
        %1698 = vmatpush1.bf16.msra.mxu0 0
        %1699 = vmatprep.subr.bf16.mxu0 0
        %1700 = vmatpush1.bf16.msra.mxu0 0
        %1701 = vmatprep.subr.bf16.mxu0 0
        %1702 = vmatpush1.bf16.msra.mxu0 0
        %1703 = vmatprep.subr.bf16.mxu0 0
        %1704 = vmatpush1.bf16.msra.mxu0 0
        %1705 = vmatprep.subr.bf16.mxu0 0
        %1706 = vmatpush1.bf16.msra.mxu0 0
        %1707 = vmatprep.subr.bf16.mxu0 0
        %1708 = vmatpush1.bf16.msra.mxu0 0
        %1709 = vmatprep.subr.bf16.mxu0 0
        %1710 = vmatpush1.bf16.msra.mxu0 0
        %1711 = vmatprep.subr.bf16.mxu0 0
        %1712 = vmatpush1.bf16.msra.mxu0 0
        %1713 = vmatprep.subr.bf16.mxu0 0
        %1714 = vmatpush1.bf16.msra.mxu0 0
        %1715 = vmatprep.subr.bf16.mxu0 0
        %1716 = vmatpush1.bf16.msra.mxu0 0
        %1717 = vmatprep.subr.bf16.mxu0 0
        %1718 = vmatpush1.bf16.msra.mxu0 0
        %1719 = vmatprep.subr.bf16.mxu0 0
        %1720 = vmatpush1.bf16.msra.mxu0 0
        %1721 = vmatprep.mubr.bf16.mxu0 0
        %1722 = vmatmul.mubr.bf16.gmra.mrb[0].mxu0 %v1637
        %v1723 = vpop.f32.mrb[0].mxu0
        %v1724 = vadd.f32 0.0, %v1723
        %v1725 = vpop.f32.mrb[0].mxu0
        %v1726 = vpop.f32.mrb[0].mxu0
        %v1727 = vpop.f32.mrb[0].mxu0
        %1728 = vdwg.mxu0
        %v1729 = vadd.f32 %v1600, %v1683
        %v1730 = vadd.f32 %v1601, %v1685
        %v1731 = vadd.f32 %v1602, %v1724
        %s1732 = scalar_lea.vmem [#allocation9], 10
        %v1733 = vld [vmem:[%s1732] sm:$0x3]
        %v1734 = vld [vmem:[%s302] sm:$0xff]
        %v1736 = vcombine.high %v1734, %v1734
        %v1738 = vunpack.c.l.s4 1983009808
        %v1739 = vunpack.c.0.s8 %v1738
        %v1740 = vlaneseq
        %v1741 = vshrl.u32 %v1740, 7
        %v1742 = vsub.s32 %v1739, %v1741
        %v1743 = vrot.slane %v1734, %v1742
        %v1745 = vunpack.c.l.s4 1983009808
        %v1746 = vunpack.c.0.s8 %v1745
        %v1747 = vlaneseq
        %v1748 = vshrl.u32 %v1747, 7
        %v1749 = vsub.s32 %v1746, %v1748
        %v1750 = vrot.slane %v1736, %v1749
        %v1751 = vcombine.high %v1743, %v1743
        %v1752 = vcombine.high %v1750, %v1750
        %1753 = vrot.lane.b32.xlu0 %v1743, 108
        %v1754 = vpop.permute.xlu0 %1753
        %1755 = vrot.lane.b32.xlu0 %v1751, 108
        %v1756 = vpop.permute.xlu0 %1755
        %1757 = vrot.lane.b32.xlu0 %v1750, 108
        %v1758 = vpop.permute.xlu0 %1757
        %1759 = vrot.lane.b32.xlu0 %v1752, 108
        %v1760 = vpop.permute.xlu0 %1759
        %v1761 = vsel %vm1632, %v1754, %v1756
        %v1762 = vsel %vm1632, %v1756, %v1758
        %v1763 = vsel %vm1632, %v1758, %v1760
        %v1765 = vsel %vm370, %v1733, 0
        %v1768 = vsel %vm374, %v1761, 0
        %v1771 = vsel %vm374, %v1762, 0
        %v1774 = vsel %vm374, %v1763, 0
        %1776 = vmatprep.subr.bf16.mxu0 %v1771
        %1777 = vmatpush1.bf16.msra.mxu0 %v1768
        %1778 = vmatprep.subr.bf16.mxu0 0
        %1779 = vmatpush1.bf16.msra.mxu0 0
        %1780 = vmatprep.subr.bf16.mxu0 0
        %1781 = vmatpush1.bf16.msra.mxu0 0
        %1782 = vmatprep.subr.bf16.mxu0 0
        %1783 = vmatpush1.bf16.msra.mxu0 0
        %1784 = vmatprep.subr.bf16.mxu0 0
        %1785 = vmatpush1.bf16.msra.mxu0 0
        %1786 = vmatprep.subr.bf16.mxu0 0
        %1787 = vmatpush1.bf16.msra.mxu0 0
        %1788 = vmatprep.subr.bf16.mxu0 0
        %1789 = vmatpush1.bf16.msra.mxu0 0
        %1790 = vmatprep.subr.bf16.mxu0 0
        %1791 = vmatpush1.bf16.msra.mxu0 0
        %1792 = vmatprep.subr.bf16.mxu0 0
        %1793 = vmatpush1.bf16.msra.mxu0 0
        %1794 = vmatprep.subr.bf16.mxu0 0
        %1795 = vmatpush1.bf16.msra.mxu0 0
        %1796 = vmatprep.subr.bf16.mxu0 0
        %1797 = vmatpush1.bf16.msra.mxu0 0
        %1798 = vmatprep.subr.bf16.mxu0 0
        %1799 = vmatpush1.bf16.msra.mxu0 0
        %1800 = vmatprep.subr.bf16.mxu0 0
        %1801 = vmatpush1.bf16.msra.mxu0 0
        %1802 = vmatprep.subr.bf16.mxu0 0
        %1803 = vmatpush1.bf16.msra.mxu0 0
        %1804 = vmatprep.subr.bf16.mxu0 0
        %1805 = vmatpush1.bf16.msra.mxu0 0
        %1806 = vmatprep.subr.bf16.mxu0 0
        %1807 = vmatpush1.bf16.msra.mxu0 0
        %1808 = vmatprep.mubr.bf16.mxu0 0
        %1809 = vmatmul.mubr.bf16.gmra.mrb[0].mxu0 %v1765
        %v1810 = vpop.f32.mrb[0].mxu0
        %v1811 = vadd.f32 0.0, %v1810
        %v1812 = vpop.f32.mrb[0].mxu0
        %v1813 = vadd.f32 0.0, %v1812
        %v1814 = vpop.f32.mrb[0].mxu0
        %v1815 = vpop.f32.mrb[0].mxu0
        %1816 = vdwg.mxu0
        %1817 = vmatprep.subr.bf16.mxu0 0
        %1818 = vmatpush1.bf16.msra.mxu0 %v1774
        %1819 = vmatprep.subr.bf16.mxu0 0
        %1820 = vmatpush1.bf16.msra.mxu0 0
        %1821 = vmatprep.subr.bf16.mxu0 0
        %1822 = vmatpush1.bf16.msra.mxu0 0
        %1823 = vmatprep.subr.bf16.mxu0 0
        %1824 = vmatpush1.bf16.msra.mxu0 0
        %1825 = vmatprep.subr.bf16.mxu0 0
        %1826 = vmatpush1.bf16.msra.mxu0 0
        %1827 = vmatprep.subr.bf16.mxu0 0
        %1828 = vmatpush1.bf16.msra.mxu0 0
        %1829 = vmatprep.subr.bf16.mxu0 0
        %1830 = vmatpush1.bf16.msra.mxu0 0
        %1831 = vmatprep.subr.bf16.mxu0 0
        %1832 = vmatpush1.bf16.msra.mxu0 0
        %1833 = vmatprep.subr.bf16.mxu0 0
        %1834 = vmatpush1.bf16.msra.mxu0 0
        %1835 = vmatprep.subr.bf16.mxu0 0
        %1836 = vmatpush1.bf16.msra.mxu0 0
        %1837 = vmatprep.subr.bf16.mxu0 0
        %1838 = vmatpush1.bf16.msra.mxu0 0
        %1839 = vmatprep.subr.bf16.mxu0 0
        %1840 = vmatpush1.bf16.msra.mxu0 0
        %1841 = vmatprep.subr.bf16.mxu0 0
        %1842 = vmatpush1.bf16.msra.mxu0 0
        %1843 = vmatprep.subr.bf16.mxu0 0
        %1844 = vmatpush1.bf16.msra.mxu0 0
        %1845 = vmatprep.subr.bf16.mxu0 0
        %1846 = vmatpush1.bf16.msra.mxu0 0
        %1847 = vmatprep.subr.bf16.mxu0 0
        %1848 = vmatpush1.bf16.msra.mxu0 0
        %1849 = vmatprep.mubr.bf16.mxu0 0
        %1850 = vmatmul.mubr.bf16.gmra.mrb[0].mxu0 %v1765
        %v1851 = vpop.f32.mrb[0].mxu0
        %v1852 = vadd.f32 0.0, %v1851
        %v1853 = vpop.f32.mrb[0].mxu0
        %v1854 = vpop.f32.mrb[0].mxu0
        %v1855 = vpop.f32.mrb[0].mxu0
        %1856 = vdwg.mxu0
        %v1857 = vadd.f32 %v1729, %v1811
        %v1858 = vadd.f32 %v1730, %v1813
        %v1859 = vadd.f32 %v1731, %v1852
        %s1860 = scalar_lea.vmem [#allocation8], 12
        %v1861 = vld [vmem:[%s1860] sm:$0x3]
        %v1862 = vld [vmem:[%s293] sm:$0xff]
        %v1864 = vcombine.high %v1862, %v1862
        %v1866 = vunpack.c.l.s4 1983009808
        %v1867 = vunpack.c.0.s8 %v1866
        %v1868 = vlaneseq
        %v1869 = vshrl.u32 %v1868, 7
        %v1870 = vsub.s32 %v1867, %v1869
        %v1871 = vrot.slane %v1862, %v1870
        %v1873 = vunpack.c.l.s4 1983009808
        %v1874 = vunpack.c.0.s8 %v1873
        %v1875 = vlaneseq
        %v1876 = vshrl.u32 %v1875, 7
        %v1877 = vsub.s32 %v1874, %v1876
        %v1878 = vrot.slane %v1864, %v1877
        %v1879 = vcombine.high %v1871, %v1871
        %v1880 = vcombine.high %v1878, %v1878
        %1881 = vrot.lane.b32.xlu0 %v1871, 92
        %v1882 = vpop.permute.xlu0 %1881
        %1883 = vrot.lane.b32.xlu0 %v1879, 92
        %v1884 = vpop.permute.xlu0 %1883
        %1885 = vrot.lane.b32.xlu0 %v1878, 92
        %v1886 = vpop.permute.xlu0 %1885
        %1887 = vrot.lane.b32.xlu0 %v1880, 92
        %v1888 = vpop.permute.xlu0 %1887
        %vm1889 = vcmask 752640
        %v1890 = vsel %vm1889, %v1882, %v1884
        %v1891 = vsel %vm1889, %v1884, %v1886
        %v1892 = vsel %vm1889, %v1886, %v1888
        %v1894 = vsel %vm370, %v1861, 0
        %v1897 = vsel %vm374, %v1890, 0
        %v1900 = vsel %vm374, %v1891, 0
        %v1903 = vsel %vm374, %v1892, 0
        %1905 = vmatprep.subr.bf16.mxu0 %v1900
        %1906 = vmatpush1.bf16.msra.mxu0 %v1897
        %1907 = vmatprep.subr.bf16.mxu0 0
        %1908 = vmatpush1.bf16.msra.mxu0 0
        %1909 = vmatprep.subr.bf16.mxu0 0
        %1910 = vmatpush1.bf16.msra.mxu0 0
        %1911 = vmatprep.subr.bf16.mxu0 0
        %1912 = vmatpush1.bf16.msra.mxu0 0
        %1913 = vmatprep.subr.bf16.mxu0 0
        %1914 = vmatpush1.bf16.msra.mxu0 0
        %1915 = vmatprep.subr.bf16.mxu0 0
        %1916 = vmatpush1.bf16.msra.mxu0 0
        %1917 = vmatprep.subr.bf16.mxu0 0
        %1918 = vmatpush1.bf16.msra.mxu0 0
        %1919 = vmatprep.subr.bf16.mxu0 0
        %1920 = vmatpush1.bf16.msra.mxu0 0
        %1921 = vmatprep.subr.bf16.mxu0 0
        %1922 = vmatpush1.bf16.msra.mxu0 0
        %1923 = vmatprep.subr.bf16.mxu0 0
        %1924 = vmatpush1.bf16.msra.mxu0 0
        %1925 = vmatprep.subr.bf16.mxu0 0
        %1926 = vmatpush1.bf16.msra.mxu0 0
        %1927 = vmatprep.subr.bf16.mxu0 0
        %1928 = vmatpush1.bf16.msra.mxu0 0
        %1929 = vmatprep.subr.bf16.mxu0 0
        %1930 = vmatpush1.bf16.msra.mxu0 0
        %1931 = vmatprep.subr.bf16.mxu0 0
        %1932 = vmatpush1.bf16.msra.mxu0 0
        %1933 = vmatprep.subr.bf16.mxu0 0
        %1934 = vmatpush1.bf16.msra.mxu0 0
        %1935 = vmatprep.subr.bf16.mxu0 0
        %1936 = vmatpush1.bf16.msra.mxu0 0
        %1937 = vmatprep.mubr.bf16.mxu0 0
        %1938 = vmatmul.mubr.bf16.gmra.mrb[0].mxu0 %v1894
        %v1939 = vpop.f32.mrb[0].mxu0
        %v1940 = vadd.f32 0.0, %v1939
        %v1941 = vpop.f32.mrb[0].mxu0
        %v1942 = vadd.f32 0.0, %v1941
        %v1943 = vpop.f32.mrb[0].mxu0
        %v1944 = vpop.f32.mrb[0].mxu0
        %1945 = vdwg.mxu0
        %1946 = vmatprep.subr.bf16.mxu0 0
        %1947 = vmatpush1.bf16.msra.mxu0 %v1903
        %1948 = vmatprep.subr.bf16.mxu0 0
        %1949 = vmatpush1.bf16.msra.mxu0 0
        %1950 = vmatprep.subr.bf16.mxu0 0
        %1951 = vmatpush1.bf16.msra.mxu0 0
        %1952 = vmatprep.subr.bf16.mxu0 0
        %1953 = vmatpush1.bf16.msra.mxu0 0
        %1954 = vmatprep.subr.bf16.mxu0 0
        %1955 = vmatpush1.bf16.msra.mxu0 0
        %1956 = vmatprep.subr.bf16.mxu0 0
        %1957 = vmatpush1.bf16.msra.mxu0 0
        %1958 = vmatprep.subr.bf16.mxu0 0
        %1959 = vmatpush1.bf16.msra.mxu0 0
        %1960 = vmatprep.subr.bf16.mxu0 0
        %1961 = vmatpush1.bf16.msra.mxu0 0
        %1962 = vmatprep.subr.bf16.mxu0 0
        %1963 = vmatpush1.bf16.msra.mxu0 0
        %1964 = vmatprep.subr.bf16.mxu0 0
        %1965 = vmatpush1.bf16.msra.mxu0 0
        %1966 = vmatprep.subr.bf16.mxu0 0
        %1967 = vmatpush1.bf16.msra.mxu0 0
        %1968 = vmatprep.subr.bf16.mxu0 0
        %1969 = vmatpush1.bf16.msra.mxu0 0
        %1970 = vmatprep.subr.bf16.mxu0 0
        %1971 = vmatpush1.bf16.msra.mxu0 0
        %1972 = vmatprep.subr.bf16.mxu0 0
        %1973 = vmatpush1.bf16.msra.mxu0 0
        %1974 = vmatprep.subr.bf16.mxu0 0
        %1975 = vmatpush1.bf16.msra.mxu0 0
        %1976 = vmatprep.subr.bf16.mxu0 0
        %1977 = vmatpush1.bf16.msra.mxu0 0
        %1978 = vmatprep.mubr.bf16.mxu0 0
        %1979 = vmatmul.mubr.bf16.gmra.mrb[0].mxu0 %v1894
        %v1980 = vpop.f32.mrb[0].mxu0
        %v1981 = vadd.f32 0.0, %v1980
        %v1982 = vpop.f32.mrb[0].mxu0
        %v1983 = vpop.f32.mrb[0].mxu0
        %v1984 = vpop.f32.mrb[0].mxu0
        %1985 = vdwg.mxu0
        %v1986 = vadd.f32 %v1857, %v1940
        %v1987 = vadd.f32 %v1858, %v1942
        %v1988 = vadd.f32 %v1859, %v1981
        %s1989 = scalar_lea.vmem [#allocation9], 12
        %v1990 = vld [vmem:[%s1989] sm:$0x3]
        %v1991 = vld [vmem:[%s302] sm:$0xff]
        %v1993 = vcombine.high %v1991, %v1991
        %v1995 = vunpack.c.l.s4 1983009808
        %v1996 = vunpack.c.0.s8 %v1995
        %v1997 = vlaneseq
        %v1998 = vshrl.u32 %v1997, 7
        %v1999 = vsub.s32 %v1996, %v1998
        %v2000 = vrot.slane %v1991, %v1999
        %v2002 = vunpack.c.l.s4 1983009808
        %v2003 = vunpack.c.0.s8 %v2002
        %v2004 = vlaneseq
        %v2005 = vshrl.u32 %v2004, 7
        %v2006 = vsub.s32 %v2003, %v2005
        %v2007 = vrot.slane %v1993, %v2006
        %v2008 = vcombine.high %v2000, %v2000
        %v2009 = vcombine.high %v2007, %v2007
        %2010 = vrot.lane.b32.xlu0 %v2000, 92
        %v2011 = vpop.permute.xlu0 %2010
        %2012 = vrot.lane.b32.xlu0 %v2008, 92
        %v2013 = vpop.permute.xlu0 %2012
        %2014 = vrot.lane.b32.xlu0 %v2007, 92
        %v2015 = vpop.permute.xlu0 %2014
        %2016 = vrot.lane.b32.xlu0 %v2009, 92
        %v2017 = vpop.permute.xlu0 %2016
        %v2018 = vsel %vm1889, %v2011, %v2013
        %v2019 = vsel %vm1889, %v2013, %v2015
        %v2020 = vsel %vm1889, %v2015, %v2017
        %v2022 = vsel %vm370, %v1990, 0
        %v2025 = vsel %vm374, %v2018, 0
        %v2028 = vsel %vm374, %v2019, 0
        %v2031 = vsel %vm374, %v2020, 0
        %2033 = vmatprep.subr.bf16.mxu0 %v2028
        %2034 = vmatpush1.bf16.msra.mxu0 %v2025
        %2035 = vmatprep.subr.bf16.mxu0 0
        %2036 = vmatpush1.bf16.msra.mxu0 0
        %2037 = vmatprep.subr.bf16.mxu0 0
        %2038 = vmatpush1.bf16.msra.mxu0 0
        %2039 = vmatprep.subr.bf16.mxu0 0
        %2040 = vmatpush1.bf16.msra.mxu0 0
        %2041 = vmatprep.subr.bf16.mxu0 0
        %2042 = vmatpush1.bf16.msra.mxu0 0
        %2043 = vmatprep.subr.bf16.mxu0 0
        %2044 = vmatpush1.bf16.msra.mxu0 0
        %2045 = vmatprep.subr.bf16.mxu0 0
        %2046 = vmatpush1.bf16.msra.mxu0 0
        %2047 = vmatprep.subr.bf16.mxu0 0
        %2048 = vmatpush1.bf16.msra.mxu0 0
        %2049 = vmatprep.subr.bf16.mxu0 0
        %2050 = vmatpush1.bf16.msra.mxu0 0
        %2051 = vmatprep.subr.bf16.mxu0 0
        %2052 = vmatpush1.bf16.msra.mxu0 0
        %2053 = vmatprep.subr.bf16.mxu0 0
        %2054 = vmatpush1.bf16.msra.mxu0 0
        %2055 = vmatprep.subr.bf16.mxu0 0
        %2056 = vmatpush1.bf16.msra.mxu0 0
        %2057 = vmatprep.subr.bf16.mxu0 0
        %2058 = vmatpush1.bf16.msra.mxu0 0
        %2059 = vmatprep.subr.bf16.mxu0 0
        %2060 = vmatpush1.bf16.msra.mxu0 0
        %2061 = vmatprep.subr.bf16.mxu0 0
        %2062 = vmatpush1.bf16.msra.mxu0 0
        %2063 = vmatprep.subr.bf16.mxu0 0
        %2064 = vmatpush1.bf16.msra.mxu0 0
        %2065 = vmatprep.mubr.bf16.mxu0 0
        %2066 = vmatmul.mubr.bf16.gmra.mrb[0].mxu0 %v2022
        %v2067 = vpop.f32.mrb[0].mxu0
        %v2068 = vadd.f32 0.0, %v2067
        %v2069 = vpop.f32.mrb[0].mxu0
        %v2070 = vadd.f32 0.0, %v2069
        %v2071 = vpop.f32.mrb[0].mxu0
        %v2072 = vpop.f32.mrb[0].mxu0
        %2073 = vdwg.mxu0
        %2074 = vmatprep.subr.bf16.mxu0 0
        %2075 = vmatpush1.bf16.msra.mxu0 %v2031
        %2076 = vmatprep.subr.bf16.mxu0 0
        %2077 = vmatpush1.bf16.msra.mxu0 0
        %2078 = vmatprep.subr.bf16.mxu0 0
        %2079 = vmatpush1.bf16.msra.mxu0 0
        %2080 = vmatprep.subr.bf16.mxu0 0
        %2081 = vmatpush1.bf16.msra.mxu0 0
        %2082 = vmatprep.subr.bf16.mxu0 0
        %2083 = vmatpush1.bf16.msra.mxu0 0
        %2084 = vmatprep.subr.bf16.mxu0 0
        %2085 = vmatpush1.bf16.msra.mxu0 0
        %2086 = vmatprep.subr.bf16.mxu0 0
        %2087 = vmatpush1.bf16.msra.mxu0 0
        %2088 = vmatprep.subr.bf16.mxu0 0
        %2089 = vmatpush1.bf16.msra.mxu0 0
        %2090 = vmatprep.subr.bf16.mxu0 0
        %2091 = vmatpush1.bf16.msra.mxu0 0
        %2092 = vmatprep.subr.bf16.mxu0 0
        %2093 = vmatpush1.bf16.msra.mxu0 0
        %2094 = vmatprep.subr.bf16.mxu0 0
        %2095 = vmatpush1.bf16.msra.mxu0 0
        %2096 = vmatprep.subr.bf16.mxu0 0
        %2097 = vmatpush1.bf16.msra.mxu0 0
        %2098 = vmatprep.subr.bf16.mxu0 0
        %2099 = vmatpush1.bf16.msra.mxu0 0
        %2100 = vmatprep.subr.bf16.mxu0 0
        %2101 = vmatpush1.bf16.msra.mxu0 0
        %2102 = vmatprep.subr.bf16.mxu0 0
        %2103 = vmatpush1.bf16.msra.mxu0 0
        %2104 = vmatprep.subr.bf16.mxu0 0
        %2105 = vmatpush1.bf16.msra.mxu0 0
        %2106 = vmatprep.mubr.bf16.mxu0 0
        %2107 = vmatmul.mubr.bf16.gmra.mrb[0].mxu0 %v2022
        %v2108 = vpop.f32.mrb[0].mxu0
        %v2109 = vadd.f32 0.0, %v2108
        %v2110 = vpop.f32.mrb[0].mxu0
        %v2111 = vpop.f32.mrb[0].mxu0
        %v2112 = vpop.f32.mrb[0].mxu0
        %2113 = vdwg.mxu0
        %v2114 = vadd.f32 %v1986, %v2068
        %v2115 = vadd.f32 %v1987, %v2070
        %v2116 = vadd.f32 %v1988, %v2109
        %s2117 = scalar_lea.vmem [#allocation8], 14
        %v2118 = vld [vmem:[%s2117] sm:$0x3]
        %v2119 = vld [vmem:[%s293] sm:$0xff]
        %v2121 = vcombine.high %v2119, %v2119
        %v2123 = vunpack.c.l.s4 1983009808
        %v2124 = vunpack.c.0.s8 %v2123
        %v2125 = vlaneseq
        %v2126 = vshrl.u32 %v2125, 7
        %v2127 = vsub.s32 %v2124, %v2126
        %v2128 = vrot.slane %v2119, %v2127
        %v2130 = vunpack.c.l.s4 1983009808
        %v2131 = vunpack.c.0.s8 %v2130
        %v2132 = vlaneseq
        %v2133 = vshrl.u32 %v2132, 7
        %v2134 = vsub.s32 %v2131, %v2133
        %v2135 = vrot.slane %v2121, %v2134
        %v2136 = vcombine.high %v2128, %v2128
        %v2137 = vcombine.high %v2135, %v2135
        %2138 = vrot.lane.b32.xlu0 %v2128, 91
        %v2139 = vpop.permute.xlu0 %2138
        %2140 = vrot.lane.b32.xlu0 %v2136, 91
        %v2141 = vpop.permute.xlu0 %2140
        %2142 = vrot.lane.b32.xlu0 %v2135, 91
        %v2143 = vpop.permute.xlu0 %2142
        %2144 = vrot.lane.b32.xlu0 %v2137, 91
        %v2145 = vpop.permute.xlu0 %2144
        %vm2146 = vcmask 744448
        %v2147 = vsel %vm2146, %v2139, %v2141
        %v2148 = vsel %vm2146, %v2141, %v2143
        %v2149 = vsel %vm2146, %v2143, %v2145
        %v2151 = vsel %vm370, %v2118, 0
        %v2154 = vsel %vm374, %v2147, 0
        %v2157 = vsel %vm374, %v2148, 0
        %v2160 = vsel %vm374, %v2149, 0
        %2162 = vmatprep.subr.bf16.mxu0 %v2157
        %2163 = vmatpush1.bf16.msra.mxu0 %v2154
        %2164 = vmatprep.subr.bf16.mxu0 0
        %2165 = vmatpush1.bf16.msra.mxu0 0
        %2166 = vmatprep.subr.bf16.mxu0 0
        %2167 = vmatpush1.bf16.msra.mxu0 0
        %2168 = vmatprep.subr.bf16.mxu0 0
        %2169 = vmatpush1.bf16.msra.mxu0 0
        %2170 = vmatprep.subr.bf16.mxu0 0
        %2171 = vmatpush1.bf16.msra.mxu0 0
        %2172 = vmatprep.subr.bf16.mxu0 0
        %2173 = vmatpush1.bf16.msra.mxu0 0
        %2174 = vmatprep.subr.bf16.mxu0 0
        %2175 = vmatpush1.bf16.msra.mxu0 0
        %2176 = vmatprep.subr.bf16.mxu0 0
        %2177 = vmatpush1.bf16.msra.mxu0 0
        %2178 = vmatprep.subr.bf16.mxu0 0
        %2179 = vmatpush1.bf16.msra.mxu0 0
        %2180 = vmatprep.subr.bf16.mxu0 0
        %2181 = vmatpush1.bf16.msra.mxu0 0
        %2182 = vmatprep.subr.bf16.mxu0 0
        %2183 = vmatpush1.bf16.msra.mxu0 0
        %2184 = vmatprep.subr.bf16.mxu0 0
        %2185 = vmatpush1.bf16.msra.mxu0 0
        %2186 = vmatprep.subr.bf16.mxu0 0
        %2187 = vmatpush1.bf16.msra.mxu0 0
        %2188 = vmatprep.subr.bf16.mxu0 0
        %2189 = vmatpush1.bf16.msra.mxu0 0
        %2190 = vmatprep.subr.bf16.mxu0 0
        %2191 = vmatpush1.bf16.msra.mxu0 0
        %2192 = vmatprep.subr.bf16.mxu0 0
        %2193 = vmatpush1.bf16.msra.mxu0 0
        %2194 = vmatprep.mubr.bf16.mxu0 0
        %2195 = vmatmul.mubr.bf16.gmra.mrb[0].mxu0 %v2151
        %v2196 = vpop.f32.mrb[0].mxu0
        %v2197 = vadd.f32 0.0, %v2196
        %v2198 = vpop.f32.mrb[0].mxu0
        %v2199 = vadd.f32 0.0, %v2198
        %v2200 = vpop.f32.mrb[0].mxu0
        %v2201 = vpop.f32.mrb[0].mxu0
        %2202 = vdwg.mxu0
        %2203 = vmatprep.subr.bf16.mxu0 0
        %2204 = vmatpush1.bf16.msra.mxu0 %v2160
        %2205 = vmatprep.subr.bf16.mxu0 0
        %2206 = vmatpush1.bf16.msra.mxu0 0
        %2207 = vmatprep.subr.bf16.mxu0 0
        %2208 = vmatpush1.bf16.msra.mxu0 0
        %2209 = vmatprep.subr.bf16.mxu0 0
        %2210 = vmatpush1.bf16.msra.mxu0 0
        %2211 = vmatprep.subr.bf16.mxu0 0
        %2212 = vmatpush1.bf16.msra.mxu0 0
        %2213 = vmatprep.subr.bf16.mxu0 0
        %2214 = vmatpush1.bf16.msra.mxu0 0
        %2215 = vmatprep.subr.bf16.mxu0 0
        %2216 = vmatpush1.bf16.msra.mxu0 0
        %2217 = vmatprep.subr.bf16.mxu0 0
        %2218 = vmatpush1.bf16.msra.mxu0 0
        %2219 = vmatprep.subr.bf16.mxu0 0
        %2220 = vmatpush1.bf16.msra.mxu0 0
        %2221 = vmatprep.subr.bf16.mxu0 0
        %2222 = vmatpush1.bf16.msra.mxu0 0
        %2223 = vmatprep.subr.bf16.mxu0 0
        %2224 = vmatpush1.bf16.msra.mxu0 0
        %2225 = vmatprep.subr.bf16.mxu0 0
        %2226 = vmatpush1.bf16.msra.mxu0 0
        %2227 = vmatprep.subr.bf16.mxu0 0
        %2228 = vmatpush1.bf16.msra.mxu0 0
        %2229 = vmatprep.subr.bf16.mxu0 0
        %2230 = vmatpush1.bf16.msra.mxu0 0
        %2231 = vmatprep.subr.bf16.mxu0 0
        %2232 = vmatpush1.bf16.msra.mxu0 0
        %2233 = vmatprep.subr.bf16.mxu0 0
        %2234 = vmatpush1.bf16.msra.mxu0 0
        %2235 = vmatprep.mubr.bf16.mxu0 0
        %2236 = vmatmul.mubr.bf16.gmra.mrb[0].mxu0 %v2151
        %v2237 = vpop.f32.mrb[0].mxu0
        %v2238 = vadd.f32 0.0, %v2237
        %v2239 = vpop.f32.mrb[0].mxu0
        %v2240 = vpop.f32.mrb[0].mxu0
        %v2241 = vpop.f32.mrb[0].mxu0
        %2242 = vdwg.mxu0
        %v2243 = vadd.f32 %v2114, %v2197
        %v2244 = vadd.f32 %v2115, %v2199
        %v2245 = vadd.f32 %v2116, %v2238
        %s2246 = scalar_lea.vmem [#allocation9], 14
        %v2247 = vld [vmem:[%s2246] sm:$0x3]
        %v2248 = vld [vmem:[%s302] sm:$0xff]
        %v2250 = vcombine.high %v2248, %v2248
        %v2252 = vunpack.c.l.s4 1983009808
        %v2253 = vunpack.c.0.s8 %v2252
        %v2254 = vlaneseq
        %v2255 = vshrl.u32 %v2254, 7
        %v2256 = vsub.s32 %v2253, %v2255
        %v2257 = vrot.slane %v2248, %v2256
        %v2259 = vunpack.c.l.s4 1983009808
        %v2260 = vunpack.c.0.s8 %v2259
        %v2261 = vlaneseq
        %v2262 = vshrl.u32 %v2261, 7
        %v2263 = vsub.s32 %v2260, %v2262
        %v2264 = vrot.slane %v2250, %v2263
        %v2265 = vcombine.high %v2257, %v2257
        %v2266 = vcombine.high %v2264, %v2264
        %2267 = vrot.lane.b32.xlu0 %v2257, 91
        %v2268 = vpop.permute.xlu0 %2267
        %2269 = vrot.lane.b32.xlu0 %v2265, 91
        %v2270 = vpop.permute.xlu0 %2269
        %2271 = vrot.lane.b32.xlu0 %v2264, 91
        %v2272 = vpop.permute.xlu0 %2271
        %2273 = vrot.lane.b32.xlu0 %v2266, 91
        %v2274 = vpop.permute.xlu0 %2273
        %v2275 = vsel %vm2146, %v2268, %v2270
        %v2276 = vsel %vm2146, %v2270, %v2272
        %v2277 = vsel %vm2146, %v2272, %v2274
        %v2279 = vsel %vm370, %v2247, 0
        %v2282 = vsel %vm374, %v2275, 0
        %v2285 = vsel %vm374, %v2276, 0
        %v2288 = vsel %vm374, %v2277, 0
        %2290 = vmatprep.subr.bf16.mxu0 %v2285
        %2291 = vmatpush1.bf16.msra.mxu0 %v2282
        %2292 = vmatprep.subr.bf16.mxu0 0
        %2293 = vmatpush1.bf16.msra.mxu0 0
        %2294 = vmatprep.subr.bf16.mxu0 0
        %2295 = vmatpush1.bf16.msra.mxu0 0
        %2296 = vmatprep.subr.bf16.mxu0 0
        %2297 = vmatpush1.bf16.msra.mxu0 0
        %2298 = vmatprep.subr.bf16.mxu0 0
        %2299 = vmatpush1.bf16.msra.mxu0 0
        %2300 = vmatprep.subr.bf16.mxu0 0
        %2301 = vmatpush1.bf16.msra.mxu0 0
        %2302 = vmatprep.subr.bf16.mxu0 0
        %2303 = vmatpush1.bf16.msra.mxu0 0
        %2304 = vmatprep.subr.bf16.mxu0 0
        %2305 = vmatpush1.bf16.msra.mxu0 0
        %2306 = vmatprep.subr.bf16.mxu0 0
        %2307 = vmatpush1.bf16.msra.mxu0 0
        %2308 = vmatprep.subr.bf16.mxu0 0
        %2309 = vmatpush1.bf16.msra.mxu0 0
        %2310 = vmatprep.subr.bf16.mxu0 0
        %2311 = vmatpush1.bf16.msra.mxu0 0
        %2312 = vmatprep.subr.bf16.mxu0 0
        %2313 = vmatpush1.bf16.msra.mxu0 0
        %2314 = vmatprep.subr.bf16.mxu0 0
        %2315 = vmatpush1.bf16.msra.mxu0 0
        %2316 = vmatprep.subr.bf16.mxu0 0
        %2317 = vmatpush1.bf16.msra.mxu0 0
        %2318 = vmatprep.subr.bf16.mxu0 0
        %2319 = vmatpush1.bf16.msra.mxu0 0
        %2320 = vmatprep.subr.bf16.mxu0 0
        %2321 = vmatpush1.bf16.msra.mxu0 0
        %2322 = vmatprep.mubr.bf16.mxu0 0
        %2323 = vmatmul.mubr.bf16.gmra.mrb[0].mxu0 %v2279
        %v2324 = vpop.f32.mrb[0].mxu0
        %v2325 = vadd.f32 0.0, %v2324
        %v2326 = vpop.f32.mrb[0].mxu0
        %v2327 = vadd.f32 0.0, %v2326
        %v2328 = vpop.f32.mrb[0].mxu0
        %v2329 = vpop.f32.mrb[0].mxu0
        %2330 = vdwg.mxu0
        %2331 = vmatprep.subr.bf16.mxu0 0
        %2332 = vmatpush1.bf16.msra.mxu0 %v2288
        %2333 = vmatprep.subr.bf16.mxu0 0
        %2334 = vmatpush1.bf16.msra.mxu0 0
        %2335 = vmatprep.subr.bf16.mxu0 0
        %2336 = vmatpush1.bf16.msra.mxu0 0
        %2337 = vmatprep.subr.bf16.mxu0 0
        %2338 = vmatpush1.bf16.msra.mxu0 0
        %2339 = vmatprep.subr.bf16.mxu0 0
        %2340 = vmatpush1.bf16.msra.mxu0 0
        %2341 = vmatprep.subr.bf16.mxu0 0
        %2342 = vmatpush1.bf16.msra.mxu0 0
        %2343 = vmatprep.subr.bf16.mxu0 0
        %2344 = vmatpush1.bf16.msra.mxu0 0
        %2345 = vmatprep.subr.bf16.mxu0 0
        %2346 = vmatpush1.bf16.msra.mxu0 0
        %2347 = vmatprep.subr.bf16.mxu0 0
        %2348 = vmatpush1.bf16.msra.mxu0 0
        %2349 = vmatprep.subr.bf16.mxu0 0
        %2350 = vmatpush1.bf16.msra.mxu0 0
        %2351 = vmatprep.subr.bf16.mxu0 0
        %2352 = vmatpush1.bf16.msra.mxu0 0
        %2353 = vmatprep.subr.bf16.mxu0 0
        %2354 = vmatpush1.bf16.msra.mxu0 0
        %2355 = vmatprep.subr.bf16.mxu0 0
        %2356 = vmatpush1.bf16.msra.mxu0 0
        %2357 = vmatprep.subr.bf16.mxu0 0
        %2358 = vmatpush1.bf16.msra.mxu0 0
        %2359 = vmatprep.subr.bf16.mxu0 0
        %2360 = vmatpush1.bf16.msra.mxu0 0
        %2361 = vmatprep.subr.bf16.mxu0 0
        %2362 = vmatpush1.bf16.msra.mxu0 0
        %2363 = vmatprep.mubr.bf16.mxu0 0
        %2364 = vmatmul.mubr.bf16.gmra.mrb[0].mxu0 %v2279
        %v2365 = vpop.f32.mrb[0].mxu0
        %v2366 = vadd.f32 0.0, %v2365
        %v2367 = vpop.f32.mrb[0].mxu0
        %v2368 = vpop.f32.mrb[0].mxu0
        %v2369 = vpop.f32.mrb[0].mxu0
        %2370 = vdwg.mxu0
        %v2371 = vadd.f32 %v2243, %v2325
        %v2372 = vadd.f32 %v2244, %v2327
        %v2373 = vadd.f32 %v2245, %v2366
        %s2374 = scalar_lea.vmem [#allocation8], 16
        %v2375 = vld [vmem:[%s2374] sm:$0x3]
        %v2376 = vld [vmem:[%s293] sm:$0xff]
        %v2378 = vcombine.high %v2376, %v2376
        %v2380 = vunpack.c.l.s4 1983009808
        %v2381 = vunpack.c.0.s8 %v2380
        %v2382 = vlaneseq
        %v2383 = vshrl.u32 %v2382, 7
        %v2384 = vsub.s32 %v2381, %v2383
        %v2385 = vrot.slane %v2376, %v2384
        %v2387 = vunpack.c.l.s4 1983009808
        %v2388 = vunpack.c.0.s8 %v2387
        %v2389 = vlaneseq
        %v2390 = vshrl.u32 %v2389, 7
        %v2391 = vsub.s32 %v2388, %v2390
        %v2392 = vrot.slane %v2378, %v2391
        %v2393 = vcombine.high %v2385, %v2385
        %v2394 = vcombine.high %v2392, %v2392
        %2395 = vrot.lane.b32.xlu0 %v2385, 90
        %v2396 = vpop.permute.xlu0 %2395
        %2397 = vrot.lane.b32.xlu0 %v2393, 90
        %v2398 = vpop.permute.xlu0 %2397
        %2399 = vrot.lane.b32.xlu0 %v2392, 90
        %v2400 = vpop.permute.xlu0 %2399
        %2401 = vrot.lane.b32.xlu0 %v2394, 90
        %v2402 = vpop.permute.xlu0 %2401
        %vm2403 = vcmask 736256
        %v2404 = vsel %vm2403, %v2396, %v2398
        %v2405 = vsel %vm2403, %v2398, %v2400
        %v2406 = vsel %vm2403, %v2400, %v2402
        %v2408 = vsel %vm370, %v2375, 0
        %v2411 = vsel %vm374, %v2404, 0
        %v2414 = vsel %vm374, %v2405, 0
        %v2417 = vsel %vm374, %v2406, 0
        %2419 = vmatprep.subr.bf16.mxu0 %v2414
        %2420 = vmatpush1.bf16.msra.mxu0 %v2411
        %2421 = vmatprep.subr.bf16.mxu0 0
        %2422 = vmatpush1.bf16.msra.mxu0 0
        %2423 = vmatprep.subr.bf16.mxu0 0
        %2424 = vmatpush1.bf16.msra.mxu0 0
        %2425 = vmatprep.subr.bf16.mxu0 0
        %2426 = vmatpush1.bf16.msra.mxu0 0
        %2427 = vmatprep.subr.bf16.mxu0 0
        %2428 = vmatpush1.bf16.msra.mxu0 0
        %2429 = vmatprep.subr.bf16.mxu0 0
        %2430 = vmatpush1.bf16.msra.mxu0 0
        %2431 = vmatprep.subr.bf16.mxu0 0
        %2432 = vmatpush1.bf16.msra.mxu0 0
        %2433 = vmatprep.subr.bf16.mxu0 0
        %2434 = vmatpush1.bf16.msra.mxu0 0
        %2435 = vmatprep.subr.bf16.mxu0 0
        %2436 = vmatpush1.bf16.msra.mxu0 0
        %2437 = vmatprep.subr.bf16.mxu0 0
        %2438 = vmatpush1.bf16.msra.mxu0 0
        %2439 = vmatprep.subr.bf16.mxu0 0
        %2440 = vmatpush1.bf16.msra.mxu0 0
        %2441 = vmatprep.subr.bf16.mxu0 0
        %2442 = vmatpush1.bf16.msra.mxu0 0
        %2443 = vmatprep.subr.bf16.mxu0 0
        %2444 = vmatpush1.bf16.msra.mxu0 0
        %2445 = vmatprep.subr.bf16.mxu0 0
        %2446 = vmatpush1.bf16.msra.mxu0 0
        %2447 = vmatprep.subr.bf16.mxu0 0
        %2448 = vmatpush1.bf16.msra.mxu0 0
        %2449 = vmatprep.subr.bf16.mxu0 0
        %2450 = vmatpush1.bf16.msra.mxu0 0
        %2451 = vmatprep.mubr.bf16.mxu0 0
        %2452 = vmatmul.mubr.bf16.gmra.mrb[0].mxu0 %v2408
        %v2453 = vpop.f32.mrb[0].mxu0
        %v2454 = vadd.f32 0.0, %v2453
        %v2455 = vpop.f32.mrb[0].mxu0
        %v2456 = vadd.f32 0.0, %v2455
        %v2457 = vpop.f32.mrb[0].mxu0
        %v2458 = vpop.f32.mrb[0].mxu0
        %2459 = vdwg.mxu0
        %2460 = vmatprep.subr.bf16.mxu0 0
        %2461 = vmatpush1.bf16.msra.mxu0 %v2417
        %2462 = vmatprep.subr.bf16.mxu0 0
        %2463 = vmatpush1.bf16.msra.mxu0 0
        %2464 = vmatprep.subr.bf16.mxu0 0
        %2465 = vmatpush1.bf16.msra.mxu0 0
        %2466 = vmatprep.subr.bf16.mxu0 0
        %2467 = vmatpush1.bf16.msra.mxu0 0
        %2468 = vmatprep.subr.bf16.mxu0 0
        %2469 = vmatpush1.bf16.msra.mxu0 0
        %2470 = vmatprep.subr.bf16.mxu0 0
        %2471 = vmatpush1.bf16.msra.mxu0 0
        %2472 = vmatprep.subr.bf16.mxu0 0
        %2473 = vmatpush1.bf16.msra.mxu0 0
        %2474 = vmatprep.subr.bf16.mxu0 0
        %2475 = vmatpush1.bf16.msra.mxu0 0
        %2476 = vmatprep.subr.bf16.mxu0 0
        %2477 = vmatpush1.bf16.msra.mxu0 0
        %2478 = vmatprep.subr.bf16.mxu0 0
        %2479 = vmatpush1.bf16.msra.mxu0 0
        %2480 = vmatprep.subr.bf16.mxu0 0
        %2481 = vmatpush1.bf16.msra.mxu0 0
        %2482 = vmatprep.subr.bf16.mxu0 0
        %2483 = vmatpush1.bf16.msra.mxu0 0
        %2484 = vmatprep.subr.bf16.mxu0 0
        %2485 = vmatpush1.bf16.msra.mxu0 0
        %2486 = vmatprep.subr.bf16.mxu0 0
        %2487 = vmatpush1.bf16.msra.mxu0 0
        %2488 = vmatprep.subr.bf16.mxu0 0
        %2489 = vmatpush1.bf16.msra.mxu0 0
        %2490 = vmatprep.subr.bf16.mxu0 0
        %2491 = vmatpush1.bf16.msra.mxu0 0
        %2492 = vmatprep.mubr.bf16.mxu0 0
        %2493 = vmatmul.mubr.bf16.gmra.mrb[0].mxu0 %v2408
        %v2494 = vpop.f32.mrb[0].mxu0
        %v2495 = vadd.f32 0.0, %v2494
        %v2496 = vpop.f32.mrb[0].mxu0
        %v2497 = vpop.f32.mrb[0].mxu0
        %v2498 = vpop.f32.mrb[0].mxu0
        %2499 = vdwg.mxu0
        %v2500 = vadd.f32 %v2371, %v2454
        %v2501 = vadd.f32 %v2372, %v2456
        %v2502 = vadd.f32 %v2373, %v2495
        %s2503 = scalar_lea.vmem [#allocation9], 16
        %v2504 = vld [vmem:[%s2503] sm:$0x3]
        %v2505 = vld [vmem:[%s302] sm:$0xff]
        %v2507 = vcombine.high %v2505, %v2505
        %v2509 = vunpack.c.l.s4 1983009808
        %v2510 = vunpack.c.0.s8 %v2509
        %v2511 = vlaneseq
        %v2512 = vshrl.u32 %v2511, 7
        %v2513 = vsub.s32 %v2510, %v2512
        %v2514 = vrot.slane %v2505, %v2513
        %v2516 = vunpack.c.l.s4 1983009808
        %v2517 = vunpack.c.0.s8 %v2516
        %v2518 = vlaneseq
        %v2519 = vshrl.u32 %v2518, 7
        %v2520 = vsub.s32 %v2517, %v2519
        %v2521 = vrot.slane %v2507, %v2520
        %v2522 = vcombine.high %v2514, %v2514
        %v2523 = vcombine.high %v2521, %v2521
        %2524 = vrot.lane.b32.xlu0 %v2514, 90
        %v2525 = vpop.permute.xlu0 %2524
        %2526 = vrot.lane.b32.xlu0 %v2522, 90
        %v2527 = vpop.permute.xlu0 %2526
        %2528 = vrot.lane.b32.xlu0 %v2521, 90
        %v2529 = vpop.permute.xlu0 %2528
        %2530 = vrot.lane.b32.xlu0 %v2523, 90
        %v2531 = vpop.permute.xlu0 %2530
        %v2532 = vsel %vm2403, %v2525, %v2527
        %v2533 = vsel %vm2403, %v2527, %v2529
        %v2534 = vsel %vm2403, %v2529, %v2531
        %v2536 = vsel %vm370, %v2504, 0
        %v2539 = vsel %vm374, %v2532, 0
        %v2542 = vsel %vm374, %v2533, 0
        %v2545 = vsel %vm374, %v2534, 0
        %2547 = vmatprep.subr.bf16.mxu0 %v2542
        %2548 = vmatpush1.bf16.msra.mxu0 %v2539
        %2549 = vmatprep.subr.bf16.mxu0 0
        %2550 = vmatpush1.bf16.msra.mxu0 0
        %2551 = vmatprep.subr.bf16.mxu0 0
        %2552 = vmatpush1.bf16.msra.mxu0 0
        %2553 = vmatprep.subr.bf16.mxu0 0
        %2554 = vmatpush1.bf16.msra.mxu0 0
        %2555 = vmatprep.subr.bf16.mxu0 0
        %2556 = vmatpush1.bf16.msra.mxu0 0
        %2557 = vmatprep.subr.bf16.mxu0 0
        %2558 = vmatpush1.bf16.msra.mxu0 0
        %2559 = vmatprep.subr.bf16.mxu0 0
        %2560 = vmatpush1.bf16.msra.mxu0 0
        %2561 = vmatprep.subr.bf16.mxu0 0
        %2562 = vmatpush1.bf16.msra.mxu0 0
        %2563 = vmatprep.subr.bf16.mxu0 0
        %2564 = vmatpush1.bf16.msra.mxu0 0
        %2565 = vmatprep.subr.bf16.mxu0 0
        %2566 = vmatpush1.bf16.msra.mxu0 0
        %2567 = vmatprep.subr.bf16.mxu0 0
        %2568 = vmatpush1.bf16.msra.mxu0 0
        %2569 = vmatprep.subr.bf16.mxu0 0
        %2570 = vmatpush1.bf16.msra.mxu0 0
        %2571 = vmatprep.subr.bf16.mxu0 0
        %2572 = vmatpush1.bf16.msra.mxu0 0
        %2573 = vmatprep.subr.bf16.mxu0 0
        %2574 = vmatpush1.bf16.msra.mxu0 0
        %2575 = vmatprep.subr.bf16.mxu0 0
        %2576 = vmatpush1.bf16.msra.mxu0 0
        %2577 = vmatprep.subr.bf16.mxu0 0
        %2578 = vmatpush1.bf16.msra.mxu0 0
        %2579 = vmatprep.mubr.bf16.mxu0 0
        %2580 = vmatmul.mubr.bf16.gmra.mrb[0].mxu0 %v2536
        %v2581 = vpop.f32.mrb[0].mxu0
        %v2582 = vadd.f32 0.0, %v2581
        %v2583 = vpop.f32.mrb[0].mxu0
        %v2584 = vadd.f32 0.0, %v2583
        %v2585 = vpop.f32.mrb[0].mxu0
        %v2586 = vpop.f32.mrb[0].mxu0
        %2587 = vdwg.mxu0
        %2588 = vmatprep.subr.bf16.mxu0 0
        %2589 = vmatpush1.bf16.msra.mxu0 %v2545
        %2590 = vmatprep.subr.bf16.mxu0 0
        %2591 = vmatpush1.bf16.msra.mxu0 0
        %2592 = vmatprep.subr.bf16.mxu0 0
        %2593 = vmatpush1.bf16.msra.mxu0 0
        %2594 = vmatprep.subr.bf16.mxu0 0
        %2595 = vmatpush1.bf16.msra.mxu0 0
        %2596 = vmatprep.subr.bf16.mxu0 0
        %2597 = vmatpush1.bf16.msra.mxu0 0
        %2598 = vmatprep.subr.bf16.mxu0 0
        %2599 = vmatpush1.bf16.msra.mxu0 0
        %2600 = vmatprep.subr.bf16.mxu0 0
        %2601 = vmatpush1.bf16.msra.mxu0 0
        %2602 = vmatprep.subr.bf16.mxu0 0
        %2603 = vmatpush1.bf16.msra.mxu0 0
        %2604 = vmatprep.subr.bf16.mxu0 0
        %2605 = vmatpush1.bf16.msra.mxu0 0
        %2606 = vmatprep.subr.bf16.mxu0 0
        %2607 = vmatpush1.bf16.msra.mxu0 0
        %2608 = vmatprep.subr.bf16.mxu0 0
        %2609 = vmatpush1.bf16.msra.mxu0 0
        %2610 = vmatprep.subr.bf16.mxu0 0
        %2611 = vmatpush1.bf16.msra.mxu0 0
        %2612 = vmatprep.subr.bf16.mxu0 0
        %2613 = vmatpush1.bf16.msra.mxu0 0
        %2614 = vmatprep.subr.bf16.mxu0 0
        %2615 = vmatpush1.bf16.msra.mxu0 0
        %2616 = vmatprep.subr.bf16.mxu0 0
        %2617 = vmatpush1.bf16.msra.mxu0 0
        %2618 = vmatprep.subr.bf16.mxu0 0
        %2619 = vmatpush1.bf16.msra.mxu0 0
        %2620 = vmatprep.mubr.bf16.mxu0 0
        %2621 = vmatmul.mubr.bf16.gmra.mrb[0].mxu0 %v2536
        %v2622 = vpop.f32.mrb[0].mxu0
        %v2623 = vadd.f32 0.0, %v2622
        %v2624 = vpop.f32.mrb[0].mxu0
        %v2625 = vpop.f32.mrb[0].mxu0
        %v2626 = vpop.f32.mrb[0].mxu0
        %2627 = vdwg.mxu0
        %v2628 = vadd.f32 %v2500, %v2582
        %v2629 = vadd.f32 %v2501, %v2584
        %v2630 = vadd.f32 %v2502, %v2623
        %v2631 = vld [vmem:[#allocation11] sm:$0x7]
        %v2633 = vlaneseq
        %v2634 = vshrl.u32 %v2633, 7
        %v2635 = vsub.s32 0, %v2634
        %v2636 = vrot.slane %v2631, %v2635
        %v2637 = vlaneseq
        %v2638 = vshrl.u32 %v2637, 7
        %v2639 = vsub.s32 1, %v2638
        %v2640 = vrot.slane %v2631, %v2639
        %v2641 = vlaneseq
        %v2642 = vshrl.u32 %v2641, 7
        %v2643 = vsub.s32 2, %v2642
        %v2644 = vrot.slane %v2631, %v2643
        %v2648 = vmul.f32 %v2628, %v2636
        %v2649 = vmul.f32 %v2629, %v2640
        %v2650 = vmul.f32 %v2630, %v2644
        %vm2651 = vcmask 1043456
        %v2652 = vsel %vm2651, %v2648, 0.0
        %v2653 = vsel %vm2651, %v2649, 0.0
        %v2654 = vadd.f32 %v2652, %v2653
        %v2655 = vsel %vm2651, %v2650, 0.0
        %v2656 = vadd.f32 %v2654, %v2655
        %2657 = vadd.xlane.f32.xlu0 %v2656
        %v2658 = vpop.xlane.xlu0 %2657
        %v2659 = vmul.f32 %v2628, %v2628
        %v2660 = vmul.f32 %v2629, %v2629
        %v2661 = vmul.f32 %v2630, %v2630
        %v2662 = vmul.f32 %v2659, %v2636
        %v2663 = vmul.f32 %v2660, %v2640
        %v2664 = vmul.f32 %v2661, %v2644
        %v2665 = vsel %vm2651, %v2662, 0.0
        %v2666 = vsel %vm2651, %v2663, 0.0
        %v2667 = vadd.f32 %v2665, %v2666
        %v2668 = vsel %vm2651, %v2664, 0.0
        %v2669 = vadd.f32 %v2667, %v2668
        %2670 = vadd.xlane.f32.xlu0 %v2669
        %v2671 = vpop.xlane.xlu0 %2670
        %v2672 = vmul.f32 %v2658, 0.00390625
        %v2673 = vmul.f32 %v2671, 0.00390625
        %v2674 = vmul.f32 %v2672, %v2672
        %v2675 = vsub.f32 %v2673, %v2674
        %v2676 = vadd.f32 %v2675, 1e-05
        %v2677 = vrsqrt.pop %v2676
        %v2678 = vsub.f32 %v2628, %v2672
        %v2679 = vsub.f32 %v2629, %v2672
        %v2680 = vsub.f32 %v2630, %v2672
        %v2681 = vmul.f32 %v2678, %v2677
        %v2682 = vmul.f32 %v2679, %v2677
        %v2683 = vmul.f32 %v2680, %v2677
        %vm2684 = vcmp.ge.f32.partialorder %v2681, 0.0
        %vm2685 = vcmp.ge.f32.partialorder %v2682, 0.0
        %vm2686 = vcmp.ge.f32.partialorder %v2683, 0.0
        %s2687 = sld [smem:[#allocation2]]
        %v2688 = vstv %s2687
        %v2689 = vmul.f32 %v2681, %v2688
        %v2690 = vmul.f32 %v2682, %v2688
        %v2691 = vmul.f32 %v2683, %v2688
        %v2692 = vsel %vm2684, %v2681, %v2689
        %v2693 = vsel %vm2685, %v2682, %v2690
        %v2694 = vsel %vm2686, %v2683, %v2691
        %v2697 = vcombine.low %v2692, %v2693
        %2699 = vst [vmem:[%s347] sm:$0xff] %v2697
        %2700 = vst [vmem:[%s347 + $0x8] sm:$0xf] %v2694
        %s2701 = sand.u32 %s172, 1
        %s2702 = scalar_lea.sflag [#allocation5], %s2701
        %s2703 = sand.u32 %s172, 1
        %s2704 = smul.addr %s2703, 12
        %s2705 = scalar_lea.vmem [#allocation12], %s2704
        // Predicated region
        $region65: #{unet_de_forward.3} parent=43 // pred_check
          %p2706 = pneg %p182
        $region66: #{unet_de_forward.3} parent=43 // pred_check_branch
          %2708 = sbr.rel (%p2706) target = $region68
        $region67: #{unet_de_forward.3} parent=43 // pred_region
          %s2710 = ssub.s32 192, 192
          %2711 = vsyncadd %s2702, %s2710
          %s2712 = smul.addr %s28, 3
          %s2713 = smul.addr %s2712, 64
          %s2714 = scalar_lea.hbm %s6, %s2713
          %s2716 = sshll.u32 %s2705, 4
          %s2717 = int_to_ptr.vmem [resolvable:$true] %s2716
          %2719 = dma.vmem_to_hbm [thread:$0]  %s2717, 192, %s2714, %s2702
        $region68: #{unet_de_forward.3} parent=43 // pred_fallthru
          _
      $region44: #{unet_de_forward.3} parent=5 // pred_fallthru
        _
      %p2720 = scmp.le.s32.totalorder 2, %s23
      // Predicated region
      $region69: #{unet_de_forward.3} parent=5 // pred_check
        %p2721 = pneg %p2720
      $region70: #{unet_de_forward.3} parent=5 // pred_check_branch
        %2723 = sbr.rel (%p2721) target = $region72
      $region71: #{unet_de_forward.3} parent=5 // pred_region
        %s2724 = ssub.s32 %s23, 2
        // Predicated region
        $region73: #{unet_de_forward.3} parent=71 // pred_check
          %p2725 = pneg %p188
        $region74: #{unet_de_forward.3} parent=71 // pred_check_branch
          %2727 = sbr.rel (%p2725) target = $region76
        $region75: #{unet_de_forward.3} parent=71 // pred_region
          %s2728 = sand.u32 %s173, 1
          %s2729 = scalar_lea.sflag [#allocation5], %s2728
          %s2730 = sand.u32 %s173, 1
          %s2731 = smul.addr %s2730, 12
          %s2732 = scalar_lea.vmem [#allocation12], %s2731
          %2733 = dma.done %s2729, 192
        $region76: #{unet_de_forward.3} parent=71 // pred_fallthru
          _
      $region72: #{unet_de_forward.3} parent=5 // pred_fallthru
        _
    $region6: #{unet_de_forward.3} parent=1 // loop_footer
      %s27 = sadd.s32 1, %s23
    $region7: #{unet_de_forward.3} parent=1 // loop_footer_branch
      %22 = sbr.rel target = $region3
    $region8: #{unet_de_forward.3} parent=1 // loop_exit
      _
    %2734 = vsyncpa [#allocation4], 1
    %s2735 = scalar_lea.sflag [#allocation4], 1
    %2736 = vsyncpa %s2735, 1
    %2737 = vsyncpa [#allocation7], 1
    %s2738 = scalar_lea.sflag [#allocation7], 1
    %2739 = vsyncpa %s2738, 1
    %2740 = vsyncpa [#allocation10], 1
    %2741 = vsyncpa [#allocation5], 1
    %s2742 = scalar_lea.sflag [#allocation5], 1
    %2743 = vsyncpa %s2742, 1

</llo_original>
